<compile_context>
chip_gen: v7x
topology: tpu7x:2x2x1
jax: 0.10.0
libtpu: 0.0.40
codegen_flags: <defaults>
</compile_context>

<pallas_src>
import jax
import jax.numpy as jnp
from jax.experimental import pallas as pl
from jax.experimental.pallas import tpu as pltpu


def fused_res_input_kernel(xpad_ref, w1_ref, b1_ref, w2_ref, b2_ref,
                           o_ref, h_scratch):
    # xpad_ref : [1, Hp, Wp, Cin]  spatially zero-padded input (full image for
    #                              this batch element; resident across row blocks)
    # w1_ref   : [Cin, C1]         1x1-conv weight
    # b1_ref   : [1, C1]
    # w2_ref   : [K, K*C1, C2]     5x5-conv weight, (kx, c) flattened per ky
    # b2_ref   : [1, C2]
    # o_ref    : [1, TH*W, C2]     output rows for this (batch, row-block)
    # h_scratch: [TH+K-1, Wp, C1]  f32 VMEM scratch (padded 48-ch activations)
    THh, Wp, C1 = h_scratch.shape
    _, Hp, _, Cin = xpad_ref.shape
    K = w2_ref.shape[0]
    C2 = o_ref.shape[-1]
    TH = THh - (K - 1)
    W = Wp - (K - 1)
    H = Hp - (K - 1)
    P = (K - 1) // 2

    r = pl.program_id(1)
    row0 = pl.multiple_of(r * TH, TH)          # first padded row of this slab

    # ---- fused 1x1 conv + bias + ELU.  K=4 is too shallow for the MXU, so
    # ---- express it as 4 VPU multiply-adds against broadcast w1 rows.
    x_tile = xpad_ref[0, pl.ds(row0, THh), :, :]        # [THh, Wp, Cin]
    w1v = w1_ref[...]                                   # [Cin, C1]
    h = jnp.zeros((THh, Wp, C1), jnp.float32) + b1_ref[...].reshape(1, 1, C1)
    for c in range(Cin):                                # Cin = 4, static unroll
        h = h + x_tile[:, :, c:c + 1] * w1v[c:c + 1, :].reshape(1, 1, C1)
    # ELU with alpha = 1.0 (PyTorch default); exp guarded for overflow safety.
    h = jnp.where(h > 0, h, jnp.exp(jnp.minimum(h, 0.0)) - 1.0)

    # Zero the spatial-padding halo: the 5x5 conv must see 0 there, not ELU(b1).
    rows = row0 + jax.lax.broadcasted_iota(jnp.int32, (THh, Wp, 1), 0)
    cols = jax.lax.broadcasted_iota(jnp.int32, (THh, Wp, 1), 1)
    valid = (rows >= P) & (rows < H + P) & (cols >= P) & (cols < W + P)
    h_scratch[...] = jnp.where(valid, h, 0.0)

    # ---- 5x5 conv: 5 matmuls of contraction depth K*C1=240 (im2col along kx),
    # ---- instead of 25 K=48 matmuls with per-tap accumulator RMW.
    # TODO(synk): on v6e/v7x, casting patch/w2 to bf16 (keeping f32 accumulation)
    # would roughly double MXU throughput; kept f32 here for the 1e-3 check.
    acc = jnp.zeros((TH * W, C2), jnp.float32) + b2_ref[...]
    for ky in range(K):                                 # static unroll, 5 taps
        patch = jnp.concatenate(
            [h_scratch[ky:ky + TH, kx:kx + W, :] for kx in range(K)], axis=-1)
        acc = acc + jnp.dot(patch.reshape(TH * W, K * C1), w2_ref[ky],
                            preferred_element_type=jnp.float32)
    o_ref[0] = acc


def _pick_row_block(H, W, target_rows=64):
    """Largest TH dividing H with TH*W <= target_rows and TH*W % 8 == 0."""
    for th in range(min(H, max(1, target_rows // max(W, 1))), 0, -1):
        if H % th == 0 and (th * W) % 8 == 0:
            return th
    return H  # fall back: one block = whole image (block dim equals full dim)


def res_input_forward(x_nchw, w1, b1, w2, b2):
    N, Cin, H, W = x_nchw.shape
    C1 = w1.shape[1]
    K = w2.shape[0]
    C2 = w2.shape[-1]
    P = (K - 1) // 2
    TH = _pick_row_block(H, W)
    assert H % TH == 0

    # NCHW -> NHWC on the tiny 4-channel input, plus spatial zero-pad (cheap).
    x_nhwc = jnp.transpose(x_nchw, (0, 2, 3, 1)).astype(jnp.float32)
    x_pad = jnp.pad(x_nhwc, ((0, 0), (P, P), (P, P), (0, 0)))
    Hp, Wp = H + 2 * P, W + 2 * P

    # [ky, kx, c, o] -> [ky, kx*C1 + c, o] : matches the per-ky im2col order.
    w2_r = w2.reshape(K, K * C1, C2).astype(jnp.float32)

    out2d = pl.pallas_call(
        fused_res_input_kernel,
        out_shape=jax.ShapeDtypeStruct((N, H * W, C2), jnp.float32),
        grid=(N, H // TH),
        in_specs=[
            pl.BlockSpec((1, Hp, Wp, Cin), lambda n, r: (n, 0, 0, 0)),
            pl.BlockSpec((Cin, C1), lambda n, r: (0, 0)),
            pl.BlockSpec((1, C1), lambda n, r: (0, 0)),
            pl.BlockSpec((K, K * C1, C2), lambda n, r: (0, 0, 0)),
            pl.BlockSpec((1, C2), lambda n, r: (0, 0)),
        ],
        out_specs=pl.BlockSpec((1, TH * W, C2), lambda n, r: (n, r, 0)),
        scratch_shapes=[pltpu.VMEM((TH + K - 1, Wp, C1), jnp.float32)],
        compiler_params=pltpu.CompilerParams(
            dimension_semantics=("parallel", "parallel")),
    )(x_pad,
      w1.astype(jnp.float32),
      b1.reshape(1, C1).astype(jnp.float32),
      w2_r,
      b2.reshape(1, C2).astype(jnp.float32))

    out_nhwc = out2d.reshape(N, H, W, C2)
    # Final NHWC -> NCHW transpose kept only to match the PyTorch interface;
    # a full-NHWC pipeline would drop this extra HBM pass.
    return jnp.transpose(out_nhwc, (0, 3, 1, 2))


def ref_forward(x_nchw, w1, b1, w2, b2):
    """Pure-JAX reference (lax.conv) for correctness check."""
    x = jnp.transpose(x_nchw, (0, 2, 3, 1))
    h = jax.lax.conv_general_dilated(
        x, w1.reshape(1, 1, *w1.shape), (1, 1), 'VALID',
        dimension_numbers=('NHWC', 'HWIO', 'NHWC')) + b1
    h = jnp.where(h > 0, h, jnp.exp(h) - 1.0)  # ELU(alpha=1)
    o = jax.lax.conv_general_dilated(
        h, w2, (1, 1), ((2, 2), (2, 2)),
        dimension_numbers=('NHWC', 'HWIO', 'NHWC')) + b2
    return jnp.transpose(o, (0, 3, 1, 2))


if __name__ == "__main__":
    key = jax.random.PRNGKey(0)
    kx, k1w, k1b, k2w, k2b = jax.random.split(key, 5)

    N, Cin, H, W = 2, 4, 16, 16
    C1, C2, K = 48, 192, 5

    x = jax.random.normal(kx, (N, Cin, H, W), jnp.float32)
    # deterministic synthetic parameters (shapes match nn.Conv2d of the module)
    w1 = jax.random.normal(k1w, (Cin, C1), jnp.float32) / jnp.sqrt(Cin)
    b1 = jax.random.normal(k1b, (C1,), jnp.float32) * 0.1
    w2 = jax.random.normal(k2w, (K, K, C1, C2), jnp.float32) / jnp.sqrt(Cin * K * K)
    b2 = jax.random.normal(k2b, (C2,), jnp.float32) * 0.1

    out = jax.block_until_ready(res_input_forward(x, w1, b1, w2, b2))
    ref = jax.block_until_ready(ref_forward(x, w1, b1, w2, b2))

    assert out.shape == (N, C2, H, W), out.shape
    assert jnp.allclose(out, ref, atol=1e-3, rtol=1e-3), float(
        jnp.max(jnp.abs(out - ref)))
    print("KERNEL_OK")
</pallas_src>

<mosaic_0001>
module attributes {stable_mosaic.version = 11 : i64} {
  func.func @fused_res_input_kernel(%arg0: i32, %arg1: i32, %arg2: memref<1x20x20x4xf32, #tpu.memory_space<vmem>>, %arg3: memref<4x48xf32, #tpu.memory_space<vmem>>, %arg4: memref<1x48xf32, #tpu.memory_space<vmem>>, %arg5: memref<5x240x192xf32, #tpu.memory_space<vmem>>, %arg6: memref<1x192xf32, #tpu.memory_space<vmem>>, %arg7: memref<1x64x192xf32, #tpu.memory_space<vmem>>, %arg8: memref<8x20x48xf32, #tpu.memory_space<vmem>>) attributes {dimension_semantics = [#tpu.dimension_semantics<parallel>, #tpu.dimension_semantics<parallel>], iteration_bounds = array<i64: 2, 4>, scalar_prefetch = 0 : i64, scratch_operands = 1 : i64, tpu.core_type = #tpu.core_type<tc>, window_params = [{transform_indices = @transform_0, window_bounds = array<i64: 1, 20, 20, 4>}, {pipeline_mode = #tpu.pipeline_mode<synchronous>, transform_indices = @transform_1, window_bounds = array<i64: 4, 48>}, {pipeline_mode = #tpu.pipeline_mode<synchronous>, transform_indices = @transform_2, window_bounds = array<i64: 1, 48>}, {pipeline_mode = #tpu.pipeline_mode<synchronous>, transform_indices = @transform_3, window_bounds = array<i64: 5, 240, 192>}, {pipeline_mode = #tpu.pipeline_mode<synchronous>, transform_indices = @transform_4, window_bounds = array<i64: 1, 192>}, {transform_indices = @transform_5, window_bounds = array<i64: 1, 64, 192>}]} {
    %c4_i32 = arith.constant 4 : i32
    %0 = arith.muli %arg1, %c4_i32 : i32
    %1 = tpu.assume_multiple %0, 4 : i32
    %c0 = arith.constant 0 : index
    %2 = arith.index_cast %1 : i32 to index
    %c0_0 = arith.constant 0 : index
    %c0_1 = arith.constant 0 : index
    %3 = vector.load %arg2[%c0, %2, %c0_0, %c0_1] : memref<1x20x20x4xf32, #tpu.memory_space<vmem>>, vector<1x8x20x4xf32>
    %4 = vector.shape_cast %3 : vector<1x8x20x4xf32> to vector<8x20x4xf32>
    %c0_2 = arith.constant 0 : index
    %c0_3 = arith.constant 0 : index
    %5 = vector.load %arg3[%c0_2, %c0_3] : memref<4x48xf32, #tpu.memory_space<vmem>>, vector<4x48xf32>
    %cst = arith.constant 0.000000e+00 : f32
    %6 = vector.broadcast %cst : f32 to vector<8x20x48xf32>
    %c0_4 = arith.constant 0 : index
    %c0_5 = arith.constant 0 : index
    %7 = vector.load %arg4[%c0_4, %c0_5] : memref<1x48xf32, #tpu.memory_space<vmem>>, vector<1x48xf32>
    %8 = vector.shape_cast %7 : vector<1x48xf32> to vector<1x1x48xf32>
    %9 = vector.broadcast %8 : vector<1x1x48xf32> to vector<8x20x48xf32>
    %10 = arith.addf %6, %9 : vector<8x20x48xf32>
    %11 = vector.extract_strided_slice %4 {offsets = [0, 0, 0], sizes = [8, 20, 1], strides = [1, 1, 1]} : vector<8x20x4xf32> to vector<8x20x1xf32>
    %12 = vector.extract_strided_slice %5 {offsets = [0, 0], sizes = [1, 48], strides = [1, 1]} : vector<4x48xf32> to vector<1x48xf32>
    %13 = vector.shape_cast %12 : vector<1x48xf32> to vector<1x1x48xf32>
    %14 = vector.broadcast %11 : vector<8x20x1xf32> to vector<8x20x48xf32>
    %15 = vector.broadcast %13 : vector<1x1x48xf32> to vector<8x20x48xf32>
    %16 = arith.mulf %14, %15 : vector<8x20x48xf32>
    %17 = arith.addf %10, %16 : vector<8x20x48xf32>
    %18 = vector.extract_strided_slice %4 {offsets = [0, 0, 1], sizes = [8, 20, 1], strides = [1, 1, 1]} : vector<8x20x4xf32> to vector<8x20x1xf32>
    %19 = vector.extract_strided_slice %5 {offsets = [1, 0], sizes = [1, 48], strides = [1, 1]} : vector<4x48xf32> to vector<1x48xf32>
    %20 = vector.shape_cast %19 : vector<1x48xf32> to vector<1x1x48xf32>
    %21 = vector.broadcast %18 : vector<8x20x1xf32> to vector<8x20x48xf32>
    %22 = vector.broadcast %20 : vector<1x1x48xf32> to vector<8x20x48xf32>
    %23 = arith.mulf %21, %22 : vector<8x20x48xf32>
    %24 = arith.addf %17, %23 : vector<8x20x48xf32>
    %25 = vector.extract_strided_slice %4 {offsets = [0, 0, 2], sizes = [8, 20, 1], strides = [1, 1, 1]} : vector<8x20x4xf32> to vector<8x20x1xf32>
    %26 = vector.extract_strided_slice %5 {offsets = [2, 0], sizes = [1, 48], strides = [1, 1]} : vector<4x48xf32> to vector<1x48xf32>
    %27 = vector.shape_cast %26 : vector<1x48xf32> to vector<1x1x48xf32>
    %28 = vector.broadcast %25 : vector<8x20x1xf32> to vector<8x20x48xf32>
    %29 = vector.broadcast %27 : vector<1x1x48xf32> to vector<8x20x48xf32>
    %30 = arith.mulf %28, %29 : vector<8x20x48xf32>
    %31 = arith.addf %24, %30 : vector<8x20x48xf32>
    %32 = vector.extract_strided_slice %4 {offsets = [0, 0, 3], sizes = [8, 20, 1], strides = [1, 1, 1]} : vector<8x20x4xf32> to vector<8x20x1xf32>
    %33 = vector.extract_strided_slice %5 {offsets = [3, 0], sizes = [1, 48], strides = [1, 1]} : vector<4x48xf32> to vector<1x48xf32>
    %34 = vector.shape_cast %33 : vector<1x48xf32> to vector<1x1x48xf32>
    %35 = vector.broadcast %32 : vector<8x20x1xf32> to vector<8x20x48xf32>
    %36 = vector.broadcast %34 : vector<1x1x48xf32> to vector<8x20x48xf32>
    %37 = arith.mulf %35, %36 : vector<8x20x48xf32>
    %38 = arith.addf %31, %37 : vector<8x20x48xf32>
    %cst_6 = arith.constant 0.000000e+00 : f32
    %39 = vector.broadcast %cst_6 : f32 to vector<8x20x48xf32>
    %40 = arith.cmpf ogt, %38, %39 : vector<8x20x48xf32>
    %cst_7 = arith.constant 0.000000e+00 : f32
    %41 = vector.broadcast %cst_7 : f32 to vector<8x20x48xf32>
    %42 = arith.minimumf %38, %41 : vector<8x20x48xf32>
    %43 = math.exp %42 : vector<8x20x48xf32>
    %cst_8 = arith.constant 1.000000e+00 : f32
    %44 = vector.broadcast %cst_8 : f32 to vector<8x20x48xf32>
    %45 = arith.subf %43, %44 : vector<8x20x48xf32>
    %46 = arith.select %40, %38, %45 : vector<8x20x48xi1>, vector<8x20x48xf32>
    %47 = tpu.iota {dimensions = array<i32: 0>} : vector<8x20x1xi32>
    %48 = vector.broadcast %1 : i32 to vector<8x20x1xi32>
    %49 = arith.addi %48, %47 : vector<8x20x1xi32>
    %50 = tpu.iota {dimensions = array<i32: 1>} : vector<8x20x1xi32>
    %c2_i32 = arith.constant 2 : i32
    %51 = vector.broadcast %c2_i32 : i32 to vector<8x20x1xi32>
    %52 = arith.cmpi sge, %49, %51 : vector<8x20x1xi32>
    %c18_i32 = arith.constant 18 : i32
    %53 = vector.broadcast %c18_i32 : i32 to vector<8x20x1xi32>
    %54 = arith.cmpi slt, %49, %53 : vector<8x20x1xi32>
    %55 = arith.andi %52, %54 : vector<8x20x1xi1>
    %c2_i32_9 = arith.constant 2 : i32
    %56 = vector.broadcast %c2_i32_9 : i32 to vector<8x20x1xi32>
    %57 = arith.cmpi sge, %50, %56 : vector<8x20x1xi32>
    %58 = arith.andi %55, %57 : vector<8x20x1xi1>
    %c18_i32_10 = arith.constant 18 : i32
    %59 = vector.broadcast %c18_i32_10 : i32 to vector<8x20x1xi32>
    %60 = arith.cmpi slt, %50, %59 : vector<8x20x1xi32>
    %61 = arith.andi %58, %60 : vector<8x20x1xi1>
    %cst_11 = arith.constant 0.000000e+00 : f32
    %62 = vector.shape_cast %61 : vector<8x20x1xi1> to vector<8x20x1xi1>
    %63 = vector.broadcast %62 : vector<8x20x1xi1> to vector<8x20x48xi1>
    %64 = vector.broadcast %cst_11 : f32 to vector<8x20x48xf32>
    %65 = arith.select %63, %46, %64 : vector<8x20x48xi1>, vector<8x20x48xf32>
    %c0_12 = arith.constant 0 : index
    %c0_13 = arith.constant 0 : index
    %c0_14 = arith.constant 0 : index
    %66 = vector.load %arg8[%c0_12, %c0_13, %c0_14] : memref<8x20x48xf32, #tpu.memory_space<vmem>>, vector<8x20x48xf32>
    tpu.vector_store %arg8[%c0_12, %c0_13, %c0_14], %65 {strides = array<i32>} : memref<8x20x48xf32, #tpu.memory_space<vmem>>, vector<8x20x48xf32>,
    %cst_15 = arith.constant 0.000000e+00 : f32
    %67 = vector.broadcast %cst_15 : f32 to vector<64x192xf32>
    %c0_16 = arith.constant 0 : index
    %c0_17 = arith.constant 0 : index
    %68 = vector.load %arg6[%c0_16, %c0_17] : memref<1x192xf32, #tpu.memory_space<vmem>>, vector<1x192xf32>
    %69 = vector.broadcast %68 : vector<1x192xf32> to vector<64x192xf32>
    %70 = arith.addf %67, %69 : vector<64x192xf32>
    %c0_18 = arith.constant 0 : index
    %c0_19 = arith.constant 0 : index
    %c0_20 = arith.constant 0 : index
    %71 = vector.load %arg8[%c0_18, %c0_19, %c0_20] : memref<8x20x48xf32, #tpu.memory_space<vmem>>, vector<4x16x48xf32>
    %c0_21 = arith.constant 0 : index
    %c1 = arith.constant 1 : index
    %c0_22 = arith.constant 0 : index
    %72 = vector.load %arg8[%c0_21, %c1, %c0_22] : memref<8x20x48xf32, #tpu.memory_space<vmem>>, vector<4x16x48xf32>
    %c0_23 = arith.constant 0 : index
    %c2 = arith.constant 2 : index
    %c0_24 = arith.constant 0 : index
    %73 = vector.load %arg8[%c0_23, %c2, %c0_24] : memref<8x20x48xf32, #tpu.memory_space<vmem>>, vector<4x16x48xf32>
    %c0_25 = arith.constant 0 : index
    %c3 = arith.constant 3 : index
    %c0_26 = arith.constant 0 : index
    %74 = vector.load %arg8[%c0_25, %c3, %c0_26] : memref<8x20x48xf32, #tpu.memory_space<vmem>>, vector<4x16x48xf32>
    %c0_27 = arith.constant 0 : index
    %c4 = arith.constant 4 : index
    %c0_28 = arith.constant 0 : index
    %75 = vector.load %arg8[%c0_27, %c4, %c0_28] : memref<8x20x48xf32, #tpu.memory_space<vmem>>, vector<4x16x48xf32>
    %76 = tpu.concatenate %71, %72, %73, %74, %75 in 2 : vector<4x16x48xf32>, vector<4x16x48xf32>, vector<4x16x48xf32>, vector<4x16x48xf32>, vector<4x16x48xf32> -> vector<4x16x240xf32>
    %77 = vector.shape_cast %76 : vector<4x16x240xf32> to vector<64x240xf32>
    %c0_29 = arith.constant 0 : index
    %c0_30 = arith.constant 0 : index
    %c0_31 = arith.constant 0 : index
    %78 = vector.load %arg5[%c0_29, %c0_30, %c0_31] : memref<5x240x192xf32, #tpu.memory_space<vmem>>, vector<1x240x192xf32>
    %79 = vector.shape_cast %78 : vector<1x240x192xf32> to vector<240x192xf32>
    %cst_32 = arith.constant dense<0.000000e+00> : vector<64x192xf32>
    %80 = tpu.matmul %77, %79, %cst_32 {dimension_numbers = #tpu.dot_dimension_numbers<[1], [0], [0], [1], [0, 0, 1, 1], [], []>} : vector<64x240xf32>, vector<240x192xf32>, vector<64x192xf32> -> vector<64x192xf32>
    %81 = arith.addf %70, %80 : vector<64x192xf32>
    %c1_33 = arith.constant 1 : index
    %c0_34 = arith.constant 0 : index
    %c0_35 = arith.constant 0 : index
    %82 = vector.load %arg8[%c1_33, %c0_34, %c0_35] : memref<8x20x48xf32, #tpu.memory_space<vmem>>, vector<4x16x48xf32>
    %c1_36 = arith.constant 1 : index
    %c1_37 = arith.constant 1 : index
    %c0_38 = arith.constant 0 : index
    %83 = vector.load %arg8[%c1_36, %c1_37, %c0_38] : memref<8x20x48xf32, #tpu.memory_space<vmem>>, vector<4x16x48xf32>
    %c1_39 = arith.constant 1 : index
    %c2_40 = arith.constant 2 : index
    %c0_41 = arith.constant 0 : index
    %84 = vector.load %arg8[%c1_39, %c2_40, %c0_41] : memref<8x20x48xf32, #tpu.memory_space<vmem>>, vector<4x16x48xf32>
    %c1_42 = arith.constant 1 : index
    %c3_43 = arith.constant 3 : index
    %c0_44 = arith.constant 0 : index
    %85 = vector.load %arg8[%c1_42, %c3_43, %c0_44] : memref<8x20x48xf32, #tpu.memory_space<vmem>>, vector<4x16x48xf32>
    %c1_45 = arith.constant 1 : index
    %c4_46 = arith.constant 4 : index
    %c0_47 = arith.constant 0 : index
    %86 = vector.load %arg8[%c1_45, %c4_46, %c0_47] : memref<8x20x48xf32, #tpu.memory_space<vmem>>, vector<4x16x48xf32>
    %87 = tpu.concatenate %82, %83, %84, %85, %86 in 2 : vector<4x16x48xf32>, vector<4x16x48xf32>, vector<4x16x48xf32>, vector<4x16x48xf32>, vector<4x16x48xf32> -> vector<4x16x240xf32>
    %88 = vector.shape_cast %87 : vector<4x16x240xf32> to vector<64x240xf32>
    %c1_48 = arith.constant 1 : index
    %c0_49 = arith.constant 0 : index
    %c0_50 = arith.constant 0 : index
    %89 = vector.load %arg5[%c1_48, %c0_49, %c0_50] : memref<5x240x192xf32, #tpu.memory_space<vmem>>, vector<1x240x192xf32>
    %90 = vector.shape_cast %89 : vector<1x240x192xf32> to vector<240x192xf32>
    %cst_51 = arith.constant dense<0.000000e+00> : vector<64x192xf32>
    %91 = tpu.matmul %88, %90, %cst_51 {dimension_numbers = #tpu.dot_dimension_numbers<[1], [0], [0], [1], [0, 0, 1, 1], [], []>} : vector<64x240xf32>, vector<240x192xf32>, vector<64x192xf32> -> vector<64x192xf32>
    %92 = arith.addf %81, %91 : vector<64x192xf32>
    %c2_52 = arith.constant 2 : index
    %c0_53 = arith.constant 0 : index
    %c0_54 = arith.constant 0 : index
    %93 = vector.load %arg8[%c2_52, %c0_53, %c0_54] : memref<8x20x48xf32, #tpu.memory_space<vmem>>, vector<4x16x48xf32>
    %c2_55 = arith.constant 2 : index
    %c1_56 = arith.constant 1 : index
    %c0_57 = arith.constant 0 : index
    %94 = vector.load %arg8[%c2_55, %c1_56, %c0_57] : memref<8x20x48xf32, #tpu.memory_space<vmem>>, vector<4x16x48xf32>
    %c2_58 = arith.constant 2 : index
    %c2_59 = arith.constant 2 : index
    %c0_60 = arith.constant 0 : index
    %95 = vector.load %arg8[%c2_58, %c2_59, %c0_60] : memref<8x20x48xf32, #tpu.memory_space<vmem>>, vector<4x16x48xf32>
    %c2_61 = arith.constant 2 : index
    %c3_62 = arith.constant 3 : index
    %c0_63 = arith.constant 0 : index
    %96 = vector.load %arg8[%c2_61, %c3_62, %c0_63] : memref<8x20x48xf32, #tpu.memory_space<vmem>>, vector<4x16x48xf32>
    %c2_64 = arith.constant 2 : index
    %c4_65 = arith.constant 4 : index
    %c0_66 = arith.constant 0 : index
    %97 = vector.load %arg8[%c2_64, %c4_65, %c0_66] : memref<8x20x48xf32, #tpu.memory_space<vmem>>, vector<4x16x48xf32>
    %98 = tpu.concatenate %93, %94, %95, %96, %97 in 2 : vector<4x16x48xf32>, vector<4x16x48xf32>, vector<4x16x48xf32>, vector<4x16x48xf32>, vector<4x16x48xf32> -> vector<4x16x240xf32>
    %99 = vector.shape_cast %98 : vector<4x16x240xf32> to vector<64x240xf32>
    %c2_67 = arith.constant 2 : index
    %c0_68 = arith.constant 0 : index
    %c0_69 = arith.constant 0 : index
    %100 = vector.load %arg5[%c2_67, %c0_68, %c0_69] : memref<5x240x192xf32, #tpu.memory_space<vmem>>, vector<1x240x192xf32>
    %101 = vector.shape_cast %100 : vector<1x240x192xf32> to vector<240x192xf32>
    %cst_70 = arith.constant dense<0.000000e+00> : vector<64x192xf32>
    %102 = tpu.matmul %99, %101, %cst_70 {dimension_numbers = #tpu.dot_dimension_numbers<[1], [0], [0], [1], [0, 0, 1, 1], [], []>} : vector<64x240xf32>, vector<240x192xf32>, vector<64x192xf32> -> vector<64x192xf32>
    %103 = arith.addf %92, %102 : vector<64x192xf32>
    %c3_71 = arith.constant 3 : index
    %c0_72 = arith.constant 0 : index
    %c0_73 = arith.constant 0 : index
    %104 = vector.load %arg8[%c3_71, %c0_72, %c0_73] : memref<8x20x48xf32, #tpu.memory_space<vmem>>, vector<4x16x48xf32>
    %c3_74 = arith.constant 3 : index
    %c1_75 = arith.constant 1 : index
    %c0_76 = arith.constant 0 : index
    %105 = vector.load %arg8[%c3_74, %c1_75, %c0_76] : memref<8x20x48xf32, #tpu.memory_space<vmem>>, vector<4x16x48xf32>
    %c3_77 = arith.constant 3 : index
    %c2_78 = arith.constant 2 : index
    %c0_79 = arith.constant 0 : index
    %106 = vector.load %arg8[%c3_77, %c2_78, %c0_79] : memref<8x20x48xf32, #tpu.memory_space<vmem>>, vector<4x16x48xf32>
    %c3_80 = arith.constant 3 : index
    %c3_81 = arith.constant 3 : index
    %c0_82 = arith.constant 0 : index
    %107 = vector.load %arg8[%c3_80, %c3_81, %c0_82] : memref<8x20x48xf32, #tpu.memory_space<vmem>>, vector<4x16x48xf32>
    %c3_83 = arith.constant 3 : index
    %c4_84 = arith.constant 4 : index
    %c0_85 = arith.constant 0 : index
    %108 = vector.load %arg8[%c3_83, %c4_84, %c0_85] : memref<8x20x48xf32, #tpu.memory_space<vmem>>, vector<4x16x48xf32>
    %109 = tpu.concatenate %104, %105, %106, %107, %108 in 2 : vector<4x16x48xf32>, vector<4x16x48xf32>, vector<4x16x48xf32>, vector<4x16x48xf32>, vector<4x16x48xf32> -> vector<4x16x240xf32>
    %110 = vector.shape_cast %109 : vector<4x16x240xf32> to vector<64x240xf32>
    %c3_86 = arith.constant 3 : index
    %c0_87 = arith.constant 0 : index
    %c0_88 = arith.constant 0 : index
    %111 = vector.load %arg5[%c3_86, %c0_87, %c0_88] : memref<5x240x192xf32, #tpu.memory_space<vmem>>, vector<1x240x192xf32>
    %112 = vector.shape_cast %111 : vector<1x240x192xf32> to vector<240x192xf32>
    %cst_89 = arith.constant dense<0.000000e+00> : vector<64x192xf32>
    %113 = tpu.matmul %110, %112, %cst_89 {dimension_numbers = #tpu.dot_dimension_numbers<[1], [0], [0], [1], [0, 0, 1, 1], [], []>} : vector<64x240xf32>, vector<240x192xf32>, vector<64x192xf32> -> vector<64x192xf32>
    %114 = arith.addf %103, %113 : vector<64x192xf32>
    %c4_90 = arith.constant 4 : index
    %c0_91 = arith.constant 0 : index
    %c0_92 = arith.constant 0 : index
    %115 = vector.load %arg8[%c4_90, %c0_91, %c0_92] : memref<8x20x48xf32, #tpu.memory_space<vmem>>, vector<4x16x48xf32>
    %c4_93 = arith.constant 4 : index
    %c1_94 = arith.constant 1 : index
    %c0_95 = arith.constant 0 : index
    %116 = vector.load %arg8[%c4_93, %c1_94, %c0_95] : memref<8x20x48xf32, #tpu.memory_space<vmem>>, vector<4x16x48xf32>
    %c4_96 = arith.constant 4 : index
    %c2_97 = arith.constant 2 : index
    %c0_98 = arith.constant 0 : index
    %117 = vector.load %arg8[%c4_96, %c2_97, %c0_98] : memref<8x20x48xf32, #tpu.memory_space<vmem>>, vector<4x16x48xf32>
    %c4_99 = arith.constant 4 : index
    %c3_100 = arith.constant 3 : index
    %c0_101 = arith.constant 0 : index
    %118 = vector.load %arg8[%c4_99, %c3_100, %c0_101] : memref<8x20x48xf32, #tpu.memory_space<vmem>>, vector<4x16x48xf32>
    %c4_102 = arith.constant 4 : index
    %c4_103 = arith.constant 4 : index
    %c0_104 = arith.constant 0 : index
    %119 = vector.load %arg8[%c4_102, %c4_103, %c0_104] : memref<8x20x48xf32, #tpu.memory_space<vmem>>, vector<4x16x48xf32>
    %120 = tpu.concatenate %115, %116, %117, %118, %119 in 2 : vector<4x16x48xf32>, vector<4x16x48xf32>, vector<4x16x48xf32>, vector<4x16x48xf32>, vector<4x16x48xf32> -> vector<4x16x240xf32>
    %121 = vector.shape_cast %120 : vector<4x16x240xf32> to vector<64x240xf32>
    %c4_105 = arith.constant 4 : index
    %c0_106 = arith.constant 0 : index
    %c0_107 = arith.constant 0 : index
    %122 = vector.load %arg5[%c4_105, %c0_106, %c0_107] : memref<5x240x192xf32, #tpu.memory_space<vmem>>, vector<1x240x192xf32>
    %123 = vector.shape_cast %122 : vector<1x240x192xf32> to vector<240x192xf32>
    %cst_108 = arith.constant dense<0.000000e+00> : vector<64x192xf32>
    %124 = tpu.matmul %121, %123, %cst_108 {dimension_numbers = #tpu.dot_dimension_numbers<[1], [0], [0], [1], [0, 0, 1, 1], [], []>} : vector<64x240xf32>, vector<240x192xf32>, vector<64x192xf32> -> vector<64x192xf32>
    %125 = arith.addf %114, %124 : vector<64x192xf32>
    %c0_109 = arith.constant 0 : index
    %c0_110 = arith.constant 0 : index
    %c0_111 = arith.constant 0 : index
    %126 = vector.load %arg7[%c0_109, %c0_110, %c0_111] : memref<1x64x192xf32, #tpu.memory_space<vmem>>, vector<1x64x192xf32>
    %127 = vector.shape_cast %126 : vector<1x64x192xf32> to vector<64x192xf32>
    %128 = vector.shape_cast %125 : vector<64x192xf32> to vector<1x64x192xf32>
    tpu.vector_store %arg7[%c0_109, %c0_110, %c0_111], %128 {strides = array<i32>} : memref<1x64x192xf32, #tpu.memory_space<vmem>>, vector<1x64x192xf32>,
    return
  }
  func.func @transform_0(%arg0: i32, %arg1: i32) -> (i32, i32, i32, i32) {
    %c0_i32 = arith.constant 0 : i32
    %c0_i32_0 = arith.constant 0 : i32
    %c0_i32_1 = arith.constant 0 : i32
    %c0_i32_2 = arith.constant 0 : i32
    return %arg0, %c0_i32, %c0_i32_0, %c0_i32_1 : i32, i32, i32, i32
  }
  func.func @transform_1(%arg0: i32, %arg1: i32) -> (i32, i32) {
    %c0_i32 = arith.constant 0 : i32
    %c0_i32_0 = arith.constant 0 : i32
    %c0_i32_1 = arith.constant 0 : i32
    return %c0_i32, %c0_i32_0 : i32, i32
  }
  func.func @transform_2(%arg0: i32, %arg1: i32) -> (i32, i32) {
    %c0_i32 = arith.constant 0 : i32
    %c0_i32_0 = arith.constant 0 : i32
    %c0_i32_1 = arith.constant 0 : i32
    return %c0_i32, %c0_i32_0 : i32, i32
  }
  func.func @transform_3(%arg0: i32, %arg1: i32) -> (i32, i32, i32) {
    %c0_i32 = arith.constant 0 : i32
    %c0_i32_0 = arith.constant 0 : i32
    %c0_i32_1 = arith.constant 0 : i32
    %c0_i32_2 = arith.constant 0 : i32
    return %c0_i32, %c0_i32_0, %c0_i32_1 : i32, i32, i32
  }
  func.func @transform_4(%arg0: i32, %arg1: i32) -> (i32, i32) {
    %c0_i32 = arith.constant 0 : i32
    %c0_i32_0 = arith.constant 0 : i32
    %c0_i32_1 = arith.constant 0 : i32
    return %c0_i32, %c0_i32_0 : i32, i32
  }
  func.func @transform_5(%arg0: i32, %arg1: i32) -> (i32, i32, i32) {
    %c0_i32 = arith.constant 0 : i32
    %c0_i32_0 = arith.constant 0 : i32
    return %arg0, %arg1, %c0_i32 : i32, i32, i32
  }
}

</mosaic_0001>

<llo_original>
// kernel: tpu_custom_call.1
$region0: #{tpu_custom_call.1}
  #allocation0 [shape = 'u32[]', space=smem, size = 0x4, offset = 0x4, fixed_abs, tag = 'smem constant byte address 0x4 - core index']
  #allocation1 [shape = 'u32[144,128]{1,0:T(1,128)}', space=vmem, size = 0x12000, scoped, tag = 'internal scratch']
  #allocation2 [shape = 'f32[8,20,48]{2,1,0:T(8,128)}', space=vmem, size = 0x18000, scoped, tag = 'scratch operand']
  %s0 = inlined_call_operand.vmem [shape: f32[2,20,20,4], index: 0, kind: input, shape index: {}]
  %s1 = inlined_call_operand.vmem [shape: f32[4,48], index: 1, kind: input, shape index: {}]
  %s2 = inlined_call_operand.vmem [shape: f32[1,48], index: 2, kind: input, shape index: {}]
  %s3 = inlined_call_operand.vmem [shape: f32[5,240,192], index: 3, kind: input, shape index: {}]
  %s4 = inlined_call_operand.vmem [shape: f32[1,192], index: 4, kind: input, shape index: {}]
  %s5 = inlined_call_operand.vmem [shape: f32[2,256,192], index: 5, kind: output, shape index: {}]
  %s6 = sld [smem:[#allocation0]]
  $region53: #{tpu_custom_call.1} parent=0
    _
  %s8 = ssub.s32 1, %s6
  %s9 = scalar_select 0, %s8, %s6
  loop: start=0, step=1, limit=10
  $region2: #{tpu_custom_call.1} parent=0 // loop_pre_header
    _
  $region3: #{tpu_custom_call.1} parent=0 // loop_header
    %s11 = sphi 0, %s15
    %p12 = scmp.ge.s32.totalorder %s11, 10
    %s18 = sphi 0, %s30
    %s19 = sphi 0, %s26
    %s20 = sphi 0, %s18
    %s21 = sphi 0, %s19
    %s22 = sphi 0, %s20
    %s23 = sphi 0, %s21
    %s33 = sphi 0, %s35
    %s36 = sphi 0, %s33
    %s37 = sphi 0, %s36
    %s53 = sphi 0, %s37
    %s57 = sphi 0, %s57
    %s59 = sphi 0, %s57
    %s60 = sphi 0, %s59
    %s74 = sphi 0, %s60
    %s78 = sphi 0, %s78
    %s80 = sphi 0, %s78
    %s81 = sphi 0, %s80
    %s95 = sphi 0, %s81
    %s99 = sphi 0, %s99
    %s101 = sphi 0, %s99
    %s102 = sphi 0, %s101
    %s116 = sphi 0, %s102
    %s120 = sphi 0, %s120
    %s122 = sphi 0, %s120
    %s123 = sphi 0, %s122
    %s137 = sphi 0, %s123
    %s145 = sphi 0, %s147
    %s148 = sphi 0, %s145
    %s149 = sphi 0, %s148
    %s165 = sphi 0, %s149
  $region4: #{tpu_custom_call.1} parent=0 // loop_header_branch
    %14 = sbr.rel (%p12) target = $region8
  $region5: #{tpu_custom_call.1} parent=0 // loop_body
    %s16 = ssub.s32 %s11, 1
    %s17 = ssub.s32 %s11, 2
    %s24 = sadd.s32 1, %s19
    %p25 = scmp.ge.s32.totalorder %s24, 4
    %s26 = scalar_select %p25, 0, %s24
    %s27 = sadd.s32 1, %s18
    %s28 = scalar_select %p25, %s27, %s18
    %p29 = scmp.ge.s32.totalorder %s28, 2
    %s30 = scalar_select %p29, 0, %s28
    %s31 = ssub.s32 %s18, %s30
    %p32 = scmp.eq.s32.totalorder %s31, 0
    %s34 = sadd.s32 %s33, 1
    %s35 = scalar_select %p32, %s33, %s34
    %p38 = pneg %p32
    %p39 = scmp.eq.s32.totalorder %s11, 7
    %p40 = por %p38, %p39
    %p41 = scmp.ne.s32.totalorder %s33, %s36
    %p42 = scmp.eq.s32.totalorder %s11, 0
    %p43 = por %p41, %p42
    %p44 = scmp.ne.s32.totalorder %s33, %s36
    %p45 = scmp.eq.s32.totalorder %s16, 7
    %p46 = por %p44, %p45
    %p47 = scmp.ne.s32.totalorder %s36, %s37
    %p48 = scmp.eq.s32.totalorder %s16, 0
    %p49 = por %p47, %p48
    %p50 = scmp.ne.s32.totalorder %s36, %s37
    %p51 = scmp.eq.s32.totalorder %s17, 7
    %p52 = por %p50, %p51
    %p54 = scmp.ne.s32.totalorder %s37, %s53
    %p55 = scmp.eq.s32.totalorder %s17, 0
    %p56 = por %p54, %p55
    %s58 = sadd.s32 %s57, 1
    %p61 = scmp.eq.s32.totalorder %s11, 7
    %p62 = scmp.ne.s32.totalorder %s57, %s59
    %p63 = scmp.eq.s32.totalorder %s11, 0
    %p64 = por %p62, %p63
    %p65 = scmp.ne.s32.totalorder %s57, %s59
    %p66 = scmp.eq.s32.totalorder %s16, 7
    %p67 = por %p65, %p66
    %p68 = scmp.ne.s32.totalorder %s59, %s60
    %p69 = scmp.eq.s32.totalorder %s16, 0
    %p70 = por %p68, %p69
    %p71 = scmp.ne.s32.totalorder %s59, %s60
    %p72 = scmp.eq.s32.totalorder %s17, 7
    %p73 = por %p71, %p72
    %p75 = scmp.ne.s32.totalorder %s60, %s74
    %p76 = scmp.eq.s32.totalorder %s17, 0
    %p77 = por %p75, %p76
    %s79 = sadd.s32 %s78, 1
    %p82 = scmp.eq.s32.totalorder %s11, 7
    %p83 = scmp.ne.s32.totalorder %s78, %s80
    %p84 = scmp.eq.s32.totalorder %s11, 0
    %p85 = por %p83, %p84
    %p86 = scmp.ne.s32.totalorder %s78, %s80
    %p87 = scmp.eq.s32.totalorder %s16, 7
    %p88 = por %p86, %p87
    %p89 = scmp.ne.s32.totalorder %s80, %s81
    %p90 = scmp.eq.s32.totalorder %s16, 0
    %p91 = por %p89, %p90
    %p92 = scmp.ne.s32.totalorder %s80, %s81
    %p93 = scmp.eq.s32.totalorder %s17, 7
    %p94 = por %p92, %p93
    %p96 = scmp.ne.s32.totalorder %s81, %s95
    %p97 = scmp.eq.s32.totalorder %s17, 0
    %p98 = por %p96, %p97
    %s100 = sadd.s32 %s99, 1
    %p103 = scmp.eq.s32.totalorder %s11, 7
    %p104 = scmp.ne.s32.totalorder %s99, %s101
    %p105 = scmp.eq.s32.totalorder %s11, 0
    %p106 = por %p104, %p105
    %p107 = scmp.ne.s32.totalorder %s99, %s101
    %p108 = scmp.eq.s32.totalorder %s16, 7
    %p109 = por %p107, %p108
    %p110 = scmp.ne.s32.totalorder %s101, %s102
    %p111 = scmp.eq.s32.totalorder %s16, 0
    %p112 = por %p110, %p111
    %p113 = scmp.ne.s32.totalorder %s101, %s102
    %p114 = scmp.eq.s32.totalorder %s17, 7
    %p115 = por %p113, %p114
    %p117 = scmp.ne.s32.totalorder %s102, %s116
    %p118 = scmp.eq.s32.totalorder %s17, 0
    %p119 = por %p117, %p118
    %s121 = sadd.s32 %s120, 1
    %p124 = scmp.eq.s32.totalorder %s11, 7
    %p125 = scmp.ne.s32.totalorder %s120, %s122
    %p126 = scmp.eq.s32.totalorder %s11, 0
    %p127 = por %p125, %p126
    %p128 = scmp.ne.s32.totalorder %s120, %s122
    %p129 = scmp.eq.s32.totalorder %s16, 7
    %p130 = por %p128, %p129
    %p131 = scmp.ne.s32.totalorder %s122, %s123
    %p132 = scmp.eq.s32.totalorder %s16, 0
    %p133 = por %p131, %p132
    %p134 = scmp.ne.s32.totalorder %s122, %s123
    %p135 = scmp.eq.s32.totalorder %s17, 7
    %p136 = por %p134, %p135
    %p138 = scmp.ne.s32.totalorder %s123, %s137
    %p139 = scmp.eq.s32.totalorder %s17, 0
    %p140 = por %p138, %p139
    %s141 = ssub.s32 %s18, %s30
    %s142 = ssub.s32 %s19, %s26
    %s143 = sor.u32 %s141, %s142
    %p144 = scmp.eq.s32.totalorder %s143, 0
    %s146 = sadd.s32 %s145, 1
    %s147 = scalar_select %p144, %s145, %s146
    %p150 = pneg %p144
    %p151 = scmp.eq.s32.totalorder %s11, 7
    %p152 = por %p150, %p151
    %p153 = scmp.ne.s32.totalorder %s145, %s148
    %p154 = scmp.eq.s32.totalorder %s11, 0
    %p155 = por %p153, %p154
    %p156 = scmp.ne.s32.totalorder %s145, %s148
    %p157 = scmp.eq.s32.totalorder %s16, 7
    %p158 = por %p156, %p157
    %p159 = scmp.ne.s32.totalorder %s148, %s149
    %p160 = scmp.eq.s32.totalorder %s16, 0
    %p161 = por %p159, %p160
    %p162 = scmp.ne.s32.totalorder %s148, %s149
    %p163 = scmp.eq.s32.totalorder %s17, 7
    %p164 = por %p162, %p163
    %p166 = scmp.ne.s32.totalorder %s149, %s165
    %p167 = scmp.eq.s32.totalorder %s17, 0
    %p168 = por %p166, %p167
    %p169 = scmp.le.s32.totalorder 1, %s11
    %p170 = scmp.lt.s32.totalorder %s11, 9
    %p171 = pnand %p169, %p170
    %p172 = pneg %p171
    // Predicated region
    $region9: #{tpu_custom_call.1} parent=5 // pred_check
      _
    $region10: #{tpu_custom_call.1} parent=5 // pred_check_branch
      %174 = sbr.rel (%p171) target = $region12
    $region11: #{tpu_custom_call.1} parent=5 // pred_region
      %s175 = ssub.s32 %s11, 1
      // Predicated region
      $region13: #{tpu_custom_call.1} parent=11 // pred_check
        %p176 = pneg %p70
      $region14: #{tpu_custom_call.1} parent=11 // pred_check_branch
        %178 = sbr.rel (%p176) target = $region16
      $region15: #{tpu_custom_call.1} parent=11 // pred_region
        _
      $region16: #{tpu_custom_call.1} parent=11 // pred_fallthru
        _
      // Predicated region
      $region17: #{tpu_custom_call.1} parent=11 // pred_check
        %p179 = pneg %p91
      $region18: #{tpu_custom_call.1} parent=11 // pred_check_branch
        %181 = sbr.rel (%p179) target = $region20
      $region19: #{tpu_custom_call.1} parent=11 // pred_region
        _
      $region20: #{tpu_custom_call.1} parent=11 // pred_fallthru
        _
      // Predicated region
      $region21: #{tpu_custom_call.1} parent=11 // pred_check
        %p182 = pneg %p112
      $region22: #{tpu_custom_call.1} parent=11 // pred_check_branch
        %184 = sbr.rel (%p182) target = $region24
      $region23: #{tpu_custom_call.1} parent=11 // pred_region
        _
      $region24: #{tpu_custom_call.1} parent=11 // pred_fallthru
        _
      // Predicated region
      $region25: #{tpu_custom_call.1} parent=11 // pred_check
        %p185 = pneg %p133
      $region26: #{tpu_custom_call.1} parent=11 // pred_check_branch
        %187 = sbr.rel (%p185) target = $region28
      $region27: #{tpu_custom_call.1} parent=11 // pred_region
        _
      $region28: #{tpu_custom_call.1} parent=11 // pred_fallthru
        _
    $region12: #{tpu_custom_call.1} parent=5 // pred_fallthru
      _
    %p188 = scmp.lt.s32.totalorder %s11, 8
    // Predicated region
    $region29: #{tpu_custom_call.1} parent=5 // pred_check
      %p189 = pneg %p188
    $region30: #{tpu_custom_call.1} parent=5 // pred_check_branch
      %191 = sbr.rel (%p189) target = $region32
    $region31: #{tpu_custom_call.1} parent=5 // pred_region
      // Predicated region
      $region33: #{tpu_custom_call.1} parent=31 // pred_check
        %p192 = pneg %p43
      $region34: #{tpu_custom_call.1} parent=31 // pred_check_branch
        %194 = sbr.rel (%p192) target = $region36
      $region35: #{tpu_custom_call.1} parent=31 // pred_region
        %p195 = scmp.lt.s32.totalorder %s18, 1
        %s196 = scalar_select %p195, %s18, 1
        %s197 = smul.addr %s196, 60
        %s198 = smul.addr %s197, 8
        %s199 = scalar_lea.vmem %s0, %s198
      $region36: #{tpu_custom_call.1} parent=31 // pred_fallthru
        _
    $region32: #{tpu_custom_call.1} parent=5 // pred_fallthru
      _
    %p200 = scmp.le.s32.totalorder 1, %s11
    %p201 = scmp.lt.s32.totalorder %s11, 9
    %p202 = pnand %p200, %p201
    %p203 = pneg %p202
    // Predicated region
    $region37: #{tpu_custom_call.1} parent=5 // pred_check
      _
    $region38: #{tpu_custom_call.1} parent=5 // pred_check_branch
      %205 = sbr.rel (%p202) target = $region40
    $region39: #{tpu_custom_call.1} parent=5 // pred_region
      %s206 = ssub.s32 %s11, 1
      %p207 = scmp.lt.s32.totalorder %s20, 1
      %s208 = scalar_select %p207, %s20, 1
      %s209 = smul.addr %s208, 60
      %s210 = smul.addr %s209, 8
      %s211 = scalar_lea.vmem %s0, %s210
      %p212 = pneg %p49
      %p213 = pneg %p46
      %p214 = pneg %p70
      %p215 = pneg %p67
      %p216 = pneg %p91
      %p217 = pneg %p88
      %p218 = pneg %p112
      %p219 = pneg %p109
      %p220 = pneg %p133
      %p221 = pneg %p130
      %p222 = pneg %p161
      %p223 = pneg %p158
      %s224 = smul.u32 8, %s21
      %p225 = scmp.lt.s32.totalorder %s20, 1
      %s226 = scalar_select %p225, %s20, 1
      %p227 = scmp.lt.s32.totalorder %s224, 31
      %s228 = scalar_select %p227, %s224, 31
      %s229 = smul.addr %s228, 2
      %s230 = smul.addr %s226, 64
      %s231 = sadd.s32 %s229, %s230
      %s232 = smul.addr %s231, 8
      %s233 = scalar_lea.vmem %s5, %s232
      %p234 = scmp.lt.s32.totalorder %s20, 1
      %s235 = scalar_select %p234, %s20, 1
      %s236 = smul.addr %s235, 60
      %s237 = smul.addr %s236, 8
      %s238 = scalar_lea.vmem %s0, %s237
      %s239 = smul.u32 8, %s21
      %p240 = scmp.lt.s32.totalorder %s20, 1
      %s241 = scalar_select %p240, %s20, 1
      %p242 = scmp.lt.s32.totalorder %s239, 31
      %s243 = scalar_select %p242, %s239, 31
      %s244 = smul.addr %s243, 2
      %s245 = smul.addr %s241, 64
      %s246 = sadd.s32 %s244, %s245
      %s247 = smul.addr %s246, 8
      %s248 = scalar_lea.vmem %s5, %s247
      %s249 = smul.u32 8, %s21
      %s250 = smul.u32 %s21, 4
      %s251 = smul.u32 %s250, 24
      %s252 = scalar_lea.vmem %s238, %s251
      %v253 = vld [vmem:[%s252] sm:$0xff]
      %v254 = vld [vmem:[%s252 + $0x8] sm:$0xff]
      %v255 = vld [vmem:[%s252 + $0x10] sm:$0xf]
      %v256 = vld [vmem:[%s252 + $0x18] sm:$0xff]
      %v257 = vld [vmem:[%s252 + $0x20] sm:$0xff]
      %v258 = vld [vmem:[%s252 + $0x28] sm:$0xf]
      %v259 = vld [vmem:[%s252 + $0x30] sm:$0xff]
      %v260 = vld [vmem:[%s252 + $0x38] sm:$0xff]
      %v261 = vld [vmem:[%s252 + $0x40] sm:$0xf]
      %v262 = vld [vmem:[%s252 + $0x48] sm:$0xff]
      %v263 = vld [vmem:[%s252 + $0x50] sm:$0xff]
      %v264 = vld [vmem:[%s252 + $0x58] sm:$0xf]
      %v265 = vld [vmem:[%s252 + $0x60] sm:$0xff]
      %v266 = vld [vmem:[%s252 + $0x68] sm:$0xff]
      %v267 = vld [vmem:[%s252 + $0x70] sm:$0xf]
      %v268 = vld [vmem:[%s252 + $0x78] sm:$0xff]
      %v269 = vld [vmem:[%s252 + $0x80] sm:$0xff]
      %v270 = vld [vmem:[%s252 + $0x88] sm:$0xf]
      %v271 = vld [vmem:[%s252 + $0x90] sm:$0xff]
      %v272 = vld [vmem:[%s252 + $0x98] sm:$0xff]
      %v273 = vld [vmem:[%s252 + $0xa0] sm:$0xf]
      %v274 = vld [vmem:[%s252 + $0xa8] sm:$0xff]
      %v275 = vld [vmem:[%s252 + $0xb0] sm:$0xff]
      %v276 = vld [vmem:[%s252 + $0xb8] sm:$0xf]
      %v277 = vld [vmem:[%s1] sm:$0xf]
      %v278 = vld [vmem:[%s2] sm:$0x1]
      %v280 = vlaneseq
      %v281 = vshrl.u32 %v280, 7
      %v282 = vsub.s32 0, %v281
      %v283 = vrot.slane %v278, %v282
      %v285 = vadd.f32 %v283, 0.0
      %287 = vset.pattern.permute.xlu0 0
      %288 = vperm.xlu0 %287, %v253
      %v289 = vpop.permute.xlu0 %288
      %292 = vset.pattern.permute.xlu0 0
      %293 = vperm.xlu0 %292, %v254
      %v294 = vpop.permute.xlu0 %293
      %297 = vset.pattern.permute.xlu0 0
      %298 = vperm.xlu0 %297, %v255
      %v299 = vpop.permute.xlu0 %298
      %302 = vset.pattern.permute.xlu0 0
      %303 = vperm.xlu0 %302, %v256
      %v304 = vpop.permute.xlu0 %303
      %307 = vset.pattern.permute.xlu0 0
      %308 = vperm.xlu0 %307, %v257
      %v309 = vpop.permute.xlu0 %308
      %312 = vset.pattern.permute.xlu0 0
      %313 = vperm.xlu0 %312, %v258
      %v314 = vpop.permute.xlu0 %313
      %317 = vset.pattern.permute.xlu0 0
      %318 = vperm.xlu0 %317, %v259
      %v319 = vpop.permute.xlu0 %318
      %322 = vset.pattern.permute.xlu0 0
      %323 = vperm.xlu0 %322, %v260
      %v324 = vpop.permute.xlu0 %323
      %327 = vset.pattern.permute.xlu0 0
      %328 = vperm.xlu0 %327, %v261
      %v329 = vpop.permute.xlu0 %328
      %332 = vset.pattern.permute.xlu0 0
      %333 = vperm.xlu0 %332, %v262
      %v334 = vpop.permute.xlu0 %333
      %337 = vset.pattern.permute.xlu0 0
      %338 = vperm.xlu0 %337, %v263
      %v339 = vpop.permute.xlu0 %338
      %342 = vset.pattern.permute.xlu0 0
      %343 = vperm.xlu0 %342, %v264
      %v344 = vpop.permute.xlu0 %343
      %347 = vset.pattern.permute.xlu0 0
      %348 = vperm.xlu0 %347, %v265
      %v349 = vpop.permute.xlu0 %348
      %352 = vset.pattern.permute.xlu0 0
      %353 = vperm.xlu0 %352, %v266
      %v354 = vpop.permute.xlu0 %353
      %357 = vset.pattern.permute.xlu0 0
      %358 = vperm.xlu0 %357, %v267
      %v359 = vpop.permute.xlu0 %358
      %362 = vset.pattern.permute.xlu0 0
      %363 = vperm.xlu0 %362, %v268
      %v364 = vpop.permute.xlu0 %363
      %367 = vset.pattern.permute.xlu0 0
      %368 = vperm.xlu0 %367, %v269
      %v369 = vpop.permute.xlu0 %368
      %372 = vset.pattern.permute.xlu0 0
      %373 = vperm.xlu0 %372, %v270
      %v374 = vpop.permute.xlu0 %373
      %377 = vset.pattern.permute.xlu0 0
      %378 = vperm.xlu0 %377, %v271
      %v379 = vpop.permute.xlu0 %378
      %382 = vset.pattern.permute.xlu0 0
      %383 = vperm.xlu0 %382, %v272
      %v384 = vpop.permute.xlu0 %383
      %387 = vset.pattern.permute.xlu0 0
      %388 = vperm.xlu0 %387, %v273
      %v389 = vpop.permute.xlu0 %388
      %392 = vset.pattern.permute.xlu0 0
      %393 = vperm.xlu0 %392, %v274
      %v394 = vpop.permute.xlu0 %393
      %397 = vset.pattern.permute.xlu0 0
      %398 = vperm.xlu0 %397, %v275
      %v399 = vpop.permute.xlu0 %398
      %402 = vset.pattern.permute.xlu0 0
      %403 = vperm.xlu0 %402, %v276
      %v404 = vpop.permute.xlu0 %403
      %v406 = vlaneseq
      %v407 = vshrl.u32 %v406, 7
      %v408 = vsub.s32 0, %v407
      %v409 = vrot.slane %v277, %v408
      %v410 = vmul.f32 %v289, %v409
      %v411 = vmul.f32 %v294, %v409
      %v412 = vmul.f32 %v299, %v409
      %v413 = vmul.f32 %v304, %v409
      %v414 = vmul.f32 %v309, %v409
      %v415 = vmul.f32 %v314, %v409
      %v416 = vmul.f32 %v319, %v409
      %v417 = vmul.f32 %v324, %v409
      %v418 = vmul.f32 %v329, %v409
      %v419 = vmul.f32 %v334, %v409
      %v420 = vmul.f32 %v339, %v409
      %v421 = vmul.f32 %v344, %v409
      %v422 = vmul.f32 %v349, %v409
      %v423 = vmul.f32 %v354, %v409
      %v424 = vmul.f32 %v359, %v409
      %v425 = vmul.f32 %v364, %v409
      %v426 = vmul.f32 %v369, %v409
      %v427 = vmul.f32 %v374, %v409
      %v428 = vmul.f32 %v379, %v409
      %v429 = vmul.f32 %v384, %v409
      %v430 = vmul.f32 %v389, %v409
      %v431 = vmul.f32 %v394, %v409
      %v432 = vmul.f32 %v399, %v409
      %v433 = vmul.f32 %v404, %v409
      %v434 = vadd.f32 %v285, %v410
      %v435 = vadd.f32 %v285, %v411
      %v436 = vadd.f32 %v285, %v412
      %v437 = vadd.f32 %v285, %v413
      %v438 = vadd.f32 %v285, %v414
      %v439 = vadd.f32 %v285, %v415
      %v440 = vadd.f32 %v285, %v416
      %v441 = vadd.f32 %v285, %v417
      %v442 = vadd.f32 %v285, %v418
      %v443 = vadd.f32 %v285, %v419
      %v444 = vadd.f32 %v285, %v420
      %v445 = vadd.f32 %v285, %v421
      %v446 = vadd.f32 %v285, %v422
      %v447 = vadd.f32 %v285, %v423
      %v448 = vadd.f32 %v285, %v424
      %v449 = vadd.f32 %v285, %v425
      %v450 = vadd.f32 %v285, %v426
      %v451 = vadd.f32 %v285, %v427
      %v452 = vadd.f32 %v285, %v428
      %v453 = vadd.f32 %v285, %v429
      %v454 = vadd.f32 %v285, %v430
      %v455 = vadd.f32 %v285, %v431
      %v456 = vadd.f32 %v285, %v432
      %v457 = vadd.f32 %v285, %v433
      %458 = vset.pattern.permute.xlu0 1
      %459 = vperm.xlu0 %458, %v253
      %v460 = vpop.permute.xlu0 %459
      %462 = vset.pattern.permute.xlu0 1
      %463 = vperm.xlu0 %462, %v254
      %v464 = vpop.permute.xlu0 %463
      %466 = vset.pattern.permute.xlu0 1
      %467 = vperm.xlu0 %466, %v255
      %v468 = vpop.permute.xlu0 %467
      %470 = vset.pattern.permute.xlu0 1
      %471 = vperm.xlu0 %470, %v256
      %v472 = vpop.permute.xlu0 %471
      %474 = vset.pattern.permute.xlu0 1
      %475 = vperm.xlu0 %474, %v257
      %v476 = vpop.permute.xlu0 %475
      %478 = vset.pattern.permute.xlu0 1
      %479 = vperm.xlu0 %478, %v258
      %v480 = vpop.permute.xlu0 %479
      %482 = vset.pattern.permute.xlu0 1
      %483 = vperm.xlu0 %482, %v259
      %v484 = vpop.permute.xlu0 %483
      %486 = vset.pattern.permute.xlu0 1
      %487 = vperm.xlu0 %486, %v260
      %v488 = vpop.permute.xlu0 %487
      %490 = vset.pattern.permute.xlu0 1
      %491 = vperm.xlu0 %490, %v261
      %v492 = vpop.permute.xlu0 %491
      %494 = vset.pattern.permute.xlu0 1
      %495 = vperm.xlu0 %494, %v262
      %v496 = vpop.permute.xlu0 %495
      %498 = vset.pattern.permute.xlu0 1
      %499 = vperm.xlu0 %498, %v263
      %v500 = vpop.permute.xlu0 %499
      %502 = vset.pattern.permute.xlu0 1
      %503 = vperm.xlu0 %502, %v264
      %v504 = vpop.permute.xlu0 %503
      %506 = vset.pattern.permute.xlu0 1
      %507 = vperm.xlu0 %506, %v265
      %v508 = vpop.permute.xlu0 %507
      %510 = vset.pattern.permute.xlu0 1
      %511 = vperm.xlu0 %510, %v266
      %v512 = vpop.permute.xlu0 %511
      %514 = vset.pattern.permute.xlu0 1
      %515 = vperm.xlu0 %514, %v267
      %v516 = vpop.permute.xlu0 %515
      %518 = vset.pattern.permute.xlu0 1
      %519 = vperm.xlu0 %518, %v268
      %v520 = vpop.permute.xlu0 %519
      %522 = vset.pattern.permute.xlu0 1
      %523 = vperm.xlu0 %522, %v269
      %v524 = vpop.permute.xlu0 %523
      %526 = vset.pattern.permute.xlu0 1
      %527 = vperm.xlu0 %526, %v270
      %v528 = vpop.permute.xlu0 %527
      %530 = vset.pattern.permute.xlu0 1
      %531 = vperm.xlu0 %530, %v271
      %v532 = vpop.permute.xlu0 %531
      %534 = vset.pattern.permute.xlu0 1
      %535 = vperm.xlu0 %534, %v272
      %v536 = vpop.permute.xlu0 %535
      %538 = vset.pattern.permute.xlu0 1
      %539 = vperm.xlu0 %538, %v273
      %v540 = vpop.permute.xlu0 %539
      %542 = vset.pattern.permute.xlu0 1
      %543 = vperm.xlu0 %542, %v274
      %v544 = vpop.permute.xlu0 %543
      %546 = vset.pattern.permute.xlu0 1
      %547 = vperm.xlu0 %546, %v275
      %v548 = vpop.permute.xlu0 %547
      %550 = vset.pattern.permute.xlu0 1
      %551 = vperm.xlu0 %550, %v276
      %v552 = vpop.permute.xlu0 %551
      %v554 = vlaneseq
      %v555 = vshrl.u32 %v554, 7
      %v556 = vsub.s32 1, %v555
      %v557 = vrot.slane %v277, %v556
      %v558 = vmul.f32 %v460, %v557
      %v559 = vmul.f32 %v464, %v557
      %v560 = vmul.f32 %v468, %v557
      %v561 = vmul.f32 %v472, %v557
      %v562 = vmul.f32 %v476, %v557
      %v563 = vmul.f32 %v480, %v557
      %v564 = vmul.f32 %v484, %v557
      %v565 = vmul.f32 %v488, %v557
      %v566 = vmul.f32 %v492, %v557
      %v567 = vmul.f32 %v496, %v557
      %v568 = vmul.f32 %v500, %v557
      %v569 = vmul.f32 %v504, %v557
      %v570 = vmul.f32 %v508, %v557
      %v571 = vmul.f32 %v512, %v557
      %v572 = vmul.f32 %v516, %v557
      %v573 = vmul.f32 %v520, %v557
      %v574 = vmul.f32 %v524, %v557
      %v575 = vmul.f32 %v528, %v557
      %v576 = vmul.f32 %v532, %v557
      %v577 = vmul.f32 %v536, %v557
      %v578 = vmul.f32 %v540, %v557
      %v579 = vmul.f32 %v544, %v557
      %v580 = vmul.f32 %v548, %v557
      %v581 = vmul.f32 %v552, %v557
      %v582 = vadd.f32 %v434, %v558
      %v583 = vadd.f32 %v435, %v559
      %v584 = vadd.f32 %v436, %v560
      %v585 = vadd.f32 %v437, %v561
      %v586 = vadd.f32 %v438, %v562
      %v587 = vadd.f32 %v439, %v563
      %v588 = vadd.f32 %v440, %v564
      %v589 = vadd.f32 %v441, %v565
      %v590 = vadd.f32 %v442, %v566
      %v591 = vadd.f32 %v443, %v567
      %v592 = vadd.f32 %v444, %v568
      %v593 = vadd.f32 %v445, %v569
      %v594 = vadd.f32 %v446, %v570
      %v595 = vadd.f32 %v447, %v571
      %v596 = vadd.f32 %v448, %v572
      %v597 = vadd.f32 %v449, %v573
      %v598 = vadd.f32 %v450, %v574
      %v599 = vadd.f32 %v451, %v575
      %v600 = vadd.f32 %v452, %v576
      %v601 = vadd.f32 %v453, %v577
      %v602 = vadd.f32 %v454, %v578
      %v603 = vadd.f32 %v455, %v579
      %v604 = vadd.f32 %v456, %v580
      %v605 = vadd.f32 %v457, %v581
      %606 = vset.pattern.permute.xlu0 2
      %607 = vperm.xlu0 %606, %v253
      %v608 = vpop.permute.xlu0 %607
      %610 = vset.pattern.permute.xlu0 2
      %611 = vperm.xlu0 %610, %v254
      %v612 = vpop.permute.xlu0 %611
      %614 = vset.pattern.permute.xlu0 2
      %615 = vperm.xlu0 %614, %v255
      %v616 = vpop.permute.xlu0 %615
      %618 = vset.pattern.permute.xlu0 2
      %619 = vperm.xlu0 %618, %v256
      %v620 = vpop.permute.xlu0 %619
      %622 = vset.pattern.permute.xlu0 2
      %623 = vperm.xlu0 %622, %v257
      %v624 = vpop.permute.xlu0 %623
      %626 = vset.pattern.permute.xlu0 2
      %627 = vperm.xlu0 %626, %v258
      %v628 = vpop.permute.xlu0 %627
      %630 = vset.pattern.permute.xlu0 2
      %631 = vperm.xlu0 %630, %v259
      %v632 = vpop.permute.xlu0 %631
      %634 = vset.pattern.permute.xlu0 2
      %635 = vperm.xlu0 %634, %v260
      %v636 = vpop.permute.xlu0 %635
      %638 = vset.pattern.permute.xlu0 2
      %639 = vperm.xlu0 %638, %v261
      %v640 = vpop.permute.xlu0 %639
      %642 = vset.pattern.permute.xlu0 2
      %643 = vperm.xlu0 %642, %v262
      %v644 = vpop.permute.xlu0 %643
      %646 = vset.pattern.permute.xlu0 2
      %647 = vperm.xlu0 %646, %v263
      %v648 = vpop.permute.xlu0 %647
      %650 = vset.pattern.permute.xlu0 2
      %651 = vperm.xlu0 %650, %v264
      %v652 = vpop.permute.xlu0 %651
      %654 = vset.pattern.permute.xlu0 2
      %655 = vperm.xlu0 %654, %v265
      %v656 = vpop.permute.xlu0 %655
      %658 = vset.pattern.permute.xlu0 2
      %659 = vperm.xlu0 %658, %v266
      %v660 = vpop.permute.xlu0 %659
      %662 = vset.pattern.permute.xlu0 2
      %663 = vperm.xlu0 %662, %v267
      %v664 = vpop.permute.xlu0 %663
      %666 = vset.pattern.permute.xlu0 2
      %667 = vperm.xlu0 %666, %v268
      %v668 = vpop.permute.xlu0 %667
      %670 = vset.pattern.permute.xlu0 2
      %671 = vperm.xlu0 %670, %v269
      %v672 = vpop.permute.xlu0 %671
      %674 = vset.pattern.permute.xlu0 2
      %675 = vperm.xlu0 %674, %v270
      %v676 = vpop.permute.xlu0 %675
      %678 = vset.pattern.permute.xlu0 2
      %679 = vperm.xlu0 %678, %v271
      %v680 = vpop.permute.xlu0 %679
      %682 = vset.pattern.permute.xlu0 2
      %683 = vperm.xlu0 %682, %v272
      %v684 = vpop.permute.xlu0 %683
      %686 = vset.pattern.permute.xlu0 2
      %687 = vperm.xlu0 %686, %v273
      %v688 = vpop.permute.xlu0 %687
      %690 = vset.pattern.permute.xlu0 2
      %691 = vperm.xlu0 %690, %v274
      %v692 = vpop.permute.xlu0 %691
      %694 = vset.pattern.permute.xlu0 2
      %695 = vperm.xlu0 %694, %v275
      %v696 = vpop.permute.xlu0 %695
      %698 = vset.pattern.permute.xlu0 2
      %699 = vperm.xlu0 %698, %v276
      %v700 = vpop.permute.xlu0 %699
      %v702 = vlaneseq
      %v703 = vshrl.u32 %v702, 7
      %v704 = vsub.s32 2, %v703
      %v705 = vrot.slane %v277, %v704
      %v706 = vmul.f32 %v608, %v705
      %v707 = vmul.f32 %v612, %v705
      %v708 = vmul.f32 %v616, %v705
      %v709 = vmul.f32 %v620, %v705
      %v710 = vmul.f32 %v624, %v705
      %v711 = vmul.f32 %v628, %v705
      %v712 = vmul.f32 %v632, %v705
      %v713 = vmul.f32 %v636, %v705
      %v714 = vmul.f32 %v640, %v705
      %v715 = vmul.f32 %v644, %v705
      %v716 = vmul.f32 %v648, %v705
      %v717 = vmul.f32 %v652, %v705
      %v718 = vmul.f32 %v656, %v705
      %v719 = vmul.f32 %v660, %v705
      %v720 = vmul.f32 %v664, %v705
      %v721 = vmul.f32 %v668, %v705
      %v722 = vmul.f32 %v672, %v705
      %v723 = vmul.f32 %v676, %v705
      %v724 = vmul.f32 %v680, %v705
      %v725 = vmul.f32 %v684, %v705
      %v726 = vmul.f32 %v688, %v705
      %v727 = vmul.f32 %v692, %v705
      %v728 = vmul.f32 %v696, %v705
      %v729 = vmul.f32 %v700, %v705
      %v730 = vadd.f32 %v582, %v706
      %v731 = vadd.f32 %v583, %v707
      %v732 = vadd.f32 %v584, %v708
      %v733 = vadd.f32 %v585, %v709
      %v734 = vadd.f32 %v586, %v710
      %v735 = vadd.f32 %v587, %v711
      %v736 = vadd.f32 %v588, %v712
      %v737 = vadd.f32 %v589, %v713
      %v738 = vadd.f32 %v590, %v714
      %v739 = vadd.f32 %v591, %v715
      %v740 = vadd.f32 %v592, %v716
      %v741 = vadd.f32 %v593, %v717
      %v742 = vadd.f32 %v594, %v718
      %v743 = vadd.f32 %v595, %v719
      %v744 = vadd.f32 %v596, %v720
      %v745 = vadd.f32 %v597, %v721
      %v746 = vadd.f32 %v598, %v722
      %v747 = vadd.f32 %v599, %v723
      %v748 = vadd.f32 %v600, %v724
      %v749 = vadd.f32 %v601, %v725
      %v750 = vadd.f32 %v602, %v726
      %v751 = vadd.f32 %v603, %v727
      %v752 = vadd.f32 %v604, %v728
      %v753 = vadd.f32 %v605, %v729
      %754 = vset.pattern.permute.xlu0 3
      %755 = vperm.xlu0 %754, %v253
      %v756 = vpop.permute.xlu0 %755
      %758 = vset.pattern.permute.xlu0 3
      %759 = vperm.xlu0 %758, %v254
      %v760 = vpop.permute.xlu0 %759
      %762 = vset.pattern.permute.xlu0 3
      %763 = vperm.xlu0 %762, %v255
      %v764 = vpop.permute.xlu0 %763
      %766 = vset.pattern.permute.xlu0 3
      %767 = vperm.xlu0 %766, %v256
      %v768 = vpop.permute.xlu0 %767
      %770 = vset.pattern.permute.xlu0 3
      %771 = vperm.xlu0 %770, %v257
      %v772 = vpop.permute.xlu0 %771
      %774 = vset.pattern.permute.xlu0 3
      %775 = vperm.xlu0 %774, %v258
      %v776 = vpop.permute.xlu0 %775
      %778 = vset.pattern.permute.xlu0 3
      %779 = vperm.xlu0 %778, %v259
      %v780 = vpop.permute.xlu0 %779
      %782 = vset.pattern.permute.xlu0 3
      %783 = vperm.xlu0 %782, %v260
      %v784 = vpop.permute.xlu0 %783
      %786 = vset.pattern.permute.xlu0 3
      %787 = vperm.xlu0 %786, %v261
      %v788 = vpop.permute.xlu0 %787
      %790 = vset.pattern.permute.xlu0 3
      %791 = vperm.xlu0 %790, %v262
      %v792 = vpop.permute.xlu0 %791
      %794 = vset.pattern.permute.xlu0 3
      %795 = vperm.xlu0 %794, %v263
      %v796 = vpop.permute.xlu0 %795
      %798 = vset.pattern.permute.xlu0 3
      %799 = vperm.xlu0 %798, %v264
      %v800 = vpop.permute.xlu0 %799
      %802 = vset.pattern.permute.xlu0 3
      %803 = vperm.xlu0 %802, %v265
      %v804 = vpop.permute.xlu0 %803
      %806 = vset.pattern.permute.xlu0 3
      %807 = vperm.xlu0 %806, %v266
      %v808 = vpop.permute.xlu0 %807
      %810 = vset.pattern.permute.xlu0 3
      %811 = vperm.xlu0 %810, %v267
      %v812 = vpop.permute.xlu0 %811
      %814 = vset.pattern.permute.xlu0 3
      %815 = vperm.xlu0 %814, %v268
      %v816 = vpop.permute.xlu0 %815
      %818 = vset.pattern.permute.xlu0 3
      %819 = vperm.xlu0 %818, %v269
      %v820 = vpop.permute.xlu0 %819
      %822 = vset.pattern.permute.xlu0 3
      %823 = vperm.xlu0 %822, %v270
      %v824 = vpop.permute.xlu0 %823
      %826 = vset.pattern.permute.xlu0 3
      %827 = vperm.xlu0 %826, %v271
      %v828 = vpop.permute.xlu0 %827
      %830 = vset.pattern.permute.xlu0 3
      %831 = vperm.xlu0 %830, %v272
      %v832 = vpop.permute.xlu0 %831
      %834 = vset.pattern.permute.xlu0 3
      %835 = vperm.xlu0 %834, %v273
      %v836 = vpop.permute.xlu0 %835
      %838 = vset.pattern.permute.xlu0 3
      %839 = vperm.xlu0 %838, %v274
      %v840 = vpop.permute.xlu0 %839
      %842 = vset.pattern.permute.xlu0 3
      %843 = vperm.xlu0 %842, %v275
      %v844 = vpop.permute.xlu0 %843
      %846 = vset.pattern.permute.xlu0 3
      %847 = vperm.xlu0 %846, %v276
      %v848 = vpop.permute.xlu0 %847
      %v850 = vlaneseq
      %v851 = vshrl.u32 %v850, 7
      %v852 = vsub.s32 3, %v851
      %v853 = vrot.slane %v277, %v852
      %v854 = vmul.f32 %v756, %v853
      %v855 = vmul.f32 %v760, %v853
      %v856 = vmul.f32 %v764, %v853
      %v857 = vmul.f32 %v768, %v853
      %v858 = vmul.f32 %v772, %v853
      %v859 = vmul.f32 %v776, %v853
      %v860 = vmul.f32 %v780, %v853
      %v861 = vmul.f32 %v784, %v853
      %v862 = vmul.f32 %v788, %v853
      %v863 = vmul.f32 %v792, %v853
      %v864 = vmul.f32 %v796, %v853
      %v865 = vmul.f32 %v800, %v853
      %v866 = vmul.f32 %v804, %v853
      %v867 = vmul.f32 %v808, %v853
      %v868 = vmul.f32 %v812, %v853
      %v869 = vmul.f32 %v816, %v853
      %v870 = vmul.f32 %v820, %v853
      %v871 = vmul.f32 %v824, %v853
      %v872 = vmul.f32 %v828, %v853
      %v873 = vmul.f32 %v832, %v853
      %v874 = vmul.f32 %v836, %v853
      %v875 = vmul.f32 %v840, %v853
      %v876 = vmul.f32 %v844, %v853
      %v877 = vmul.f32 %v848, %v853
      %v878 = vadd.f32 %v730, %v854
      %v879 = vadd.f32 %v731, %v855
      %v880 = vadd.f32 %v732, %v856
      %v881 = vadd.f32 %v733, %v857
      %v882 = vadd.f32 %v734, %v858
      %v883 = vadd.f32 %v735, %v859
      %v884 = vadd.f32 %v736, %v860
      %v885 = vadd.f32 %v737, %v861
      %v886 = vadd.f32 %v738, %v862
      %v887 = vadd.f32 %v739, %v863
      %v888 = vadd.f32 %v740, %v864
      %v889 = vadd.f32 %v741, %v865
      %v890 = vadd.f32 %v742, %v866
      %v891 = vadd.f32 %v743, %v867
      %v892 = vadd.f32 %v744, %v868
      %v893 = vadd.f32 %v745, %v869
      %v894 = vadd.f32 %v746, %v870
      %v895 = vadd.f32 %v747, %v871
      %v896 = vadd.f32 %v748, %v872
      %v897 = vadd.f32 %v749, %v873
      %v898 = vadd.f32 %v750, %v874
      %v899 = vadd.f32 %v751, %v875
      %v900 = vadd.f32 %v752, %v876
      %v901 = vadd.f32 %v753, %v877
      %vm902 = vcmp.gt.f32.partialorder %v878, 0.0
      %vm903 = vcmp.gt.f32.partialorder %v879, 0.0
      %vm904 = vcmp.gt.f32.partialorder %v880, 0.0
      %vm905 = vcmp.gt.f32.partialorder %v881, 0.0
      %vm906 = vcmp.gt.f32.partialorder %v882, 0.0
      %vm907 = vcmp.gt.f32.partialorder %v883, 0.0
      %vm908 = vcmp.gt.f32.partialorder %v884, 0.0
      %vm909 = vcmp.gt.f32.partialorder %v885, 0.0
      %vm910 = vcmp.gt.f32.partialorder %v886, 0.0
      %vm911 = vcmp.gt.f32.partialorder %v887, 0.0
      %vm912 = vcmp.gt.f32.partialorder %v888, 0.0
      %vm913 = vcmp.gt.f32.partialorder %v889, 0.0
      %vm914 = vcmp.gt.f32.partialorder %v890, 0.0
      %vm915 = vcmp.gt.f32.partialorder %v891, 0.0
      %vm916 = vcmp.gt.f32.partialorder %v892, 0.0
      %vm917 = vcmp.gt.f32.partialorder %v893, 0.0
      %vm918 = vcmp.gt.f32.partialorder %v894, 0.0
      %vm919 = vcmp.gt.f32.partialorder %v895, 0.0
      %vm920 = vcmp.gt.f32.partialorder %v896, 0.0
      %vm921 = vcmp.gt.f32.partialorder %v897, 0.0
      %vm922 = vcmp.gt.f32.partialorder %v898, 0.0
      %vm923 = vcmp.gt.f32.partialorder %v899, 0.0
      %vm924 = vcmp.gt.f32.partialorder %v900, 0.0
      %vm925 = vcmp.gt.f32.partialorder %v901, 0.0
      %v926 = vmin.f32 %v878, 0.0
      %v927 = vmin.f32 %v879, 0.0
      %v928 = vmin.f32 %v880, 0.0
      %v929 = vmin.f32 %v881, 0.0
      %v930 = vmin.f32 %v882, 0.0
      %v931 = vmin.f32 %v883, 0.0
      %v932 = vmin.f32 %v884, 0.0
      %v933 = vmin.f32 %v885, 0.0
      %v934 = vmin.f32 %v886, 0.0
      %v935 = vmin.f32 %v887, 0.0
      %v936 = vmin.f32 %v888, 0.0
      %v937 = vmin.f32 %v889, 0.0
      %v938 = vmin.f32 %v890, 0.0
      %v939 = vmin.f32 %v891, 0.0
      %v940 = vmin.f32 %v892, 0.0
      %v941 = vmin.f32 %v893, 0.0
      %v942 = vmin.f32 %v894, 0.0
      %v943 = vmin.f32 %v895, 0.0
      %v944 = vmin.f32 %v896, 0.0
      %v945 = vmin.f32 %v897, 0.0
      %v946 = vmin.f32 %v898, 0.0
      %v947 = vmin.f32 %v899, 0.0
      %v948 = vmin.f32 %v900, 0.0
      %v949 = vmin.f32 %v901, 0.0
      %v950 = vmul.f32 %v926, 1.442695
      %v951 = vpow.pop %v950
      %v952 = vmul.f32 %v927, 1.442695
      %v953 = vpow.pop %v952
      %v954 = vmul.f32 %v928, 1.442695
      %v955 = vpow.pop %v954
      %v956 = vmul.f32 %v929, 1.442695
      %v957 = vpow.pop %v956
      %v958 = vmul.f32 %v930, 1.442695
      %v959 = vpow.pop %v958
      %v960 = vmul.f32 %v931, 1.442695
      %v961 = vpow.pop %v960
      %v962 = vmul.f32 %v932, 1.442695
      %v963 = vpow.pop %v962
      %v964 = vmul.f32 %v933, 1.442695
      %v965 = vpow.pop %v964
      %v966 = vmul.f32 %v934, 1.442695
      %v967 = vpow.pop %v966
      %v968 = vmul.f32 %v935, 1.442695
      %v969 = vpow.pop %v968
      %v970 = vmul.f32 %v936, 1.442695
      %v971 = vpow.pop %v970
      %v972 = vmul.f32 %v937, 1.442695
      %v973 = vpow.pop %v972
      %v974 = vmul.f32 %v938, 1.442695
      %v975 = vpow.pop %v974
      %v976 = vmul.f32 %v939, 1.442695
      %v977 = vpow.pop %v976
      %v978 = vmul.f32 %v940, 1.442695
      %v979 = vpow.pop %v978
      %v980 = vmul.f32 %v941, 1.442695
      %v981 = vpow.pop %v980
      %v982 = vmul.f32 %v942, 1.442695
      %v983 = vpow.pop %v982
      %v984 = vmul.f32 %v943, 1.442695
      %v985 = vpow.pop %v984
      %v986 = vmul.f32 %v944, 1.442695
      %v987 = vpow.pop %v986
      %v988 = vmul.f32 %v945, 1.442695
      %v989 = vpow.pop %v988
      %v990 = vmul.f32 %v946, 1.442695
      %v991 = vpow.pop %v990
      %v992 = vmul.f32 %v947, 1.442695
      %v993 = vpow.pop %v992
      %v994 = vmul.f32 %v948, 1.442695
      %v995 = vpow.pop %v994
      %v996 = vmul.f32 %v949, 1.442695
      %v997 = vpow.pop %v996
      %v998 = vsub.f32 %v951, 1.0
      %v999 = vsub.f32 %v953, 1.0
      %v1000 = vsub.f32 %v955, 1.0
      %v1001 = vsub.f32 %v957, 1.0
      %v1002 = vsub.f32 %v959, 1.0
      %v1003 = vsub.f32 %v961, 1.0
      %v1004 = vsub.f32 %v963, 1.0
      %v1005 = vsub.f32 %v965, 1.0
      %v1006 = vsub.f32 %v967, 1.0
      %v1007 = vsub.f32 %v969, 1.0
      %v1008 = vsub.f32 %v971, 1.0
      %v1009 = vsub.f32 %v973, 1.0
      %v1010 = vsub.f32 %v975, 1.0
      %v1011 = vsub.f32 %v977, 1.0
      %v1012 = vsub.f32 %v979, 1.0
      %v1013 = vsub.f32 %v981, 1.0
      %v1014 = vsub.f32 %v983, 1.0
      %v1015 = vsub.f32 %v985, 1.0
      %v1016 = vsub.f32 %v987, 1.0
      %v1017 = vsub.f32 %v989, 1.0
      %v1018 = vsub.f32 %v991, 1.0
      %v1019 = vsub.f32 %v993, 1.0
      %v1020 = vsub.f32 %v995, 1.0
      %v1021 = vsub.f32 %v997, 1.0
      %v1022 = vsel %vm902, %v878, %v998
      %v1023 = vsel %vm903, %v879, %v999
      %v1024 = vsel %vm904, %v880, %v1000
      %v1025 = vsel %vm905, %v881, %v1001
      %v1026 = vsel %vm906, %v882, %v1002
      %v1027 = vsel %vm907, %v883, %v1003
      %v1028 = vsel %vm908, %v884, %v1004
      %v1029 = vsel %vm909, %v885, %v1005
      %v1030 = vsel %vm910, %v886, %v1006
      %v1031 = vsel %vm911, %v887, %v1007
      %v1032 = vsel %vm912, %v888, %v1008
      %v1033 = vsel %vm913, %v889, %v1009
      %v1034 = vsel %vm914, %v890, %v1010
      %v1035 = vsel %vm915, %v891, %v1011
      %v1036 = vsel %vm916, %v892, %v1012
      %v1037 = vsel %vm917, %v893, %v1013
      %v1038 = vsel %vm918, %v894, %v1014
      %v1039 = vsel %vm919, %v895, %v1015
      %v1040 = vsel %vm920, %v896, %v1016
      %v1041 = vsel %vm921, %v897, %v1017
      %v1042 = vsel %vm922, %v898, %v1018
      %v1043 = vsel %vm923, %v899, %v1019
      %v1044 = vsel %vm924, %v900, %v1020
      %v1045 = vsel %vm925, %v901, %v1021
      %v1046 = vstv %s250
      %v1047 = vadd.s32 %v1046, 1
      %v1048 = vadd.s32 %v1046, 2
      %v1049 = vadd.s32 %v1046, 3
      %v1050 = vadd.s32 %v1046, 4
      %v1051 = vadd.s32 %v1046, 5
      %v1052 = vadd.s32 %v1046, 6
      %v1053 = vadd.s32 %v1046, 7
      %v1054 = vlaneseq
      %v1055 = vshrl.u32 %v1054, 7
      %v1056 = vadd.s32 %v1055, 8
      %v1057 = vadd.s32 %v1055, 16
      %vm1058 = vcmp.ge.s32.totalorder %v1046, 2
      %vm1059 = vcmp.ge.s32.totalorder %v1047, 2
      %vm1060 = vcmp.ge.s32.totalorder %v1048, 2
      %vm1061 = vcmp.ge.s32.totalorder %v1049, 2
      %vm1062 = vcmp.ge.s32.totalorder %v1050, 2
      %vm1063 = vcmp.ge.s32.totalorder %v1051, 2
      %vm1064 = vcmp.ge.s32.totalorder %v1052, 2
      %vm1065 = vcmp.ge.s32.totalorder %v1053, 2
      %vm1066 = vcmp.lt.s32.totalorder %v1046, 18
      %vm1067 = vcmp.lt.s32.totalorder %v1047, 18
      %vm1068 = vcmp.lt.s32.totalorder %v1048, 18
      %vm1069 = vcmp.lt.s32.totalorder %v1049, 18
      %vm1070 = vcmp.lt.s32.totalorder %v1050, 18
      %vm1071 = vcmp.lt.s32.totalorder %v1051, 18
      %vm1072 = vcmp.lt.s32.totalorder %v1052, 18
      %vm1073 = vcmp.lt.s32.totalorder %v1053, 18
      %vm1074 = vmand %vm1058, %vm1066
      %vm1075 = vmand %vm1059, %vm1067
      %vm1076 = vmand %vm1060, %vm1068
      %vm1077 = vmand %vm1061, %vm1069
      %vm1078 = vmand %vm1062, %vm1070
      %vm1079 = vmand %vm1063, %vm1071
      %vm1080 = vmand %vm1064, %vm1072
      %vm1081 = vmand %vm1065, %vm1073
      %vm1082 = vcmp.ge.s32.totalorder %v1055, 2
      %vm1083 = vcmp.ge.s32.totalorder %v1056, 2
      %vm1084 = vcmp.ge.s32.totalorder %v1057, 2
      %vm1085 = vmand %vm1074, %vm1082
      %vm1086 = vmand %vm1074, %vm1083
      %vm1087 = vmand %vm1074, %vm1084
      %vm1088 = vmand %vm1075, %vm1082
      %vm1089 = vmand %vm1075, %vm1083
      %vm1090 = vmand %vm1075, %vm1084
      %vm1091 = vmand %vm1076, %vm1082
      %vm1092 = vmand %vm1076, %vm1083
      %vm1093 = vmand %vm1076, %vm1084
      %vm1094 = vmand %vm1077, %vm1082
      %vm1095 = vmand %vm1077, %vm1083
      %vm1096 = vmand %vm1077, %vm1084
      %vm1097 = vmand %vm1078, %vm1082
      %vm1098 = vmand %vm1078, %vm1083
      %vm1099 = vmand %vm1078, %vm1084
      %vm1100 = vmand %vm1079, %vm1082
      %vm1101 = vmand %vm1079, %vm1083
      %vm1102 = vmand %vm1079, %vm1084
      %vm1103 = vmand %vm1080, %vm1082
      %vm1104 = vmand %vm1080, %vm1083
      %vm1105 = vmand %vm1080, %vm1084
      %vm1106 = vmand %vm1081, %vm1082
      %vm1107 = vmand %vm1081, %vm1083
      %vm1108 = vmand %vm1081, %vm1084
      %vm1109 = vcmp.lt.s32.totalorder %v1055, 18
      %vm1110 = vcmp.lt.s32.totalorder %v1056, 18
      %vm1111 = vcmp.lt.s32.totalorder %v1057, 18
      %vm1112 = vmand %vm1085, %vm1109
      %vm1113 = vmand %vm1086, %vm1110
      %vm1114 = vmand %vm1087, %vm1111
      %vm1115 = vmand %vm1088, %vm1109
      %vm1116 = vmand %vm1089, %vm1110
      %vm1117 = vmand %vm1090, %vm1111
      %vm1118 = vmand %vm1091, %vm1109
      %vm1119 = vmand %vm1092, %vm1110
      %vm1120 = vmand %vm1093, %vm1111
      %vm1121 = vmand %vm1094, %vm1109
      %vm1122 = vmand %vm1095, %vm1110
      %vm1123 = vmand %vm1096, %vm1111
      %vm1124 = vmand %vm1097, %vm1109
      %vm1125 = vmand %vm1098, %vm1110
      %vm1126 = vmand %vm1099, %vm1111
      %vm1127 = vmand %vm1100, %vm1109
      %vm1128 = vmand %vm1101, %vm1110
      %vm1129 = vmand %vm1102, %vm1111
      %vm1130 = vmand %vm1103, %vm1109
      %vm1131 = vmand %vm1104, %vm1110
      %vm1132 = vmand %vm1105, %vm1111
      %vm1133 = vmand %vm1106, %vm1109
      %vm1134 = vmand %vm1107, %vm1110
      %vm1135 = vmand %vm1108, %vm1111
      %v1136 = vsel %vm1112, 1, 0
      %v1137 = vsel %vm1113, 1, 0
      %v1138 = vsel %vm1114, 1, 0
      %v1139 = vsel %vm1115, 1, 0
      %v1140 = vsel %vm1116, 1, 0
      %v1141 = vsel %vm1117, 1, 0
      %v1142 = vsel %vm1118, 1, 0
      %v1143 = vsel %vm1119, 1, 0
      %v1144 = vsel %vm1120, 1, 0
      %v1145 = vsel %vm1121, 1, 0
      %v1146 = vsel %vm1122, 1, 0
      %v1147 = vsel %vm1123, 1, 0
      %v1148 = vsel %vm1124, 1, 0
      %v1149 = vsel %vm1125, 1, 0
      %v1150 = vsel %vm1126, 1, 0
      %v1151 = vsel %vm1127, 1, 0
      %v1152 = vsel %vm1128, 1, 0
      %v1153 = vsel %vm1129, 1, 0
      %v1154 = vsel %vm1130, 1, 0
      %v1155 = vsel %vm1131, 1, 0
      %v1156 = vsel %vm1132, 1, 0
      %v1157 = vsel %vm1133, 1, 0
      %v1158 = vsel %vm1134, 1, 0
      %v1159 = vsel %vm1135, 1, 0
      %vm1160 = vcmp.eq.s32.totalorder %v1136, 1
      %vm1161 = vcmp.eq.s32.totalorder %v1137, 1
      %vm1162 = vcmp.eq.s32.totalorder %v1138, 1
      %vm1163 = vcmp.eq.s32.totalorder %v1139, 1
      %vm1164 = vcmp.eq.s32.totalorder %v1140, 1
      %vm1165 = vcmp.eq.s32.totalorder %v1141, 1
      %vm1166 = vcmp.eq.s32.totalorder %v1142, 1
      %vm1167 = vcmp.eq.s32.totalorder %v1143, 1
      %vm1168 = vcmp.eq.s32.totalorder %v1144, 1
      %vm1169 = vcmp.eq.s32.totalorder %v1145, 1
      %vm1170 = vcmp.eq.s32.totalorder %v1146, 1
      %vm1171 = vcmp.eq.s32.totalorder %v1147, 1
      %vm1172 = vcmp.eq.s32.totalorder %v1148, 1
      %vm1173 = vcmp.eq.s32.totalorder %v1149, 1
      %vm1174 = vcmp.eq.s32.totalorder %v1150, 1
      %vm1175 = vcmp.eq.s32.totalorder %v1151, 1
      %vm1176 = vcmp.eq.s32.totalorder %v1152, 1
      %vm1177 = vcmp.eq.s32.totalorder %v1153, 1
      %vm1178 = vcmp.eq.s32.totalorder %v1154, 1
      %vm1179 = vcmp.eq.s32.totalorder %v1155, 1
      %vm1180 = vcmp.eq.s32.totalorder %v1156, 1
      %vm1181 = vcmp.eq.s32.totalorder %v1157, 1
      %vm1182 = vcmp.eq.s32.totalorder %v1158, 1
      %vm1183 = vcmp.eq.s32.totalorder %v1159, 1
      %v1184 = vsel %vm1160, %v1022, 0.0
      %v1185 = vsel %vm1161, %v1023, 0.0
      %v1186 = vsel %vm1162, %v1024, 0.0
      %v1187 = vsel %vm1163, %v1025, 0.0
      %v1188 = vsel %vm1164, %v1026, 0.0
      %v1189 = vsel %vm1165, %v1027, 0.0
      %v1190 = vsel %vm1166, %v1028, 0.0
      %v1191 = vsel %vm1167, %v1029, 0.0
      %v1192 = vsel %vm1168, %v1030, 0.0
      %v1193 = vsel %vm1169, %v1031, 0.0
      %v1194 = vsel %vm1170, %v1032, 0.0
      %v1195 = vsel %vm1171, %v1033, 0.0
      %v1196 = vsel %vm1172, %v1034, 0.0
      %v1197 = vsel %vm1173, %v1035, 0.0
      %v1198 = vsel %vm1174, %v1036, 0.0
      %v1199 = vsel %vm1175, %v1037, 0.0
      %v1200 = vsel %vm1176, %v1038, 0.0
      %v1201 = vsel %vm1177, %v1039, 0.0
      %v1202 = vsel %vm1178, %v1040, 0.0
      %v1203 = vsel %vm1179, %v1041, 0.0
      %v1204 = vsel %vm1180, %v1042, 0.0
      %v1205 = vsel %vm1181, %v1043, 0.0
      %v1206 = vsel %vm1182, %v1044, 0.0
      %v1207 = vsel %vm1183, %v1045, 0.0
      %vm1208 = vcmask 392192
      %1209 = vst.msk [vmem:[#allocation2] sm:$0xff] %vm1208, %v1184
      %1210 = vst.msk [vmem:[#allocation2 + $0x8] sm:$0xff] %vm1208, %v1185
      %vm1211 = vcmask 388096
      %1212 = vst.msk [vmem:[#allocation2 + $0x10] sm:$0xf] %vm1211, %v1186
      %1213 = vst.msk [vmem:[#allocation2 + $0x18] sm:$0xff] %vm1208, %v1187
      %1214 = vst.msk [vmem:[#allocation2 + $0x20] sm:$0xff] %vm1208, %v1188
      %1215 = vst.msk [vmem:[#allocation2 + $0x28] sm:$0xf] %vm1211, %v1189
      %1216 = vst.msk [vmem:[#allocation2 + $0x30] sm:$0xff] %vm1208, %v1190
      %1217 = vst.msk [vmem:[#allocation2 + $0x38] sm:$0xff] %vm1208, %v1191
      %1218 = vst.msk [vmem:[#allocation2 + $0x40] sm:$0xf] %vm1211, %v1192
      %1219 = vst.msk [vmem:[#allocation2 + $0x48] sm:$0xff] %vm1208, %v1193
      %1220 = vst.msk [vmem:[#allocation2 + $0x50] sm:$0xff] %vm1208, %v1194
      %1221 = vst.msk [vmem:[#allocation2 + $0x58] sm:$0xf] %vm1211, %v1195
      %1222 = vst.msk [vmem:[#allocation2 + $0x60] sm:$0xff] %vm1208, %v1196
      %1223 = vst.msk [vmem:[#allocation2 + $0x68] sm:$0xff] %vm1208, %v1197
      %1224 = vst.msk [vmem:[#allocation2 + $0x70] sm:$0xf] %vm1211, %v1198
      %1225 = vst.msk [vmem:[#allocation2 + $0x78] sm:$0xff] %vm1208, %v1199
      %1226 = vst.msk [vmem:[#allocation2 + $0x80] sm:$0xff] %vm1208, %v1200
      %1227 = vst.msk [vmem:[#allocation2 + $0x88] sm:$0xf] %vm1211, %v1201
      %1228 = vst.msk [vmem:[#allocation2 + $0x90] sm:$0xff] %vm1208, %v1202
      %1229 = vst.msk [vmem:[#allocation2 + $0x98] sm:$0xff] %vm1208, %v1203
      %1230 = vst.msk [vmem:[#allocation2 + $0xa0] sm:$0xf] %vm1211, %v1204
      %1231 = vst.msk [vmem:[#allocation2 + $0xa8] sm:$0xff] %vm1208, %v1205
      %1232 = vst.msk [vmem:[#allocation2 + $0xb0] sm:$0xff] %vm1208, %v1206
      %1233 = vst.msk [vmem:[#allocation2 + $0xb8] sm:$0xf] %vm1211, %v1207
      %v1234 = vld [vmem:[%s4] sm:$0x3]
      %v1236 = vlaneseq
      %v1237 = vshrl.u32 %v1236, 7
      %v1238 = vsub.s32 0, %v1237
      %v1239 = vrot.slane %v1234, %v1238
      %v1240 = vlaneseq
      %v1241 = vshrl.u32 %v1240, 7
      %v1242 = vsub.s32 1, %v1241
      %v1243 = vrot.slane %v1234, %v1242
      %v1246 = vadd.f32 %v1239, 0.0
      %v1247 = vadd.f32 %v1243, 0.0
      %v1248 = vld [vmem:[#allocation2] sm:$0xff]
      %v1249 = vld [vmem:[#allocation2 + $0x8] sm:$0xff]
      %v1250 = vld [vmem:[#allocation2 + $0x18] sm:$0xff]
      %v1251 = vld [vmem:[#allocation2 + $0x20] sm:$0xff]
      %v1252 = vld [vmem:[#allocation2 + $0x30] sm:$0xff]
      %v1253 = vld [vmem:[#allocation2 + $0x38] sm:$0xff]
      %v1254 = vld [vmem:[#allocation2 + $0x48] sm:$0xff]
      %v1255 = vld [vmem:[#allocation2 + $0x50] sm:$0xff]
      %v1256 = vld [vmem:[#allocation2 + $0x1] sm:$0xff]
      %v1257 = vld [vmem:[#allocation2 + $0x9] sm:$0xff]
      %v1258 = vld [vmem:[#allocation2 + $0x19] sm:$0xff]
      %v1259 = vld [vmem:[#allocation2 + $0x21] sm:$0xff]
      %v1260 = vld [vmem:[#allocation2 + $0x31] sm:$0xff]
      %v1261 = vld [vmem:[#allocation2 + $0x39] sm:$0xff]
      %v1262 = vld [vmem:[#allocation2 + $0x49] sm:$0xff]
      %v1263 = vld [vmem:[#allocation2 + $0x51] sm:$0xff]
      %v1264 = vld [vmem:[#allocation2 + $0x2] sm:$0xff]
      %v1265 = vld [vmem:[#allocation2 + $0xa] sm:$0xff]
      %v1266 = vld [vmem:[#allocation2 + $0x1a] sm:$0xff]
      %v1267 = vld [vmem:[#allocation2 + $0x22] sm:$0xff]
      %v1268 = vld [vmem:[#allocation2 + $0x32] sm:$0xff]
      %v1269 = vld [vmem:[#allocation2 + $0x3a] sm:$0xff]
      %v1270 = vld [vmem:[#allocation2 + $0x4a] sm:$0xff]
      %v1271 = vld [vmem:[#allocation2 + $0x52] sm:$0xff]
      %v1272 = vld [vmem:[#allocation2 + $0x3] sm:$0xff]
      %v1273 = vld [vmem:[#allocation2 + $0xb] sm:$0xff]
      %v1274 = vld [vmem:[#allocation2 + $0x1b] sm:$0xff]
      %v1275 = vld [vmem:[#allocation2 + $0x23] sm:$0xff]
      %v1276 = vld [vmem:[#allocation2 + $0x33] sm:$0xff]
      %v1277 = vld [vmem:[#allocation2 + $0x3b] sm:$0xff]
      %v1278 = vld [vmem:[#allocation2 + $0x4b] sm:$0xff]
      %v1279 = vld [vmem:[#allocation2 + $0x53] sm:$0xff]
      %v1280 = vld [vmem:[#allocation2 + $0x4] sm:$0xff]
      %v1281 = vld [vmem:[#allocation2 + $0xc] sm:$0xff]
      %v1282 = vld [vmem:[#allocation2 + $0x1c] sm:$0xff]
      %v1283 = vld [vmem:[#allocation2 + $0x24] sm:$0xff]
      %v1284 = vld [vmem:[#allocation2 + $0x34] sm:$0xff]
      %v1285 = vld [vmem:[#allocation2 + $0x3c] sm:$0xff]
      %v1286 = vld [vmem:[#allocation2 + $0x4c] sm:$0xff]
      %v1287 = vld [vmem:[#allocation2 + $0x54] sm:$0xff]
      %1296 = vrot.lane.b32.xlu0 %v1256, 48
      %v1297 = vpop.permute.xlu0 %1296
      %1298 = vrot.lane.b32.xlu0 %v1257, 48
      %v1299 = vpop.permute.xlu0 %1298
      %1300 = vrot.lane.b32.xlu0 %v1258, 48
      %v1301 = vpop.permute.xlu0 %1300
      %1302 = vrot.lane.b32.xlu0 %v1259, 48
      %v1303 = vpop.permute.xlu0 %1302
      %1304 = vrot.lane.b32.xlu0 %v1260, 48
      %v1305 = vpop.permute.xlu0 %1304
      %1306 = vrot.lane.b32.xlu0 %v1261, 48
      %v1307 = vpop.permute.xlu0 %1306
      %1308 = vrot.lane.b32.xlu0 %v1262, 48
      %v1309 = vpop.permute.xlu0 %1308
      %1310 = vrot.lane.b32.xlu0 %v1263, 48
      %v1311 = vpop.permute.xlu0 %1310
      %1328 = vrot.lane.b32.xlu0 %v1264, 96
      %v1329 = vpop.permute.xlu0 %1328
      %1330 = vrot.lane.b32.xlu0 %v1265, 96
      %v1331 = vpop.permute.xlu0 %1330
      %1332 = vrot.lane.b32.xlu0 %v1266, 96
      %v1333 = vpop.permute.xlu0 %1332
      %1334 = vrot.lane.b32.xlu0 %v1267, 96
      %v1335 = vpop.permute.xlu0 %1334
      %1336 = vrot.lane.b32.xlu0 %v1268, 96
      %v1337 = vpop.permute.xlu0 %1336
      %1338 = vrot.lane.b32.xlu0 %v1269, 96
      %v1339 = vpop.permute.xlu0 %1338
      %1340 = vrot.lane.b32.xlu0 %v1270, 96
      %v1341 = vpop.permute.xlu0 %1340
      %1342 = vrot.lane.b32.xlu0 %v1271, 96
      %v1343 = vpop.permute.xlu0 %1342
      %1360 = vrot.lane.b32.xlu0 %v1272, 16
      %v1361 = vpop.permute.xlu0 %1360
      %1362 = vrot.lane.b32.xlu0 %v1273, 16
      %v1363 = vpop.permute.xlu0 %1362
      %1364 = vrot.lane.b32.xlu0 %v1274, 16
      %v1365 = vpop.permute.xlu0 %1364
      %1366 = vrot.lane.b32.xlu0 %v1275, 16
      %v1367 = vpop.permute.xlu0 %1366
      %1368 = vrot.lane.b32.xlu0 %v1276, 16
      %v1369 = vpop.permute.xlu0 %1368
      %1370 = vrot.lane.b32.xlu0 %v1277, 16
      %v1371 = vpop.permute.xlu0 %1370
      %1372 = vrot.lane.b32.xlu0 %v1278, 16
      %v1373 = vpop.permute.xlu0 %1372
      %1374 = vrot.lane.b32.xlu0 %v1279, 16
      %v1375 = vpop.permute.xlu0 %1374
      %1392 = vrot.lane.b32.xlu0 %v1280, 64
      %v1393 = vpop.permute.xlu0 %1392
      %1394 = vrot.lane.b32.xlu0 %v1281, 64
      %v1395 = vpop.permute.xlu0 %1394
      %1396 = vrot.lane.b32.xlu0 %v1282, 64
      %v1397 = vpop.permute.xlu0 %1396
      %1398 = vrot.lane.b32.xlu0 %v1283, 64
      %v1399 = vpop.permute.xlu0 %1398
      %1400 = vrot.lane.b32.xlu0 %v1284, 64
      %v1401 = vpop.permute.xlu0 %1400
      %1402 = vrot.lane.b32.xlu0 %v1285, 64
      %v1403 = vpop.permute.xlu0 %1402
      %1404 = vrot.lane.b32.xlu0 %v1286, 64
      %v1405 = vpop.permute.xlu0 %1404
      %1406 = vrot.lane.b32.xlu0 %v1287, 64
      %v1407 = vpop.permute.xlu0 %1406
      %v1416 = vsel %vm1208, %v1248, %v1297
      %v1417 = vsel %vm1208, %v1249, %v1299
      %v1418 = vsel %vm1208, %v1250, %v1301
      %v1419 = vsel %vm1208, %v1251, %v1303
      %v1420 = vsel %vm1208, %v1252, %v1305
      %v1421 = vsel %vm1208, %v1253, %v1307
      %v1422 = vsel %vm1208, %v1254, %v1309
      %v1423 = vsel %vm1208, %v1255, %v1311
      %vm1424 = vcmask 785408
      %v1425 = vsel %vm1424, %v1416, %v1329
      %v1426 = vsel %vm1424, %v1417, %v1331
      %v1427 = vsel %vm1424, %v1418, %v1333
      %v1428 = vsel %vm1424, %v1419, %v1335
      %v1429 = vsel %vm1424, %v1420, %v1337
      %v1430 = vsel %vm1424, %v1421, %v1339
      %v1431 = vsel %vm1424, %v1422, %v1341
      %v1432 = vsel %vm1424, %v1423, %v1343
      %vm1433 = vcmask 130048
      %v1434 = vsel %vm1433, %v1329, %v1361
      %v1435 = vsel %vm1433, %v1331, %v1363
      %v1436 = vsel %vm1433, %v1333, %v1365
      %v1437 = vsel %vm1433, %v1335, %v1367
      %v1438 = vsel %vm1433, %v1337, %v1369
      %v1439 = vsel %vm1433, %v1339, %v1371
      %v1440 = vsel %vm1433, %v1341, %v1373
      %v1441 = vsel %vm1433, %v1343, %v1375
      %vm1442 = vcmask 523264
      %v1443 = vsel %vm1442, %v1434, %v1393
      %v1444 = vsel %vm1442, %v1435, %v1395
      %v1445 = vsel %vm1442, %v1436, %v1397
      %v1446 = vsel %vm1442, %v1437, %v1399
      %v1447 = vsel %vm1442, %v1438, %v1401
      %v1448 = vsel %vm1442, %v1439, %v1403
      %v1449 = vsel %vm1442, %v1440, %v1405
      %v1450 = vsel %vm1442, %v1441, %v1407
      %v1451 = vld [vmem:[%s3] sm:$0xff]
      %v1452 = vld [vmem:[%s3 + $0x8] sm:$0xff]
      %v1453 = vld [vmem:[%s3 + $0x10] sm:$0xff]
      %v1454 = vld [vmem:[%s3 + $0x18] sm:$0xff]
      %v1455 = vld [vmem:[%s3 + $0x20] sm:$0xff]
      %v1456 = vld [vmem:[%s3 + $0x28] sm:$0xff]
      %v1457 = vld [vmem:[%s3 + $0x30] sm:$0xff]
      %v1458 = vld [vmem:[%s3 + $0x38] sm:$0xff]
      %v1459 = vld [vmem:[%s3 + $0x40] sm:$0xff]
      %v1460 = vld [vmem:[%s3 + $0x48] sm:$0xff]
      %v1461 = vld [vmem:[%s3 + $0x50] sm:$0xff]
      %v1462 = vld [vmem:[%s3 + $0x58] sm:$0xff]
      %v1463 = vld [vmem:[%s3 + $0x60] sm:$0xff]
      %v1464 = vld [vmem:[%s3 + $0x68] sm:$0xff]
      %v1465 = vld [vmem:[%s3 + $0x70] sm:$0xff]
      %v1466 = vld [vmem:[%s3 + $0x78] sm:$0xff]
      %v1467 = vld [vmem:[%s3 + $0x80] sm:$0xff]
      %v1468 = vld [vmem:[%s3 + $0x88] sm:$0xff]
      %v1469 = vld [vmem:[%s3 + $0x90] sm:$0xff]
      %v1470 = vld [vmem:[%s3 + $0x98] sm:$0xff]
      %v1471 = vld [vmem:[%s3 + $0xa0] sm:$0xff]
      %v1472 = vld [vmem:[%s3 + $0xa8] sm:$0xff]
      %v1473 = vld [vmem:[%s3 + $0xb0] sm:$0xff]
      %v1474 = vld [vmem:[%s3 + $0xb8] sm:$0xff]
      %v1475 = vld [vmem:[%s3 + $0xc0] sm:$0xff]
      %v1476 = vld [vmem:[%s3 + $0xc8] sm:$0xff]
      %v1477 = vld [vmem:[%s3 + $0xd0] sm:$0xff]
      %v1478 = vld [vmem:[%s3 + $0xd8] sm:$0xff]
      %v1479 = vld [vmem:[%s3 + $0xe0] sm:$0xff]
      %v1480 = vld [vmem:[%s3 + $0xe8] sm:$0xff]
      %v1481 = vld [vmem:[%s3 + $0xf0] sm:$0xff]
      %v1482 = vld [vmem:[%s3 + $0xf8] sm:$0xff]
      %v1483 = vld [vmem:[%s3 + $0x100] sm:$0xff]
      %v1484 = vld [vmem:[%s3 + $0x108] sm:$0xff]
      %v1485 = vld [vmem:[%s3 + $0x110] sm:$0xff]
      %v1486 = vld [vmem:[%s3 + $0x118] sm:$0xff]
      %v1487 = vld [vmem:[%s3 + $0x120] sm:$0xff]
      %v1488 = vld [vmem:[%s3 + $0x128] sm:$0xff]
      %v1489 = vld [vmem:[%s3 + $0x130] sm:$0xff]
      %v1490 = vld [vmem:[%s3 + $0x138] sm:$0xff]
      %v1491 = vld [vmem:[%s3 + $0x140] sm:$0xff]
      %v1492 = vld [vmem:[%s3 + $0x148] sm:$0xff]
      %v1493 = vld [vmem:[%s3 + $0x150] sm:$0xff]
      %v1494 = vld [vmem:[%s3 + $0x158] sm:$0xff]
      %v1495 = vld [vmem:[%s3 + $0x160] sm:$0xff]
      %v1496 = vld [vmem:[%s3 + $0x168] sm:$0xff]
      %v1497 = vld [vmem:[%s3 + $0x170] sm:$0xff]
      %v1498 = vld [vmem:[%s3 + $0x178] sm:$0xff]
      %v1499 = vld [vmem:[%s3 + $0x180] sm:$0xff]
      %v1500 = vld [vmem:[%s3 + $0x188] sm:$0xff]
      %v1501 = vld [vmem:[%s3 + $0x190] sm:$0xff]
      %v1502 = vld [vmem:[%s3 + $0x198] sm:$0xff]
      %v1503 = vld [vmem:[%s3 + $0x1a0] sm:$0xff]
      %v1504 = vld [vmem:[%s3 + $0x1a8] sm:$0xff]
      %v1505 = vld [vmem:[%s3 + $0x1b0] sm:$0xff]
      %v1506 = vld [vmem:[%s3 + $0x1b8] sm:$0xff]
      %v1507 = vld [vmem:[%s3 + $0x1c0] sm:$0xff]
      %v1508 = vld [vmem:[%s3 + $0x1c8] sm:$0xff]
      %v1509 = vld [vmem:[%s3 + $0x1d0] sm:$0xff]
      %v1510 = vld [vmem:[%s3 + $0x1d8] sm:$0xff]
      %vm1511 = vcmask 916480
      %v1513 = vsel %vm1511, %v1443, 0
      %v1516 = vsel %vm1511, %v1444, 0
      %v1519 = vsel %vm1511, %v1445, 0
      %v1522 = vsel %vm1511, %v1446, 0
      %v1525 = vsel %vm1511, %v1447, 0
      %v1528 = vsel %vm1511, %v1448, 0
      %v1531 = vsel %vm1511, %v1449, 0
      %v1534 = vsel %vm1511, %v1450, 0
      %1536 = vmatprep.subr.mxu0 %v1452
      %1537 = vmatpush1.msra.mxu0 %v1451
      %1538 = vmatprep.subr.mxu0 %v1454
      %1539 = vmatpush1.msra.mxu0 %v1453
      %1540 = vmatprep.subr.mxu0 %v1456
      %1541 = vmatpush1.msra.mxu0 %v1455
      %1542 = vmatprep.subr.mxu0 %v1458
      %1543 = vmatpush1.msra.mxu0 %v1457
      %1544 = vmatprep.subr.mxu0 %v1460
      %1545 = vmatpush1.msra.mxu0 %v1459
      %1546 = vmatprep.subr.mxu0 %v1462
      %1547 = vmatpush1.msra.mxu0 %v1461
      %1548 = vmatprep.subr.mxu0 %v1464
      %1549 = vmatpush1.msra.mxu0 %v1463
      %1550 = vmatprep.subr.mxu0 %v1466
      %1551 = vmatpush1.msra.mxu0 %v1465
      %1552 = vmatprep.subr.mxu0 %v1468
      %1553 = vmatpush1.msra.mxu0 %v1467
      %1554 = vmatprep.subr.mxu0 %v1470
      %1555 = vmatpush1.msra.mxu0 %v1469
      %1556 = vmatprep.subr.mxu0 %v1472
      %1557 = vmatpush1.msra.mxu0 %v1471
      %1558 = vmatprep.subr.mxu0 %v1474
      %1559 = vmatpush1.msra.mxu0 %v1473
      %1560 = vmatprep.subr.mxu0 %v1476
      %1561 = vmatpush1.msra.mxu0 %v1475
      %1562 = vmatprep.subr.mxu0 %v1478
      %1563 = vmatpush1.msra.mxu0 %v1477
      %1564 = vmatprep.subr.mxu0 %v1480
      %1565 = vmatpush1.msra.mxu0 %v1479
      %1566 = vmatprep.subr.mxu0 %v1482
      %1567 = vmatpush1.msra.mxu0 %v1481
      %1568 = vmatprep.subr.mxu0 %v1484
      %1569 = vmatpush1.msra.mxu0 %v1483
      %1570 = vmatprep.subr.mxu0 %v1486
      %1571 = vmatpush1.msra.mxu0 %v1485
      %1572 = vmatprep.subr.mxu0 %v1488
      %1573 = vmatpush1.msra.mxu0 %v1487
      %1574 = vmatprep.subr.mxu0 %v1490
      %1575 = vmatpush1.msra.mxu0 %v1489
      %1576 = vmatprep.subr.mxu0 %v1492
      %1577 = vmatpush1.msra.mxu0 %v1491
      %1578 = vmatprep.subr.mxu0 %v1494
      %1579 = vmatpush1.msra.mxu0 %v1493
      %1580 = vmatprep.subr.mxu0 %v1496
      %1581 = vmatpush1.msra.mxu0 %v1495
      %1582 = vmatprep.subr.mxu0 %v1498
      %1583 = vmatpush1.msra.mxu0 %v1497
      %1584 = vmatprep.subr.mxu0 %v1500
      %1585 = vmatpush1.msra.mxu0 %v1499
      %1586 = vmatprep.subr.mxu0 %v1502
      %1587 = vmatpush1.msra.mxu0 %v1501
      %1588 = vmatprep.subr.mxu0 %v1504
      %1589 = vmatpush1.msra.mxu0 %v1503
      %1590 = vmatprep.subr.mxu0 %v1506
      %1591 = vmatpush1.msra.mxu0 %v1505
      %1592 = vmatprep.subr.mxu0 %v1508
      %1593 = vmatpush1.msra.mxu0 %v1507
      %1594 = vmatprep.subr.mxu0 %v1510
      %1595 = vmatpush1.msra.mxu0 %v1509
      %1596 = vmatprep.subr.mxu0 0.0
      %1597 = vmatpush1.msra.mxu0 0.0
      %1598 = vmatprep.subr.mxu0 0.0
      %1599 = vmatpush1.msra.mxu0 0.0
      %1600 = vmatprep.mubr.f32.mxu0 %v1513
      %1601 = vmatmul.mubr.f32.gmra.mrb[0].mxu0 %v1425
      %v1602 = vpop.f32.mrb[0].mxu0
      %v1603 = vadd.f32 0.0, %v1602
      %v1604 = vpop.f32.mrb[0].mxu0
      %v1605 = vadd.f32 0.0, %v1604
      %1606 = vmatprep.mubr.f32.mxu0 %v1516
      %1607 = vmatmul.mubr.f32.gmra.mrb[0].mxu0 %v1426
      %v1608 = vpop.f32.mrb[0].mxu0
      %v1609 = vadd.f32 0.0, %v1608
      %v1610 = vpop.f32.mrb[0].mxu0
      %v1611 = vadd.f32 0.0, %v1610
      %1612 = vmatprep.mubr.f32.mxu0 %v1519
      %1613 = vmatmul.mubr.f32.gmra.mrb[0].mxu0 %v1427
      %v1614 = vpop.f32.mrb[0].mxu0
      %v1615 = vadd.f32 0.0, %v1614
      %v1616 = vpop.f32.mrb[0].mxu0
      %v1617 = vadd.f32 0.0, %v1616
      %1618 = vmatprep.mubr.f32.mxu0 %v1522
      %1619 = vmatmul.mubr.f32.gmra.mrb[0].mxu0 %v1428
      %v1620 = vpop.f32.mrb[0].mxu0
      %v1621 = vadd.f32 0.0, %v1620
      %v1622 = vpop.f32.mrb[0].mxu0
      %v1623 = vadd.f32 0.0, %v1622
      %1624 = vmatprep.mubr.f32.mxu0 %v1525
      %1625 = vmatmul.mubr.f32.gmra.mrb[0].mxu0 %v1429
      %v1626 = vpop.f32.mrb[0].mxu0
      %v1627 = vadd.f32 0.0, %v1626
      %v1628 = vpop.f32.mrb[0].mxu0
      %v1629 = vadd.f32 0.0, %v1628
      %1630 = vmatprep.mubr.f32.mxu0 %v1528
      %1631 = vmatmul.mubr.f32.gmra.mrb[0].mxu0 %v1430
      %v1632 = vpop.f32.mrb[0].mxu0
      %v1633 = vadd.f32 0.0, %v1632
      %v1634 = vpop.f32.mrb[0].mxu0
      %v1635 = vadd.f32 0.0, %v1634
      %1636 = vmatprep.mubr.f32.mxu0 %v1531
      %1637 = vmatmul.mubr.f32.gmra.mrb[0].mxu0 %v1431
      %v1638 = vpop.f32.mrb[0].mxu0
      %v1639 = vadd.f32 0.0, %v1638
      %v1640 = vpop.f32.mrb[0].mxu0
      %v1641 = vadd.f32 0.0, %v1640
      %1642 = vmatprep.mubr.f32.mxu0 %v1534
      %1643 = vmatmul.mubr.f32.gmra.mrb[0].mxu0 %v1432
      %v1644 = vpop.f32.mrb[0].mxu0
      %v1645 = vadd.f32 0.0, %v1644
      %v1646 = vpop.f32.mrb[0].mxu0
      %v1647 = vadd.f32 0.0, %v1646
      %1648 = vdwg.mxu0
      %v1649 = vadd.f32 %v1246, %v1603
      %v1650 = vadd.f32 %v1247, %v1605
      %v1651 = vadd.f32 %v1246, %v1609
      %v1652 = vadd.f32 %v1247, %v1611
      %v1653 = vadd.f32 %v1246, %v1615
      %v1654 = vadd.f32 %v1247, %v1617
      %v1655 = vadd.f32 %v1246, %v1621
      %v1656 = vadd.f32 %v1247, %v1623
      %v1657 = vadd.f32 %v1246, %v1627
      %v1658 = vadd.f32 %v1247, %v1629
      %v1659 = vadd.f32 %v1246, %v1633
      %v1660 = vadd.f32 %v1247, %v1635
      %v1661 = vadd.f32 %v1246, %v1639
      %v1662 = vadd.f32 %v1247, %v1641
      %v1663 = vadd.f32 %v1246, %v1645
      %v1664 = vadd.f32 %v1247, %v1647
      %s1665 = scalar_lea.vmem [#allocation2], 24
      %v1666 = vld [vmem:[%s1665] sm:$0xff]
      %v1667 = vld [vmem:[%s1665 + $0x8] sm:$0xff]
      %v1668 = vld [vmem:[%s1665 + $0x18] sm:$0xff]
      %v1669 = vld [vmem:[%s1665 + $0x20] sm:$0xff]
      %v1670 = vld [vmem:[%s1665 + $0x30] sm:$0xff]
      %v1671 = vld [vmem:[%s1665 + $0x38] sm:$0xff]
      %v1672 = vld [vmem:[%s1665 + $0x48] sm:$0xff]
      %v1673 = vld [vmem:[%s1665 + $0x50] sm:$0xff]
      %v1674 = vld [vmem:[%s1665 + $0x1] sm:$0xff]
      %v1675 = vld [vmem:[%s1665 + $0x9] sm:$0xff]
      %v1676 = vld [vmem:[%s1665 + $0x19] sm:$0xff]
      %v1677 = vld [vmem:[%s1665 + $0x21] sm:$0xff]
      %v1678 = vld [vmem:[%s1665 + $0x31] sm:$0xff]
      %v1679 = vld [vmem:[%s1665 + $0x39] sm:$0xff]
      %v1680 = vld [vmem:[%s1665 + $0x49] sm:$0xff]
      %v1681 = vld [vmem:[%s1665 + $0x51] sm:$0xff]
      %v1682 = vld [vmem:[%s1665 + $0x2] sm:$0xff]
      %v1683 = vld [vmem:[%s1665 + $0xa] sm:$0xff]
      %v1684 = vld [vmem:[%s1665 + $0x1a] sm:$0xff]
      %v1685 = vld [vmem:[%s1665 + $0x22] sm:$0xff]
      %v1686 = vld [vmem:[%s1665 + $0x32] sm:$0xff]
      %v1687 = vld [vmem:[%s1665 + $0x3a] sm:$0xff]
      %v1688 = vld [vmem:[%s1665 + $0x4a] sm:$0xff]
      %v1689 = vld [vmem:[%s1665 + $0x52] sm:$0xff]
      %v1690 = vld [vmem:[%s1665 + $0x3] sm:$0xff]
      %v1691 = vld [vmem:[%s1665 + $0xb] sm:$0xff]
      %v1692 = vld [vmem:[%s1665 + $0x1b] sm:$0xff]
      %v1693 = vld [vmem:[%s1665 + $0x23] sm:$0xff]
      %v1694 = vld [vmem:[%s1665 + $0x33] sm:$0xff]
      %v1695 = vld [vmem:[%s1665 + $0x3b] sm:$0xff]
      %v1696 = vld [vmem:[%s1665 + $0x4b] sm:$0xff]
      %v1697 = vld [vmem:[%s1665 + $0x53] sm:$0xff]
      %v1698 = vld [vmem:[%s1665 + $0x4] sm:$0xff]
      %v1699 = vld [vmem:[%s1665 + $0xc] sm:$0xff]
      %v1700 = vld [vmem:[%s1665 + $0x1c] sm:$0xff]
      %v1701 = vld [vmem:[%s1665 + $0x24] sm:$0xff]
      %v1702 = vld [vmem:[%s1665 + $0x34] sm:$0xff]
      %v1703 = vld [vmem:[%s1665 + $0x3c] sm:$0xff]
      %v1704 = vld [vmem:[%s1665 + $0x4c] sm:$0xff]
      %v1705 = vld [vmem:[%s1665 + $0x54] sm:$0xff]
      %1714 = vrot.lane.b32.xlu0 %v1674, 48
      %v1715 = vpop.permute.xlu0 %1714
      %1716 = vrot.lane.b32.xlu0 %v1675, 48
      %v1717 = vpop.permute.xlu0 %1716
      %1718 = vrot.lane.b32.xlu0 %v1676, 48
      %v1719 = vpop.permute.xlu0 %1718
      %1720 = vrot.lane.b32.xlu0 %v1677, 48
      %v1721 = vpop.permute.xlu0 %1720
      %1722 = vrot.lane.b32.xlu0 %v1678, 48
      %v1723 = vpop.permute.xlu0 %1722
      %1724 = vrot.lane.b32.xlu0 %v1679, 48
      %v1725 = vpop.permute.xlu0 %1724
      %1726 = vrot.lane.b32.xlu0 %v1680, 48
      %v1727 = vpop.permute.xlu0 %1726
      %1728 = vrot.lane.b32.xlu0 %v1681, 48
      %v1729 = vpop.permute.xlu0 %1728
      %1746 = vrot.lane.b32.xlu0 %v1682, 96
      %v1747 = vpop.permute.xlu0 %1746
      %1748 = vrot.lane.b32.xlu0 %v1683, 96
      %v1749 = vpop.permute.xlu0 %1748
      %1750 = vrot.lane.b32.xlu0 %v1684, 96
      %v1751 = vpop.permute.xlu0 %1750
      %1752 = vrot.lane.b32.xlu0 %v1685, 96
      %v1753 = vpop.permute.xlu0 %1752
      %1754 = vrot.lane.b32.xlu0 %v1686, 96
      %v1755 = vpop.permute.xlu0 %1754
      %1756 = vrot.lane.b32.xlu0 %v1687, 96
      %v1757 = vpop.permute.xlu0 %1756
      %1758 = vrot.lane.b32.xlu0 %v1688, 96
      %v1759 = vpop.permute.xlu0 %1758
      %1760 = vrot.lane.b32.xlu0 %v1689, 96
      %v1761 = vpop.permute.xlu0 %1760
      %1778 = vrot.lane.b32.xlu0 %v1690, 16
      %v1779 = vpop.permute.xlu0 %1778
      %1780 = vrot.lane.b32.xlu0 %v1691, 16
      %v1781 = vpop.permute.xlu0 %1780
      %1782 = vrot.lane.b32.xlu0 %v1692, 16
      %v1783 = vpop.permute.xlu0 %1782
      %1784 = vrot.lane.b32.xlu0 %v1693, 16
      %v1785 = vpop.permute.xlu0 %1784
      %1786 = vrot.lane.b32.xlu0 %v1694, 16
      %v1787 = vpop.permute.xlu0 %1786
      %1788 = vrot.lane.b32.xlu0 %v1695, 16
      %v1789 = vpop.permute.xlu0 %1788
      %1790 = vrot.lane.b32.xlu0 %v1696, 16
      %v1791 = vpop.permute.xlu0 %1790
      %1792 = vrot.lane.b32.xlu0 %v1697, 16
      %v1793 = vpop.permute.xlu0 %1792
      %1810 = vrot.lane.b32.xlu0 %v1698, 64
      %v1811 = vpop.permute.xlu0 %1810
      %1812 = vrot.lane.b32.xlu0 %v1699, 64
      %v1813 = vpop.permute.xlu0 %1812
      %1814 = vrot.lane.b32.xlu0 %v1700, 64
      %v1815 = vpop.permute.xlu0 %1814
      %1816 = vrot.lane.b32.xlu0 %v1701, 64
      %v1817 = vpop.permute.xlu0 %1816
      %1818 = vrot.lane.b32.xlu0 %v1702, 64
      %v1819 = vpop.permute.xlu0 %1818
      %1820 = vrot.lane.b32.xlu0 %v1703, 64
      %v1821 = vpop.permute.xlu0 %1820
      %1822 = vrot.lane.b32.xlu0 %v1704, 64
      %v1823 = vpop.permute.xlu0 %1822
      %1824 = vrot.lane.b32.xlu0 %v1705, 64
      %v1825 = vpop.permute.xlu0 %1824
      %v1834 = vsel %vm1208, %v1666, %v1715
      %v1835 = vsel %vm1208, %v1667, %v1717
      %v1836 = vsel %vm1208, %v1668, %v1719
      %v1837 = vsel %vm1208, %v1669, %v1721
      %v1838 = vsel %vm1208, %v1670, %v1723
      %v1839 = vsel %vm1208, %v1671, %v1725
      %v1840 = vsel %vm1208, %v1672, %v1727
      %v1841 = vsel %vm1208, %v1673, %v1729
      %v1842 = vsel %vm1424, %v1834, %v1747
      %v1843 = vsel %vm1424, %v1835, %v1749
      %v1844 = vsel %vm1424, %v1836, %v1751
      %v1845 = vsel %vm1424, %v1837, %v1753
      %v1846 = vsel %vm1424, %v1838, %v1755
      %v1847 = vsel %vm1424, %v1839, %v1757
      %v1848 = vsel %vm1424, %v1840, %v1759
      %v1849 = vsel %vm1424, %v1841, %v1761
      %v1850 = vsel %vm1433, %v1747, %v1779
      %v1851 = vsel %vm1433, %v1749, %v1781
      %v1852 = vsel %vm1433, %v1751, %v1783
      %v1853 = vsel %vm1433, %v1753, %v1785
      %v1854 = vsel %vm1433, %v1755, %v1787
      %v1855 = vsel %vm1433, %v1757, %v1789
      %v1856 = vsel %vm1433, %v1759, %v1791
      %v1857 = vsel %vm1433, %v1761, %v1793
      %v1858 = vsel %vm1442, %v1850, %v1811
      %v1859 = vsel %vm1442, %v1851, %v1813
      %v1860 = vsel %vm1442, %v1852, %v1815
      %v1861 = vsel %vm1442, %v1853, %v1817
      %v1862 = vsel %vm1442, %v1854, %v1819
      %v1863 = vsel %vm1442, %v1855, %v1821
      %v1864 = vsel %vm1442, %v1856, %v1823
      %v1865 = vsel %vm1442, %v1857, %v1825
      %s1866 = scalar_lea.vmem %s3, 480
      %v1867 = vld [vmem:[%s1866] sm:$0xff]
      %v1868 = vld [vmem:[%s1866 + $0x8] sm:$0xff]
      %v1869 = vld [vmem:[%s1866 + $0x10] sm:$0xff]
      %v1870 = vld [vmem:[%s1866 + $0x18] sm:$0xff]
      %v1871 = vld [vmem:[%s1866 + $0x20] sm:$0xff]
      %v1872 = vld [vmem:[%s1866 + $0x28] sm:$0xff]
      %v1873 = vld [vmem:[%s1866 + $0x30] sm:$0xff]
      %v1874 = vld [vmem:[%s1866 + $0x38] sm:$0xff]
      %v1875 = vld [vmem:[%s1866 + $0x40] sm:$0xff]
      %v1876 = vld [vmem:[%s1866 + $0x48] sm:$0xff]
      %v1877 = vld [vmem:[%s1866 + $0x50] sm:$0xff]
      %v1878 = vld [vmem:[%s1866 + $0x58] sm:$0xff]
      %v1879 = vld [vmem:[%s1866 + $0x60] sm:$0xff]
      %v1880 = vld [vmem:[%s1866 + $0x68] sm:$0xff]
      %v1881 = vld [vmem:[%s1866 + $0x70] sm:$0xff]
      %v1882 = vld [vmem:[%s1866 + $0x78] sm:$0xff]
      %v1883 = vld [vmem:[%s1866 + $0x80] sm:$0xff]
      %v1884 = vld [vmem:[%s1866 + $0x88] sm:$0xff]
      %v1885 = vld [vmem:[%s1866 + $0x90] sm:$0xff]
      %v1886 = vld [vmem:[%s1866 + $0x98] sm:$0xff]
      %v1887 = vld [vmem:[%s1866 + $0xa0] sm:$0xff]
      %v1888 = vld [vmem:[%s1866 + $0xa8] sm:$0xff]
      %v1889 = vld [vmem:[%s1866 + $0xb0] sm:$0xff]
      %v1890 = vld [vmem:[%s1866 + $0xb8] sm:$0xff]
      %v1891 = vld [vmem:[%s1866 + $0xc0] sm:$0xff]
      %v1892 = vld [vmem:[%s1866 + $0xc8] sm:$0xff]
      %v1893 = vld [vmem:[%s1866 + $0xd0] sm:$0xff]
      %v1894 = vld [vmem:[%s1866 + $0xd8] sm:$0xff]
      %v1895 = vld [vmem:[%s1866 + $0xe0] sm:$0xff]
      %v1896 = vld [vmem:[%s1866 + $0xe8] sm:$0xff]
      %v1897 = vld [vmem:[%s1866 + $0xf0] sm:$0xff]
      %v1898 = vld [vmem:[%s1866 + $0xf8] sm:$0xff]
      %v1899 = vld [vmem:[%s1866 + $0x100] sm:$0xff]
      %v1900 = vld [vmem:[%s1866 + $0x108] sm:$0xff]
      %v1901 = vld [vmem:[%s1866 + $0x110] sm:$0xff]
      %v1902 = vld [vmem:[%s1866 + $0x118] sm:$0xff]
      %v1903 = vld [vmem:[%s1866 + $0x120] sm:$0xff]
      %v1904 = vld [vmem:[%s1866 + $0x128] sm:$0xff]
      %v1905 = vld [vmem:[%s1866 + $0x130] sm:$0xff]
      %v1906 = vld [vmem:[%s1866 + $0x138] sm:$0xff]
      %v1907 = vld [vmem:[%s1866 + $0x140] sm:$0xff]
      %v1908 = vld [vmem:[%s1866 + $0x148] sm:$0xff]
      %v1909 = vld [vmem:[%s1866 + $0x150] sm:$0xff]
      %v1910 = vld [vmem:[%s1866 + $0x158] sm:$0xff]
      %v1911 = vld [vmem:[%s1866 + $0x160] sm:$0xff]
      %v1912 = vld [vmem:[%s1866 + $0x168] sm:$0xff]
      %v1913 = vld [vmem:[%s1866 + $0x170] sm:$0xff]
      %v1914 = vld [vmem:[%s1866 + $0x178] sm:$0xff]
      %v1915 = vld [vmem:[%s1866 + $0x180] sm:$0xff]
      %v1916 = vld [vmem:[%s1866 + $0x188] sm:$0xff]
      %v1917 = vld [vmem:[%s1866 + $0x190] sm:$0xff]
      %v1918 = vld [vmem:[%s1866 + $0x198] sm:$0xff]
      %v1919 = vld [vmem:[%s1866 + $0x1a0] sm:$0xff]
      %v1920 = vld [vmem:[%s1866 + $0x1a8] sm:$0xff]
      %v1921 = vld [vmem:[%s1866 + $0x1b0] sm:$0xff]
      %v1922 = vld [vmem:[%s1866 + $0x1b8] sm:$0xff]
      %v1923 = vld [vmem:[%s1866 + $0x1c0] sm:$0xff]
      %v1924 = vld [vmem:[%s1866 + $0x1c8] sm:$0xff]
      %v1925 = vld [vmem:[%s1866 + $0x1d0] sm:$0xff]
      %v1926 = vld [vmem:[%s1866 + $0x1d8] sm:$0xff]
      %v1928 = vsel %vm1511, %v1858, 0
      %v1931 = vsel %vm1511, %v1859, 0
      %v1934 = vsel %vm1511, %v1860, 0
      %v1937 = vsel %vm1511, %v1861, 0
      %v1940 = vsel %vm1511, %v1862, 0
      %v1943 = vsel %vm1511, %v1863, 0
      %v1946 = vsel %vm1511, %v1864, 0
      %v1949 = vsel %vm1511, %v1865, 0
      %1951 = vmatprep.subr.mxu0 %v1868
      %1952 = vmatpush1.msra.mxu0 %v1867
      %1953 = vmatprep.subr.mxu0 %v1870
      %1954 = vmatpush1.msra.mxu0 %v1869
      %1955 = vmatprep.subr.mxu0 %v1872
      %1956 = vmatpush1.msra.mxu0 %v1871
      %1957 = vmatprep.subr.mxu0 %v1874
      %1958 = vmatpush1.msra.mxu0 %v1873
      %1959 = vmatprep.subr.mxu0 %v1876
      %1960 = vmatpush1.msra.mxu0 %v1875
      %1961 = vmatprep.subr.mxu0 %v1878
      %1962 = vmatpush1.msra.mxu0 %v1877
      %1963 = vmatprep.subr.mxu0 %v1880
      %1964 = vmatpush1.msra.mxu0 %v1879
      %1965 = vmatprep.subr.mxu0 %v1882
      %1966 = vmatpush1.msra.mxu0 %v1881
      %1967 = vmatprep.subr.mxu0 %v1884
      %1968 = vmatpush1.msra.mxu0 %v1883
      %1969 = vmatprep.subr.mxu0 %v1886
      %1970 = vmatpush1.msra.mxu0 %v1885
      %1971 = vmatprep.subr.mxu0 %v1888
      %1972 = vmatpush1.msra.mxu0 %v1887
      %1973 = vmatprep.subr.mxu0 %v1890
      %1974 = vmatpush1.msra.mxu0 %v1889
      %1975 = vmatprep.subr.mxu0 %v1892
      %1976 = vmatpush1.msra.mxu0 %v1891
      %1977 = vmatprep.subr.mxu0 %v1894
      %1978 = vmatpush1.msra.mxu0 %v1893
      %1979 = vmatprep.subr.mxu0 %v1896
      %1980 = vmatpush1.msra.mxu0 %v1895
      %1981 = vmatprep.subr.mxu0 %v1898
      %1982 = vmatpush1.msra.mxu0 %v1897
      %1983 = vmatprep.subr.mxu0 %v1900
      %1984 = vmatpush1.msra.mxu0 %v1899
      %1985 = vmatprep.subr.mxu0 %v1902
      %1986 = vmatpush1.msra.mxu0 %v1901
      %1987 = vmatprep.subr.mxu0 %v1904
      %1988 = vmatpush1.msra.mxu0 %v1903
      %1989 = vmatprep.subr.mxu0 %v1906
      %1990 = vmatpush1.msra.mxu0 %v1905
      %1991 = vmatprep.subr.mxu0 %v1908
      %1992 = vmatpush1.msra.mxu0 %v1907
      %1993 = vmatprep.subr.mxu0 %v1910
      %1994 = vmatpush1.msra.mxu0 %v1909
      %1995 = vmatprep.subr.mxu0 %v1912
      %1996 = vmatpush1.msra.mxu0 %v1911
      %1997 = vmatprep.subr.mxu0 %v1914
      %1998 = vmatpush1.msra.mxu0 %v1913
      %1999 = vmatprep.subr.mxu0 %v1916
      %2000 = vmatpush1.msra.mxu0 %v1915
      %2001 = vmatprep.subr.mxu0 %v1918
      %2002 = vmatpush1.msra.mxu0 %v1917
      %2003 = vmatprep.subr.mxu0 %v1920
      %2004 = vmatpush1.msra.mxu0 %v1919
      %2005 = vmatprep.subr.mxu0 %v1922
      %2006 = vmatpush1.msra.mxu0 %v1921
      %2007 = vmatprep.subr.mxu0 %v1924
      %2008 = vmatpush1.msra.mxu0 %v1923
      %2009 = vmatprep.subr.mxu0 %v1926
      %2010 = vmatpush1.msra.mxu0 %v1925
      %2011 = vmatprep.subr.mxu0 0.0
      %2012 = vmatpush1.msra.mxu0 0.0
      %2013 = vmatprep.subr.mxu0 0.0
      %2014 = vmatpush1.msra.mxu0 0.0
      %2015 = vmatprep.mubr.f32.mxu0 %v1928
      %2016 = vmatmul.mubr.f32.gmra.mrb[0].mxu0 %v1842
      %v2017 = vpop.f32.mrb[0].mxu0
      %v2018 = vadd.f32 0.0, %v2017
      %v2019 = vpop.f32.mrb[0].mxu0
      %v2020 = vadd.f32 0.0, %v2019
      %2021 = vmatprep.mubr.f32.mxu0 %v1931
      %2022 = vmatmul.mubr.f32.gmra.mrb[0].mxu0 %v1843
      %v2023 = vpop.f32.mrb[0].mxu0
      %v2024 = vadd.f32 0.0, %v2023
      %v2025 = vpop.f32.mrb[0].mxu0
      %v2026 = vadd.f32 0.0, %v2025
      %2027 = vmatprep.mubr.f32.mxu0 %v1934
      %2028 = vmatmul.mubr.f32.gmra.mrb[0].mxu0 %v1844
      %v2029 = vpop.f32.mrb[0].mxu0
      %v2030 = vadd.f32 0.0, %v2029
      %v2031 = vpop.f32.mrb[0].mxu0
      %v2032 = vadd.f32 0.0, %v2031
      %2033 = vmatprep.mubr.f32.mxu0 %v1937
      %2034 = vmatmul.mubr.f32.gmra.mrb[0].mxu0 %v1845
      %v2035 = vpop.f32.mrb[0].mxu0
      %v2036 = vadd.f32 0.0, %v2035
      %v2037 = vpop.f32.mrb[0].mxu0
      %v2038 = vadd.f32 0.0, %v2037
      %2039 = vmatprep.mubr.f32.mxu0 %v1940
      %2040 = vmatmul.mubr.f32.gmra.mrb[0].mxu0 %v1846
      %v2041 = vpop.f32.mrb[0].mxu0
      %v2042 = vadd.f32 0.0, %v2041
      %v2043 = vpop.f32.mrb[0].mxu0
      %v2044 = vadd.f32 0.0, %v2043
      %2045 = vmatprep.mubr.f32.mxu0 %v1943
      %2046 = vmatmul.mubr.f32.gmra.mrb[0].mxu0 %v1847
      %v2047 = vpop.f32.mrb[0].mxu0
      %v2048 = vadd.f32 0.0, %v2047
      %v2049 = vpop.f32.mrb[0].mxu0
      %v2050 = vadd.f32 0.0, %v2049
      %2051 = vmatprep.mubr.f32.mxu0 %v1946
      %2052 = vmatmul.mubr.f32.gmra.mrb[0].mxu0 %v1848
      %v2053 = vpop.f32.mrb[0].mxu0
      %v2054 = vadd.f32 0.0, %v2053
      %v2055 = vpop.f32.mrb[0].mxu0
      %v2056 = vadd.f32 0.0, %v2055
      %2057 = vmatprep.mubr.f32.mxu0 %v1949
      %2058 = vmatmul.mubr.f32.gmra.mrb[0].mxu0 %v1849
      %v2059 = vpop.f32.mrb[0].mxu0
      %v2060 = vadd.f32 0.0, %v2059
      %v2061 = vpop.f32.mrb[0].mxu0
      %v2062 = vadd.f32 0.0, %v2061
      %2063 = vdwg.mxu0
      %v2064 = vadd.f32 %v1649, %v2018
      %v2065 = vadd.f32 %v1650, %v2020
      %v2066 = vadd.f32 %v1651, %v2024
      %v2067 = vadd.f32 %v1652, %v2026
      %v2068 = vadd.f32 %v1653, %v2030
      %v2069 = vadd.f32 %v1654, %v2032
      %v2070 = vadd.f32 %v1655, %v2036
      %v2071 = vadd.f32 %v1656, %v2038
      %v2072 = vadd.f32 %v1657, %v2042
      %v2073 = vadd.f32 %v1658, %v2044
      %v2074 = vadd.f32 %v1659, %v2048
      %v2075 = vadd.f32 %v1660, %v2050
      %v2076 = vadd.f32 %v1661, %v2054
      %v2077 = vadd.f32 %v1662, %v2056
      %v2078 = vadd.f32 %v1663, %v2060
      %v2079 = vadd.f32 %v1664, %v2062
      %s2080 = scalar_lea.vmem [#allocation2], 48
      %v2081 = vld [vmem:[%s2080] sm:$0xff]
      %v2082 = vld [vmem:[%s2080 + $0x8] sm:$0xff]
      %v2083 = vld [vmem:[%s2080 + $0x18] sm:$0xff]
      %v2084 = vld [vmem:[%s2080 + $0x20] sm:$0xff]
      %v2085 = vld [vmem:[%s2080 + $0x30] sm:$0xff]
      %v2086 = vld [vmem:[%s2080 + $0x38] sm:$0xff]
      %v2087 = vld [vmem:[%s2080 + $0x48] sm:$0xff]
      %v2088 = vld [vmem:[%s2080 + $0x50] sm:$0xff]
      %v2089 = vld [vmem:[%s2080 + $0x1] sm:$0xff]
      %v2090 = vld [vmem:[%s2080 + $0x9] sm:$0xff]
      %v2091 = vld [vmem:[%s2080 + $0x19] sm:$0xff]
      %v2092 = vld [vmem:[%s2080 + $0x21] sm:$0xff]
      %v2093 = vld [vmem:[%s2080 + $0x31] sm:$0xff]
      %v2094 = vld [vmem:[%s2080 + $0x39] sm:$0xff]
      %v2095 = vld [vmem:[%s2080 + $0x49] sm:$0xff]
      %v2096 = vld [vmem:[%s2080 + $0x51] sm:$0xff]
      %v2097 = vld [vmem:[%s2080 + $0x2] sm:$0xff]
      %v2098 = vld [vmem:[%s2080 + $0xa] sm:$0xff]
      %v2099 = vld [vmem:[%s2080 + $0x1a] sm:$0xff]
      %v2100 = vld [vmem:[%s2080 + $0x22] sm:$0xff]
      %v2101 = vld [vmem:[%s2080 + $0x32] sm:$0xff]
      %v2102 = vld [vmem:[%s2080 + $0x3a] sm:$0xff]
      %v2103 = vld [vmem:[%s2080 + $0x4a] sm:$0xff]
      %v2104 = vld [vmem:[%s2080 + $0x52] sm:$0xff]
      %v2105 = vld [vmem:[%s2080 + $0x3] sm:$0xff]
      %v2106 = vld [vmem:[%s2080 + $0xb] sm:$0xff]
      %v2107 = vld [vmem:[%s2080 + $0x1b] sm:$0xff]
      %v2108 = vld [vmem:[%s2080 + $0x23] sm:$0xff]
      %v2109 = vld [vmem:[%s2080 + $0x33] sm:$0xff]
      %v2110 = vld [vmem:[%s2080 + $0x3b] sm:$0xff]
      %v2111 = vld [vmem:[%s2080 + $0x4b] sm:$0xff]
      %v2112 = vld [vmem:[%s2080 + $0x53] sm:$0xff]
      %v2113 = vld [vmem:[%s2080 + $0x4] sm:$0xff]
      %v2114 = vld [vmem:[%s2080 + $0xc] sm:$0xff]
      %v2115 = vld [vmem:[%s2080 + $0x1c] sm:$0xff]
      %v2116 = vld [vmem:[%s2080 + $0x24] sm:$0xff]
      %v2117 = vld [vmem:[%s2080 + $0x34] sm:$0xff]
      %v2118 = vld [vmem:[%s2080 + $0x3c] sm:$0xff]
      %v2119 = vld [vmem:[%s2080 + $0x4c] sm:$0xff]
      %v2120 = vld [vmem:[%s2080 + $0x54] sm:$0xff]
      %2129 = vrot.lane.b32.xlu0 %v2089, 48
      %v2130 = vpop.permute.xlu0 %2129
      %2131 = vrot.lane.b32.xlu0 %v2090, 48
      %v2132 = vpop.permute.xlu0 %2131
      %2133 = vrot.lane.b32.xlu0 %v2091, 48
      %v2134 = vpop.permute.xlu0 %2133
      %2135 = vrot.lane.b32.xlu0 %v2092, 48
      %v2136 = vpop.permute.xlu0 %2135
      %2137 = vrot.lane.b32.xlu0 %v2093, 48
      %v2138 = vpop.permute.xlu0 %2137
      %2139 = vrot.lane.b32.xlu0 %v2094, 48
      %v2140 = vpop.permute.xlu0 %2139
      %2141 = vrot.lane.b32.xlu0 %v2095, 48
      %v2142 = vpop.permute.xlu0 %2141
      %2143 = vrot.lane.b32.xlu0 %v2096, 48
      %v2144 = vpop.permute.xlu0 %2143
      %2161 = vrot.lane.b32.xlu0 %v2097, 96
      %v2162 = vpop.permute.xlu0 %2161
      %2163 = vrot.lane.b32.xlu0 %v2098, 96
      %v2164 = vpop.permute.xlu0 %2163
      %2165 = vrot.lane.b32.xlu0 %v2099, 96
      %v2166 = vpop.permute.xlu0 %2165
      %2167 = vrot.lane.b32.xlu0 %v2100, 96
      %v2168 = vpop.permute.xlu0 %2167
      %2169 = vrot.lane.b32.xlu0 %v2101, 96
      %v2170 = vpop.permute.xlu0 %2169
      %2171 = vrot.lane.b32.xlu0 %v2102, 96
      %v2172 = vpop.permute.xlu0 %2171
      %2173 = vrot.lane.b32.xlu0 %v2103, 96
      %v2174 = vpop.permute.xlu0 %2173
      %2175 = vrot.lane.b32.xlu0 %v2104, 96
      %v2176 = vpop.permute.xlu0 %2175
      %2193 = vrot.lane.b32.xlu0 %v2105, 16
      %v2194 = vpop.permute.xlu0 %2193
      %2195 = vrot.lane.b32.xlu0 %v2106, 16
      %v2196 = vpop.permute.xlu0 %2195
      %2197 = vrot.lane.b32.xlu0 %v2107, 16
      %v2198 = vpop.permute.xlu0 %2197
      %2199 = vrot.lane.b32.xlu0 %v2108, 16
      %v2200 = vpop.permute.xlu0 %2199
      %2201 = vrot.lane.b32.xlu0 %v2109, 16
      %v2202 = vpop.permute.xlu0 %2201
      %2203 = vrot.lane.b32.xlu0 %v2110, 16
      %v2204 = vpop.permute.xlu0 %2203
      %2205 = vrot.lane.b32.xlu0 %v2111, 16
      %v2206 = vpop.permute.xlu0 %2205
      %2207 = vrot.lane.b32.xlu0 %v2112, 16
      %v2208 = vpop.permute.xlu0 %2207
      %2225 = vrot.lane.b32.xlu0 %v2113, 64
      %v2226 = vpop.permute.xlu0 %2225
      %2227 = vrot.lane.b32.xlu0 %v2114, 64
      %v2228 = vpop.permute.xlu0 %2227
      %2229 = vrot.lane.b32.xlu0 %v2115, 64
      %v2230 = vpop.permute.xlu0 %2229
      %2231 = vrot.lane.b32.xlu0 %v2116, 64
      %v2232 = vpop.permute.xlu0 %2231
      %2233 = vrot.lane.b32.xlu0 %v2117, 64
      %v2234 = vpop.permute.xlu0 %2233
      %2235 = vrot.lane.b32.xlu0 %v2118, 64
      %v2236 = vpop.permute.xlu0 %2235
      %2237 = vrot.lane.b32.xlu0 %v2119, 64
      %v2238 = vpop.permute.xlu0 %2237
      %2239 = vrot.lane.b32.xlu0 %v2120, 64
      %v2240 = vpop.permute.xlu0 %2239
      %v2249 = vsel %vm1208, %v2081, %v2130
      %v2250 = vsel %vm1208, %v2082, %v2132
      %v2251 = vsel %vm1208, %v2083, %v2134
      %v2252 = vsel %vm1208, %v2084, %v2136
      %v2253 = vsel %vm1208, %v2085, %v2138
      %v2254 = vsel %vm1208, %v2086, %v2140
      %v2255 = vsel %vm1208, %v2087, %v2142
      %v2256 = vsel %vm1208, %v2088, %v2144
      %v2257 = vsel %vm1424, %v2249, %v2162
      %v2258 = vsel %vm1424, %v2250, %v2164
      %v2259 = vsel %vm1424, %v2251, %v2166
      %v2260 = vsel %vm1424, %v2252, %v2168
      %v2261 = vsel %vm1424, %v2253, %v2170
      %v2262 = vsel %vm1424, %v2254, %v2172
      %v2263 = vsel %vm1424, %v2255, %v2174
      %v2264 = vsel %vm1424, %v2256, %v2176
      %v2265 = vsel %vm1433, %v2162, %v2194
      %v2266 = vsel %vm1433, %v2164, %v2196
      %v2267 = vsel %vm1433, %v2166, %v2198
      %v2268 = vsel %vm1433, %v2168, %v2200
      %v2269 = vsel %vm1433, %v2170, %v2202
      %v2270 = vsel %vm1433, %v2172, %v2204
      %v2271 = vsel %vm1433, %v2174, %v2206
      %v2272 = vsel %vm1433, %v2176, %v2208
      %v2273 = vsel %vm1442, %v2265, %v2226
      %v2274 = vsel %vm1442, %v2266, %v2228
      %v2275 = vsel %vm1442, %v2267, %v2230
      %v2276 = vsel %vm1442, %v2268, %v2232
      %v2277 = vsel %vm1442, %v2269, %v2234
      %v2278 = vsel %vm1442, %v2270, %v2236
      %v2279 = vsel %vm1442, %v2271, %v2238
      %v2280 = vsel %vm1442, %v2272, %v2240
      %s2281 = scalar_lea.vmem %s3, 960
      %v2282 = vld [vmem:[%s2281] sm:$0xff]
      %v2283 = vld [vmem:[%s2281 + $0x8] sm:$0xff]
      %v2284 = vld [vmem:[%s2281 + $0x10] sm:$0xff]
      %v2285 = vld [vmem:[%s2281 + $0x18] sm:$0xff]
      %v2286 = vld [vmem:[%s2281 + $0x20] sm:$0xff]
      %v2287 = vld [vmem:[%s2281 + $0x28] sm:$0xff]
      %v2288 = vld [vmem:[%s2281 + $0x30] sm:$0xff]
      %v2289 = vld [vmem:[%s2281 + $0x38] sm:$0xff]
      %v2290 = vld [vmem:[%s2281 + $0x40] sm:$0xff]
      %v2291 = vld [vmem:[%s2281 + $0x48] sm:$0xff]
      %v2292 = vld [vmem:[%s2281 + $0x50] sm:$0xff]
      %v2293 = vld [vmem:[%s2281 + $0x58] sm:$0xff]
      %v2294 = vld [vmem:[%s2281 + $0x60] sm:$0xff]
      %v2295 = vld [vmem:[%s2281 + $0x68] sm:$0xff]
      %v2296 = vld [vmem:[%s2281 + $0x70] sm:$0xff]
      %v2297 = vld [vmem:[%s2281 + $0x78] sm:$0xff]
      %v2298 = vld [vmem:[%s2281 + $0x80] sm:$0xff]
      %v2299 = vld [vmem:[%s2281 + $0x88] sm:$0xff]
      %v2300 = vld [vmem:[%s2281 + $0x90] sm:$0xff]
      %v2301 = vld [vmem:[%s2281 + $0x98] sm:$0xff]
      %v2302 = vld [vmem:[%s2281 + $0xa0] sm:$0xff]
      %v2303 = vld [vmem:[%s2281 + $0xa8] sm:$0xff]
      %v2304 = vld [vmem:[%s2281 + $0xb0] sm:$0xff]
      %v2305 = vld [vmem:[%s2281 + $0xb8] sm:$0xff]
      %v2306 = vld [vmem:[%s2281 + $0xc0] sm:$0xff]
      %v2307 = vld [vmem:[%s2281 + $0xc8] sm:$0xff]
      %v2308 = vld [vmem:[%s2281 + $0xd0] sm:$0xff]
      %v2309 = vld [vmem:[%s2281 + $0xd8] sm:$0xff]
      %v2310 = vld [vmem:[%s2281 + $0xe0] sm:$0xff]
      %v2311 = vld [vmem:[%s2281 + $0xe8] sm:$0xff]
      %v2312 = vld [vmem:[%s2281 + $0xf0] sm:$0xff]
      %v2313 = vld [vmem:[%s2281 + $0xf8] sm:$0xff]
      %v2314 = vld [vmem:[%s2281 + $0x100] sm:$0xff]
      %v2315 = vld [vmem:[%s2281 + $0x108] sm:$0xff]
      %v2316 = vld [vmem:[%s2281 + $0x110] sm:$0xff]
      %v2317 = vld [vmem:[%s2281 + $0x118] sm:$0xff]
      %v2318 = vld [vmem:[%s2281 + $0x120] sm:$0xff]
      %v2319 = vld [vmem:[%s2281 + $0x128] sm:$0xff]
      %v2320 = vld [vmem:[%s2281 + $0x130] sm:$0xff]
      %v2321 = vld [vmem:[%s2281 + $0x138] sm:$0xff]
      %v2322 = vld [vmem:[%s2281 + $0x140] sm:$0xff]
      %v2323 = vld [vmem:[%s2281 + $0x148] sm:$0xff]
      %v2324 = vld [vmem:[%s2281 + $0x150] sm:$0xff]
      %v2325 = vld [vmem:[%s2281 + $0x158] sm:$0xff]
      %v2326 = vld [vmem:[%s2281 + $0x160] sm:$0xff]
      %v2327 = vld [vmem:[%s2281 + $0x168] sm:$0xff]
      %v2328 = vld [vmem:[%s2281 + $0x170] sm:$0xff]
      %v2329 = vld [vmem:[%s2281 + $0x178] sm:$0xff]
      %v2330 = vld [vmem:[%s2281 + $0x180] sm:$0xff]
      %v2331 = vld [vmem:[%s2281 + $0x188] sm:$0xff]
      %v2332 = vld [vmem:[%s2281 + $0x190] sm:$0xff]
      %v2333 = vld [vmem:[%s2281 + $0x198] sm:$0xff]
      %v2334 = vld [vmem:[%s2281 + $0x1a0] sm:$0xff]
      %v2335 = vld [vmem:[%s2281 + $0x1a8] sm:$0xff]
      %v2336 = vld [vmem:[%s2281 + $0x1b0] sm:$0xff]
      %v2337 = vld [vmem:[%s2281 + $0x1b8] sm:$0xff]
      %v2338 = vld [vmem:[%s2281 + $0x1c0] sm:$0xff]
      %v2339 = vld [vmem:[%s2281 + $0x1c8] sm:$0xff]
      %v2340 = vld [vmem:[%s2281 + $0x1d0] sm:$0xff]
      %v2341 = vld [vmem:[%s2281 + $0x1d8] sm:$0xff]
      %v2343 = vsel %vm1511, %v2273, 0
      %v2346 = vsel %vm1511, %v2274, 0
      %v2349 = vsel %vm1511, %v2275, 0
      %v2352 = vsel %vm1511, %v2276, 0
      %v2355 = vsel %vm1511, %v2277, 0
      %v2358 = vsel %vm1511, %v2278, 0
      %v2361 = vsel %vm1511, %v2279, 0
      %v2364 = vsel %vm1511, %v2280, 0
      %2366 = vmatprep.subr.mxu0 %v2283
      %2367 = vmatpush1.msra.mxu0 %v2282
      %2368 = vmatprep.subr.mxu0 %v2285
      %2369 = vmatpush1.msra.mxu0 %v2284
      %2370 = vmatprep.subr.mxu0 %v2287
      %2371 = vmatpush1.msra.mxu0 %v2286
      %2372 = vmatprep.subr.mxu0 %v2289
      %2373 = vmatpush1.msra.mxu0 %v2288
      %2374 = vmatprep.subr.mxu0 %v2291
      %2375 = vmatpush1.msra.mxu0 %v2290
      %2376 = vmatprep.subr.mxu0 %v2293
      %2377 = vmatpush1.msra.mxu0 %v2292
      %2378 = vmatprep.subr.mxu0 %v2295
      %2379 = vmatpush1.msra.mxu0 %v2294
      %2380 = vmatprep.subr.mxu0 %v2297
      %2381 = vmatpush1.msra.mxu0 %v2296
      %2382 = vmatprep.subr.mxu0 %v2299
      %2383 = vmatpush1.msra.mxu0 %v2298
      %2384 = vmatprep.subr.mxu0 %v2301
      %2385 = vmatpush1.msra.mxu0 %v2300
      %2386 = vmatprep.subr.mxu0 %v2303
      %2387 = vmatpush1.msra.mxu0 %v2302
      %2388 = vmatprep.subr.mxu0 %v2305
      %2389 = vmatpush1.msra.mxu0 %v2304
      %2390 = vmatprep.subr.mxu0 %v2307
      %2391 = vmatpush1.msra.mxu0 %v2306
      %2392 = vmatprep.subr.mxu0 %v2309
      %2393 = vmatpush1.msra.mxu0 %v2308
      %2394 = vmatprep.subr.mxu0 %v2311
      %2395 = vmatpush1.msra.mxu0 %v2310
      %2396 = vmatprep.subr.mxu0 %v2313
      %2397 = vmatpush1.msra.mxu0 %v2312
      %2398 = vmatprep.subr.mxu0 %v2315
      %2399 = vmatpush1.msra.mxu0 %v2314
      %2400 = vmatprep.subr.mxu0 %v2317
      %2401 = vmatpush1.msra.mxu0 %v2316
      %2402 = vmatprep.subr.mxu0 %v2319
      %2403 = vmatpush1.msra.mxu0 %v2318
      %2404 = vmatprep.subr.mxu0 %v2321
      %2405 = vmatpush1.msra.mxu0 %v2320
      %2406 = vmatprep.subr.mxu0 %v2323
      %2407 = vmatpush1.msra.mxu0 %v2322
      %2408 = vmatprep.subr.mxu0 %v2325
      %2409 = vmatpush1.msra.mxu0 %v2324
      %2410 = vmatprep.subr.mxu0 %v2327
      %2411 = vmatpush1.msra.mxu0 %v2326
      %2412 = vmatprep.subr.mxu0 %v2329
      %2413 = vmatpush1.msra.mxu0 %v2328
      %2414 = vmatprep.subr.mxu0 %v2331
      %2415 = vmatpush1.msra.mxu0 %v2330
      %2416 = vmatprep.subr.mxu0 %v2333
      %2417 = vmatpush1.msra.mxu0 %v2332
      %2418 = vmatprep.subr.mxu0 %v2335
      %2419 = vmatpush1.msra.mxu0 %v2334
      %2420 = vmatprep.subr.mxu0 %v2337
      %2421 = vmatpush1.msra.mxu0 %v2336
      %2422 = vmatprep.subr.mxu0 %v2339
      %2423 = vmatpush1.msra.mxu0 %v2338
      %2424 = vmatprep.subr.mxu0 %v2341
      %2425 = vmatpush1.msra.mxu0 %v2340
      %2426 = vmatprep.subr.mxu0 0.0
      %2427 = vmatpush1.msra.mxu0 0.0
      %2428 = vmatprep.subr.mxu0 0.0
      %2429 = vmatpush1.msra.mxu0 0.0
      %2430 = vmatprep.mubr.f32.mxu0 %v2343
      %2431 = vmatmul.mubr.f32.gmra.mrb[0].mxu0 %v2257
      %v2432 = vpop.f32.mrb[0].mxu0
      %v2433 = vadd.f32 0.0, %v2432
      %v2434 = vpop.f32.mrb[0].mxu0
      %v2435 = vadd.f32 0.0, %v2434
      %2436 = vmatprep.mubr.f32.mxu0 %v2346
      %2437 = vmatmul.mubr.f32.gmra.mrb[0].mxu0 %v2258
      %v2438 = vpop.f32.mrb[0].mxu0
      %v2439 = vadd.f32 0.0, %v2438
      %v2440 = vpop.f32.mrb[0].mxu0
      %v2441 = vadd.f32 0.0, %v2440
      %2442 = vmatprep.mubr.f32.mxu0 %v2349
      %2443 = vmatmul.mubr.f32.gmra.mrb[0].mxu0 %v2259
      %v2444 = vpop.f32.mrb[0].mxu0
      %v2445 = vadd.f32 0.0, %v2444
      %v2446 = vpop.f32.mrb[0].mxu0
      %v2447 = vadd.f32 0.0, %v2446
      %2448 = vmatprep.mubr.f32.mxu0 %v2352
      %2449 = vmatmul.mubr.f32.gmra.mrb[0].mxu0 %v2260
      %v2450 = vpop.f32.mrb[0].mxu0
      %v2451 = vadd.f32 0.0, %v2450
      %v2452 = vpop.f32.mrb[0].mxu0
      %v2453 = vadd.f32 0.0, %v2452
      %2454 = vmatprep.mubr.f32.mxu0 %v2355
      %2455 = vmatmul.mubr.f32.gmra.mrb[0].mxu0 %v2261
      %v2456 = vpop.f32.mrb[0].mxu0
      %v2457 = vadd.f32 0.0, %v2456
      %v2458 = vpop.f32.mrb[0].mxu0
      %v2459 = vadd.f32 0.0, %v2458
      %2460 = vmatprep.mubr.f32.mxu0 %v2358
      %2461 = vmatmul.mubr.f32.gmra.mrb[0].mxu0 %v2262
      %v2462 = vpop.f32.mrb[0].mxu0
      %v2463 = vadd.f32 0.0, %v2462
      %v2464 = vpop.f32.mrb[0].mxu0
      %v2465 = vadd.f32 0.0, %v2464
      %2466 = vmatprep.mubr.f32.mxu0 %v2361
      %2467 = vmatmul.mubr.f32.gmra.mrb[0].mxu0 %v2263
      %v2468 = vpop.f32.mrb[0].mxu0
      %v2469 = vadd.f32 0.0, %v2468
      %v2470 = vpop.f32.mrb[0].mxu0
      %v2471 = vadd.f32 0.0, %v2470
      %2472 = vmatprep.mubr.f32.mxu0 %v2364
      %2473 = vmatmul.mubr.f32.gmra.mrb[0].mxu0 %v2264
      %v2474 = vpop.f32.mrb[0].mxu0
      %v2475 = vadd.f32 0.0, %v2474
      %v2476 = vpop.f32.mrb[0].mxu0
      %v2477 = vadd.f32 0.0, %v2476
      %2478 = vdwg.mxu0
      %v2479 = vadd.f32 %v2064, %v2433
      %v2480 = vadd.f32 %v2065, %v2435
      %v2481 = vadd.f32 %v2066, %v2439
      %v2482 = vadd.f32 %v2067, %v2441
      %v2483 = vadd.f32 %v2068, %v2445
      %v2484 = vadd.f32 %v2069, %v2447
      %v2485 = vadd.f32 %v2070, %v2451
      %v2486 = vadd.f32 %v2071, %v2453
      %v2487 = vadd.f32 %v2072, %v2457
      %v2488 = vadd.f32 %v2073, %v2459
      %v2489 = vadd.f32 %v2074, %v2463
      %v2490 = vadd.f32 %v2075, %v2465
      %v2491 = vadd.f32 %v2076, %v2469
      %v2492 = vadd.f32 %v2077, %v2471
      %v2493 = vadd.f32 %v2078, %v2475
      %v2494 = vadd.f32 %v2079, %v2477
      %s2495 = scalar_lea.vmem [#allocation2], 72
      %v2496 = vld [vmem:[%s2495] sm:$0xff]
      %v2497 = vld [vmem:[%s2495 + $0x8] sm:$0xff]
      %v2498 = vld [vmem:[%s2495 + $0x18] sm:$0xff]
      %v2499 = vld [vmem:[%s2495 + $0x20] sm:$0xff]
      %v2500 = vld [vmem:[%s2495 + $0x30] sm:$0xff]
      %v2501 = vld [vmem:[%s2495 + $0x38] sm:$0xff]
      %v2502 = vld [vmem:[%s2495 + $0x48] sm:$0xff]
      %v2503 = vld [vmem:[%s2495 + $0x50] sm:$0xff]
      %v2504 = vld [vmem:[%s2495 + $0x1] sm:$0xff]
      %v2505 = vld [vmem:[%s2495 + $0x9] sm:$0xff]
      %v2506 = vld [vmem:[%s2495 + $0x19] sm:$0xff]
      %v2507 = vld [vmem:[%s2495 + $0x21] sm:$0xff]
      %v2508 = vld [vmem:[%s2495 + $0x31] sm:$0xff]
      %v2509 = vld [vmem:[%s2495 + $0x39] sm:$0xff]
      %v2510 = vld [vmem:[%s2495 + $0x49] sm:$0xff]
      %v2511 = vld [vmem:[%s2495 + $0x51] sm:$0xff]
      %v2512 = vld [vmem:[%s2495 + $0x2] sm:$0xff]
      %v2513 = vld [vmem:[%s2495 + $0xa] sm:$0xff]
      %v2514 = vld [vmem:[%s2495 + $0x1a] sm:$0xff]
      %v2515 = vld [vmem:[%s2495 + $0x22] sm:$0xff]
      %v2516 = vld [vmem:[%s2495 + $0x32] sm:$0xff]
      %v2517 = vld [vmem:[%s2495 + $0x3a] sm:$0xff]
      %v2518 = vld [vmem:[%s2495 + $0x4a] sm:$0xff]
      %v2519 = vld [vmem:[%s2495 + $0x52] sm:$0xff]
      %v2520 = vld [vmem:[%s2495 + $0x3] sm:$0xff]
      %v2521 = vld [vmem:[%s2495 + $0xb] sm:$0xff]
      %v2522 = vld [vmem:[%s2495 + $0x1b] sm:$0xff]
      %v2523 = vld [vmem:[%s2495 + $0x23] sm:$0xff]
      %v2524 = vld [vmem:[%s2495 + $0x33] sm:$0xff]
      %v2525 = vld [vmem:[%s2495 + $0x3b] sm:$0xff]
      %v2526 = vld [vmem:[%s2495 + $0x4b] sm:$0xff]
      %v2527 = vld [vmem:[%s2495 + $0x53] sm:$0xff]
      %v2528 = vld [vmem:[%s2495 + $0x4] sm:$0xff]
      %v2529 = vld [vmem:[%s2495 + $0xc] sm:$0xff]
      %v2530 = vld [vmem:[%s2495 + $0x1c] sm:$0xff]
      %v2531 = vld [vmem:[%s2495 + $0x24] sm:$0xff]
      %v2532 = vld [vmem:[%s2495 + $0x34] sm:$0xff]
      %v2533 = vld [vmem:[%s2495 + $0x3c] sm:$0xff]
      %v2534 = vld [vmem:[%s2495 + $0x4c] sm:$0xff]
      %v2535 = vld [vmem:[%s2495 + $0x54] sm:$0xff]
      %2544 = vrot.lane.b32.xlu0 %v2504, 48
      %v2545 = vpop.permute.xlu0 %2544
      %2546 = vrot.lane.b32.xlu0 %v2505, 48
      %v2547 = vpop.permute.xlu0 %2546
      %2548 = vrot.lane.b32.xlu0 %v2506, 48
      %v2549 = vpop.permute.xlu0 %2548
      %2550 = vrot.lane.b32.xlu0 %v2507, 48
      %v2551 = vpop.permute.xlu0 %2550
      %2552 = vrot.lane.b32.xlu0 %v2508, 48
      %v2553 = vpop.permute.xlu0 %2552
      %2554 = vrot.lane.b32.xlu0 %v2509, 48
      %v2555 = vpop.permute.xlu0 %2554
      %2556 = vrot.lane.b32.xlu0 %v2510, 48
      %v2557 = vpop.permute.xlu0 %2556
      %2558 = vrot.lane.b32.xlu0 %v2511, 48
      %v2559 = vpop.permute.xlu0 %2558
      %2576 = vrot.lane.b32.xlu0 %v2512, 96
      %v2577 = vpop.permute.xlu0 %2576
      %2578 = vrot.lane.b32.xlu0 %v2513, 96
      %v2579 = vpop.permute.xlu0 %2578
      %2580 = vrot.lane.b32.xlu0 %v2514, 96
      %v2581 = vpop.permute.xlu0 %2580
      %2582 = vrot.lane.b32.xlu0 %v2515, 96
      %v2583 = vpop.permute.xlu0 %2582
      %2584 = vrot.lane.b32.xlu0 %v2516, 96
      %v2585 = vpop.permute.xlu0 %2584
      %2586 = vrot.lane.b32.xlu0 %v2517, 96
      %v2587 = vpop.permute.xlu0 %2586
      %2588 = vrot.lane.b32.xlu0 %v2518, 96
      %v2589 = vpop.permute.xlu0 %2588
      %2590 = vrot.lane.b32.xlu0 %v2519, 96
      %v2591 = vpop.permute.xlu0 %2590
      %2608 = vrot.lane.b32.xlu0 %v2520, 16
      %v2609 = vpop.permute.xlu0 %2608
      %2610 = vrot.lane.b32.xlu0 %v2521, 16
      %v2611 = vpop.permute.xlu0 %2610
      %2612 = vrot.lane.b32.xlu0 %v2522, 16
      %v2613 = vpop.permute.xlu0 %2612
      %2614 = vrot.lane.b32.xlu0 %v2523, 16
      %v2615 = vpop.permute.xlu0 %2614
      %2616 = vrot.lane.b32.xlu0 %v2524, 16
      %v2617 = vpop.permute.xlu0 %2616
      %2618 = vrot.lane.b32.xlu0 %v2525, 16
      %v2619 = vpop.permute.xlu0 %2618
      %2620 = vrot.lane.b32.xlu0 %v2526, 16
      %v2621 = vpop.permute.xlu0 %2620
      %2622 = vrot.lane.b32.xlu0 %v2527, 16
      %v2623 = vpop.permute.xlu0 %2622
      %2640 = vrot.lane.b32.xlu0 %v2528, 64
      %v2641 = vpop.permute.xlu0 %2640
      %2642 = vrot.lane.b32.xlu0 %v2529, 64
      %v2643 = vpop.permute.xlu0 %2642
      %2644 = vrot.lane.b32.xlu0 %v2530, 64
      %v2645 = vpop.permute.xlu0 %2644
      %2646 = vrot.lane.b32.xlu0 %v2531, 64
      %v2647 = vpop.permute.xlu0 %2646
      %2648 = vrot.lane.b32.xlu0 %v2532, 64
      %v2649 = vpop.permute.xlu0 %2648
      %2650 = vrot.lane.b32.xlu0 %v2533, 64
      %v2651 = vpop.permute.xlu0 %2650
      %2652 = vrot.lane.b32.xlu0 %v2534, 64
      %v2653 = vpop.permute.xlu0 %2652
      %2654 = vrot.lane.b32.xlu0 %v2535, 64
      %v2655 = vpop.permute.xlu0 %2654
      %v2664 = vsel %vm1208, %v2496, %v2545
      %v2665 = vsel %vm1208, %v2497, %v2547
      %v2666 = vsel %vm1208, %v2498, %v2549
      %v2667 = vsel %vm1208, %v2499, %v2551
      %v2668 = vsel %vm1208, %v2500, %v2553
      %v2669 = vsel %vm1208, %v2501, %v2555
      %v2670 = vsel %vm1208, %v2502, %v2557
      %v2671 = vsel %vm1208, %v2503, %v2559
      %v2672 = vsel %vm1424, %v2664, %v2577
      %v2673 = vsel %vm1424, %v2665, %v2579
      %v2674 = vsel %vm1424, %v2666, %v2581
      %v2675 = vsel %vm1424, %v2667, %v2583
      %v2676 = vsel %vm1424, %v2668, %v2585
      %v2677 = vsel %vm1424, %v2669, %v2587
      %v2678 = vsel %vm1424, %v2670, %v2589
      %v2679 = vsel %vm1424, %v2671, %v2591
      %v2680 = vsel %vm1433, %v2577, %v2609
      %v2681 = vsel %vm1433, %v2579, %v2611
      %v2682 = vsel %vm1433, %v2581, %v2613
      %v2683 = vsel %vm1433, %v2583, %v2615
      %v2684 = vsel %vm1433, %v2585, %v2617
      %v2685 = vsel %vm1433, %v2587, %v2619
      %v2686 = vsel %vm1433, %v2589, %v2621
      %v2687 = vsel %vm1433, %v2591, %v2623
      %v2688 = vsel %vm1442, %v2680, %v2641
      %v2689 = vsel %vm1442, %v2681, %v2643
      %v2690 = vsel %vm1442, %v2682, %v2645
      %v2691 = vsel %vm1442, %v2683, %v2647
      %v2692 = vsel %vm1442, %v2684, %v2649
      %v2693 = vsel %vm1442, %v2685, %v2651
      %v2694 = vsel %vm1442, %v2686, %v2653
      %v2695 = vsel %vm1442, %v2687, %v2655
      %s2696 = scalar_lea.vmem %s3, 1440
      %v2697 = vld [vmem:[%s2696] sm:$0xff]
      %v2698 = vld [vmem:[%s2696 + $0x8] sm:$0xff]
      %v2699 = vld [vmem:[%s2696 + $0x10] sm:$0xff]
      %v2700 = vld [vmem:[%s2696 + $0x18] sm:$0xff]
      %v2701 = vld [vmem:[%s2696 + $0x20] sm:$0xff]
      %v2702 = vld [vmem:[%s2696 + $0x28] sm:$0xff]
      %v2703 = vld [vmem:[%s2696 + $0x30] sm:$0xff]
      %v2704 = vld [vmem:[%s2696 + $0x38] sm:$0xff]
      %v2705 = vld [vmem:[%s2696 + $0x40] sm:$0xff]
      %v2706 = vld [vmem:[%s2696 + $0x48] sm:$0xff]
      %v2707 = vld [vmem:[%s2696 + $0x50] sm:$0xff]
      %v2708 = vld [vmem:[%s2696 + $0x58] sm:$0xff]
      %v2709 = vld [vmem:[%s2696 + $0x60] sm:$0xff]
      %v2710 = vld [vmem:[%s2696 + $0x68] sm:$0xff]
      %v2711 = vld [vmem:[%s2696 + $0x70] sm:$0xff]
      %v2712 = vld [vmem:[%s2696 + $0x78] sm:$0xff]
      %v2713 = vld [vmem:[%s2696 + $0x80] sm:$0xff]
      %v2714 = vld [vmem:[%s2696 + $0x88] sm:$0xff]
      %v2715 = vld [vmem:[%s2696 + $0x90] sm:$0xff]
      %v2716 = vld [vmem:[%s2696 + $0x98] sm:$0xff]
      %v2717 = vld [vmem:[%s2696 + $0xa0] sm:$0xff]
      %v2718 = vld [vmem:[%s2696 + $0xa8] sm:$0xff]
      %v2719 = vld [vmem:[%s2696 + $0xb0] sm:$0xff]
      %v2720 = vld [vmem:[%s2696 + $0xb8] sm:$0xff]
      %v2721 = vld [vmem:[%s2696 + $0xc0] sm:$0xff]
      %v2722 = vld [vmem:[%s2696 + $0xc8] sm:$0xff]
      %v2723 = vld [vmem:[%s2696 + $0xd0] sm:$0xff]
      %v2724 = vld [vmem:[%s2696 + $0xd8] sm:$0xff]
      %v2725 = vld [vmem:[%s2696 + $0xe0] sm:$0xff]
      %v2726 = vld [vmem:[%s2696 + $0xe8] sm:$0xff]
      %v2727 = vld [vmem:[%s2696 + $0xf0] sm:$0xff]
      %v2728 = vld [vmem:[%s2696 + $0xf8] sm:$0xff]
      %v2729 = vld [vmem:[%s2696 + $0x100] sm:$0xff]
      %v2730 = vld [vmem:[%s2696 + $0x108] sm:$0xff]
      %v2731 = vld [vmem:[%s2696 + $0x110] sm:$0xff]
      %v2732 = vld [vmem:[%s2696 + $0x118] sm:$0xff]
      %v2733 = vld [vmem:[%s2696 + $0x120] sm:$0xff]
      %v2734 = vld [vmem:[%s2696 + $0x128] sm:$0xff]
      %v2735 = vld [vmem:[%s2696 + $0x130] sm:$0xff]
      %v2736 = vld [vmem:[%s2696 + $0x138] sm:$0xff]
      %v2737 = vld [vmem:[%s2696 + $0x140] sm:$0xff]
      %v2738 = vld [vmem:[%s2696 + $0x148] sm:$0xff]
      %v2739 = vld [vmem:[%s2696 + $0x150] sm:$0xff]
      %v2740 = vld [vmem:[%s2696 + $0x158] sm:$0xff]
      %v2741 = vld [vmem:[%s2696 + $0x160] sm:$0xff]
      %v2742 = vld [vmem:[%s2696 + $0x168] sm:$0xff]
      %v2743 = vld [vmem:[%s2696 + $0x170] sm:$0xff]
      %v2744 = vld [vmem:[%s2696 + $0x178] sm:$0xff]
      %v2745 = vld [vmem:[%s2696 + $0x180] sm:$0xff]
      %v2746 = vld [vmem:[%s2696 + $0x188] sm:$0xff]
      %v2747 = vld [vmem:[%s2696 + $0x190] sm:$0xff]
      %v2748 = vld [vmem:[%s2696 + $0x198] sm:$0xff]
      %v2749 = vld [vmem:[%s2696 + $0x1a0] sm:$0xff]
      %v2750 = vld [vmem:[%s2696 + $0x1a8] sm:$0xff]
      %v2751 = vld [vmem:[%s2696 + $0x1b0] sm:$0xff]
      %v2752 = vld [vmem:[%s2696 + $0x1b8] sm:$0xff]
      %v2753 = vld [vmem:[%s2696 + $0x1c0] sm:$0xff]
      %v2754 = vld [vmem:[%s2696 + $0x1c8] sm:$0xff]
      %v2755 = vld [vmem:[%s2696 + $0x1d0] sm:$0xff]
      %v2756 = vld [vmem:[%s2696 + $0x1d8] sm:$0xff]
      %v2758 = vsel %vm1511, %v2688, 0
      %v2761 = vsel %vm1511, %v2689, 0
      %v2764 = vsel %vm1511, %v2690, 0
      %v2767 = vsel %vm1511, %v2691, 0
      %v2770 = vsel %vm1511, %v2692, 0
      %v2773 = vsel %vm1511, %v2693, 0
      %v2776 = vsel %vm1511, %v2694, 0
      %v2779 = vsel %vm1511, %v2695, 0
      %2781 = vmatprep.subr.mxu0 %v2698
      %2782 = vmatpush1.msra.mxu0 %v2697
      %2783 = vmatprep.subr.mxu0 %v2700
      %2784 = vmatpush1.msra.mxu0 %v2699
      %2785 = vmatprep.subr.mxu0 %v2702
      %2786 = vmatpush1.msra.mxu0 %v2701
      %2787 = vmatprep.subr.mxu0 %v2704
      %2788 = vmatpush1.msra.mxu0 %v2703
      %2789 = vmatprep.subr.mxu0 %v2706
      %2790 = vmatpush1.msra.mxu0 %v2705
      %2791 = vmatprep.subr.mxu0 %v2708
      %2792 = vmatpush1.msra.mxu0 %v2707
      %2793 = vmatprep.subr.mxu0 %v2710
      %2794 = vmatpush1.msra.mxu0 %v2709
      %2795 = vmatprep.subr.mxu0 %v2712
      %2796 = vmatpush1.msra.mxu0 %v2711
      %2797 = vmatprep.subr.mxu0 %v2714
      %2798 = vmatpush1.msra.mxu0 %v2713
      %2799 = vmatprep.subr.mxu0 %v2716
      %2800 = vmatpush1.msra.mxu0 %v2715
      %2801 = vmatprep.subr.mxu0 %v2718
      %2802 = vmatpush1.msra.mxu0 %v2717
      %2803 = vmatprep.subr.mxu0 %v2720
      %2804 = vmatpush1.msra.mxu0 %v2719
      %2805 = vmatprep.subr.mxu0 %v2722
      %2806 = vmatpush1.msra.mxu0 %v2721
      %2807 = vmatprep.subr.mxu0 %v2724
      %2808 = vmatpush1.msra.mxu0 %v2723
      %2809 = vmatprep.subr.mxu0 %v2726
      %2810 = vmatpush1.msra.mxu0 %v2725
      %2811 = vmatprep.subr.mxu0 %v2728
      %2812 = vmatpush1.msra.mxu0 %v2727
      %2813 = vmatprep.subr.mxu0 %v2730
      %2814 = vmatpush1.msra.mxu0 %v2729
      %2815 = vmatprep.subr.mxu0 %v2732
      %2816 = vmatpush1.msra.mxu0 %v2731
      %2817 = vmatprep.subr.mxu0 %v2734
      %2818 = vmatpush1.msra.mxu0 %v2733
      %2819 = vmatprep.subr.mxu0 %v2736
      %2820 = vmatpush1.msra.mxu0 %v2735
      %2821 = vmatprep.subr.mxu0 %v2738
      %2822 = vmatpush1.msra.mxu0 %v2737
      %2823 = vmatprep.subr.mxu0 %v2740
      %2824 = vmatpush1.msra.mxu0 %v2739
      %2825 = vmatprep.subr.mxu0 %v2742
      %2826 = vmatpush1.msra.mxu0 %v2741
      %2827 = vmatprep.subr.mxu0 %v2744
      %2828 = vmatpush1.msra.mxu0 %v2743
      %2829 = vmatprep.subr.mxu0 %v2746
      %2830 = vmatpush1.msra.mxu0 %v2745
      %2831 = vmatprep.subr.mxu0 %v2748
      %2832 = vmatpush1.msra.mxu0 %v2747
      %2833 = vmatprep.subr.mxu0 %v2750
      %2834 = vmatpush1.msra.mxu0 %v2749
      %2835 = vmatprep.subr.mxu0 %v2752
      %2836 = vmatpush1.msra.mxu0 %v2751
      %2837 = vmatprep.subr.mxu0 %v2754
      %2838 = vmatpush1.msra.mxu0 %v2753
      %2839 = vmatprep.subr.mxu0 %v2756
      %2840 = vmatpush1.msra.mxu0 %v2755
      %2841 = vmatprep.subr.mxu0 0.0
      %2842 = vmatpush1.msra.mxu0 0.0
      %2843 = vmatprep.subr.mxu0 0.0
      %2844 = vmatpush1.msra.mxu0 0.0
      %2845 = vmatprep.mubr.f32.mxu0 %v2758
      %2846 = vmatmul.mubr.f32.gmra.mrb[0].mxu0 %v2672
      %v2847 = vpop.f32.mrb[0].mxu0
      %v2848 = vadd.f32 0.0, %v2847
      %v2849 = vpop.f32.mrb[0].mxu0
      %v2850 = vadd.f32 0.0, %v2849
      %2851 = vmatprep.mubr.f32.mxu0 %v2761
      %2852 = vmatmul.mubr.f32.gmra.mrb[0].mxu0 %v2673
      %v2853 = vpop.f32.mrb[0].mxu0
      %v2854 = vadd.f32 0.0, %v2853
      %v2855 = vpop.f32.mrb[0].mxu0
      %v2856 = vadd.f32 0.0, %v2855
      %2857 = vmatprep.mubr.f32.mxu0 %v2764
      %2858 = vmatmul.mubr.f32.gmra.mrb[0].mxu0 %v2674
      %v2859 = vpop.f32.mrb[0].mxu0
      %v2860 = vadd.f32 0.0, %v2859
      %v2861 = vpop.f32.mrb[0].mxu0
      %v2862 = vadd.f32 0.0, %v2861
      %2863 = vmatprep.mubr.f32.mxu0 %v2767
      %2864 = vmatmul.mubr.f32.gmra.mrb[0].mxu0 %v2675
      %v2865 = vpop.f32.mrb[0].mxu0
      %v2866 = vadd.f32 0.0, %v2865
      %v2867 = vpop.f32.mrb[0].mxu0
      %v2868 = vadd.f32 0.0, %v2867
      %2869 = vmatprep.mubr.f32.mxu0 %v2770
      %2870 = vmatmul.mubr.f32.gmra.mrb[0].mxu0 %v2676
      %v2871 = vpop.f32.mrb[0].mxu0
      %v2872 = vadd.f32 0.0, %v2871
      %v2873 = vpop.f32.mrb[0].mxu0
      %v2874 = vadd.f32 0.0, %v2873
      %2875 = vmatprep.mubr.f32.mxu0 %v2773
      %2876 = vmatmul.mubr.f32.gmra.mrb[0].mxu0 %v2677
      %v2877 = vpop.f32.mrb[0].mxu0
      %v2878 = vadd.f32 0.0, %v2877
      %v2879 = vpop.f32.mrb[0].mxu0
      %v2880 = vadd.f32 0.0, %v2879
      %2881 = vmatprep.mubr.f32.mxu0 %v2776
      %2882 = vmatmul.mubr.f32.gmra.mrb[0].mxu0 %v2678
      %v2883 = vpop.f32.mrb[0].mxu0
      %v2884 = vadd.f32 0.0, %v2883
      %v2885 = vpop.f32.mrb[0].mxu0
      %v2886 = vadd.f32 0.0, %v2885
      %2887 = vmatprep.mubr.f32.mxu0 %v2779
      %2888 = vmatmul.mubr.f32.gmra.mrb[0].mxu0 %v2679
      %v2889 = vpop.f32.mrb[0].mxu0
      %v2890 = vadd.f32 0.0, %v2889
      %v2891 = vpop.f32.mrb[0].mxu0
      %v2892 = vadd.f32 0.0, %v2891
      %2893 = vdwg.mxu0
      %v2894 = vadd.f32 %v2479, %v2848
      %v2895 = vadd.f32 %v2480, %v2850
      %v2896 = vadd.f32 %v2481, %v2854
      %v2897 = vadd.f32 %v2482, %v2856
      %v2898 = vadd.f32 %v2483, %v2860
      %v2899 = vadd.f32 %v2484, %v2862
      %v2900 = vadd.f32 %v2485, %v2866
      %v2901 = vadd.f32 %v2486, %v2868
      %v2902 = vadd.f32 %v2487, %v2872
      %v2903 = vadd.f32 %v2488, %v2874
      %v2904 = vadd.f32 %v2489, %v2878
      %v2905 = vadd.f32 %v2490, %v2880
      %v2906 = vadd.f32 %v2491, %v2884
      %v2907 = vadd.f32 %v2492, %v2886
      %v2908 = vadd.f32 %v2493, %v2890
      %v2909 = vadd.f32 %v2494, %v2892
      %s2910 = scalar_lea.vmem [#allocation2], 96
      %v2911 = vld [vmem:[%s2910] sm:$0xff]
      %v2912 = vld [vmem:[%s2910 + $0x8] sm:$0xff]
      %v2913 = vld [vmem:[%s2910 + $0x18] sm:$0xff]
      %v2914 = vld [vmem:[%s2910 + $0x20] sm:$0xff]
      %v2915 = vld [vmem:[%s2910 + $0x30] sm:$0xff]
      %v2916 = vld [vmem:[%s2910 + $0x38] sm:$0xff]
      %v2917 = vld [vmem:[%s2910 + $0x48] sm:$0xff]
      %v2918 = vld [vmem:[%s2910 + $0x50] sm:$0xff]
      %v2919 = vld [vmem:[%s2910 + $0x1] sm:$0xff]
      %v2920 = vld [vmem:[%s2910 + $0x9] sm:$0xff]
      %v2921 = vld [vmem:[%s2910 + $0x19] sm:$0xff]
      %v2922 = vld [vmem:[%s2910 + $0x21] sm:$0xff]
      %v2923 = vld [vmem:[%s2910 + $0x31] sm:$0xff]
      %v2924 = vld [vmem:[%s2910 + $0x39] sm:$0xff]
      %v2925 = vld [vmem:[%s2910 + $0x49] sm:$0xff]
      %v2926 = vld [vmem:[%s2910 + $0x51] sm:$0xff]
      %v2927 = vld [vmem:[%s2910 + $0x2] sm:$0xff]
      %v2928 = vld [vmem:[%s2910 + $0xa] sm:$0xff]
      %v2929 = vld [vmem:[%s2910 + $0x1a] sm:$0xff]
      %v2930 = vld [vmem:[%s2910 + $0x22] sm:$0xff]
      %v2931 = vld [vmem:[%s2910 + $0x32] sm:$0xff]
      %v2932 = vld [vmem:[%s2910 + $0x3a] sm:$0xff]
      %v2933 = vld [vmem:[%s2910 + $0x4a] sm:$0xff]
      %v2934 = vld [vmem:[%s2910 + $0x52] sm:$0xff]
      %v2935 = vld [vmem:[%s2910 + $0x3] sm:$0xff]
      %v2936 = vld [vmem:[%s2910 + $0xb] sm:$0xff]
      %v2937 = vld [vmem:[%s2910 + $0x1b] sm:$0xff]
      %v2938 = vld [vmem:[%s2910 + $0x23] sm:$0xff]
      %v2939 = vld [vmem:[%s2910 + $0x33] sm:$0xff]
      %v2940 = vld [vmem:[%s2910 + $0x3b] sm:$0xff]
      %v2941 = vld [vmem:[%s2910 + $0x4b] sm:$0xff]
      %v2942 = vld [vmem:[%s2910 + $0x53] sm:$0xff]
      %v2943 = vld [vmem:[%s2910 + $0x4] sm:$0xff]
      %v2944 = vld [vmem:[%s2910 + $0xc] sm:$0xff]
      %v2945 = vld [vmem:[%s2910 + $0x1c] sm:$0xff]
      %v2946 = vld [vmem:[%s2910 + $0x24] sm:$0xff]
      %v2947 = vld [vmem:[%s2910 + $0x34] sm:$0xff]
      %v2948 = vld [vmem:[%s2910 + $0x3c] sm:$0xff]
      %v2949 = vld [vmem:[%s2910 + $0x4c] sm:$0xff]
      %v2950 = vld [vmem:[%s2910 + $0x54] sm:$0xff]
      %2959 = vrot.lane.b32.xlu0 %v2919, 48
      %v2960 = vpop.permute.xlu0 %2959
      %2961 = vrot.lane.b32.xlu0 %v2920, 48
      %v2962 = vpop.permute.xlu0 %2961
      %2963 = vrot.lane.b32.xlu0 %v2921, 48
      %v2964 = vpop.permute.xlu0 %2963
      %2965 = vrot.lane.b32.xlu0 %v2922, 48
      %v2966 = vpop.permute.xlu0 %2965
      %2967 = vrot.lane.b32.xlu0 %v2923, 48
      %v2968 = vpop.permute.xlu0 %2967
      %2969 = vrot.lane.b32.xlu0 %v2924, 48
      %v2970 = vpop.permute.xlu0 %2969
      %2971 = vrot.lane.b32.xlu0 %v2925, 48
      %v2972 = vpop.permute.xlu0 %2971
      %2973 = vrot.lane.b32.xlu0 %v2926, 48
      %v2974 = vpop.permute.xlu0 %2973
      %2991 = vrot.lane.b32.xlu0 %v2927, 96
      %v2992 = vpop.permute.xlu0 %2991
      %2993 = vrot.lane.b32.xlu0 %v2928, 96
      %v2994 = vpop.permute.xlu0 %2993
      %2995 = vrot.lane.b32.xlu0 %v2929, 96
      %v2996 = vpop.permute.xlu0 %2995
      %2997 = vrot.lane.b32.xlu0 %v2930, 96
      %v2998 = vpop.permute.xlu0 %2997
      %2999 = vrot.lane.b32.xlu0 %v2931, 96
      %v3000 = vpop.permute.xlu0 %2999
      %3001 = vrot.lane.b32.xlu0 %v2932, 96
      %v3002 = vpop.permute.xlu0 %3001
      %3003 = vrot.lane.b32.xlu0 %v2933, 96
      %v3004 = vpop.permute.xlu0 %3003
      %3005 = vrot.lane.b32.xlu0 %v2934, 96
      %v3006 = vpop.permute.xlu0 %3005
      %3023 = vrot.lane.b32.xlu0 %v2935, 16
      %v3024 = vpop.permute.xlu0 %3023
      %3025 = vrot.lane.b32.xlu0 %v2936, 16
      %v3026 = vpop.permute.xlu0 %3025
      %3027 = vrot.lane.b32.xlu0 %v2937, 16
      %v3028 = vpop.permute.xlu0 %3027
      %3029 = vrot.lane.b32.xlu0 %v2938, 16
      %v3030 = vpop.permute.xlu0 %3029
      %3031 = vrot.lane.b32.xlu0 %v2939, 16
      %v3032 = vpop.permute.xlu0 %3031
      %3033 = vrot.lane.b32.xlu0 %v2940, 16
      %v3034 = vpop.permute.xlu0 %3033
      %3035 = vrot.lane.b32.xlu0 %v2941, 16
      %v3036 = vpop.permute.xlu0 %3035
      %3037 = vrot.lane.b32.xlu0 %v2942, 16
      %v3038 = vpop.permute.xlu0 %3037
      %3055 = vrot.lane.b32.xlu0 %v2943, 64
      %v3056 = vpop.permute.xlu0 %3055
      %3057 = vrot.lane.b32.xlu0 %v2944, 64
      %v3058 = vpop.permute.xlu0 %3057
      %3059 = vrot.lane.b32.xlu0 %v2945, 64
      %v3060 = vpop.permute.xlu0 %3059
      %3061 = vrot.lane.b32.xlu0 %v2946, 64
      %v3062 = vpop.permute.xlu0 %3061
      %3063 = vrot.lane.b32.xlu0 %v2947, 64
      %v3064 = vpop.permute.xlu0 %3063
      %3065 = vrot.lane.b32.xlu0 %v2948, 64
      %v3066 = vpop.permute.xlu0 %3065
      %3067 = vrot.lane.b32.xlu0 %v2949, 64
      %v3068 = vpop.permute.xlu0 %3067
      %3069 = vrot.lane.b32.xlu0 %v2950, 64
      %v3070 = vpop.permute.xlu0 %3069
      %v3079 = vsel %vm1208, %v2911, %v2960
      %v3080 = vsel %vm1208, %v2912, %v2962
      %v3081 = vsel %vm1208, %v2913, %v2964
      %v3082 = vsel %vm1208, %v2914, %v2966
      %v3083 = vsel %vm1208, %v2915, %v2968
      %v3084 = vsel %vm1208, %v2916, %v2970
      %v3085 = vsel %vm1208, %v2917, %v2972
      %v3086 = vsel %vm1208, %v2918, %v2974
      %v3087 = vsel %vm1424, %v3079, %v2992
      %v3088 = vsel %vm1424, %v3080, %v2994
      %v3089 = vsel %vm1424, %v3081, %v2996
      %v3090 = vsel %vm1424, %v3082, %v2998
      %v3091 = vsel %vm1424, %v3083, %v3000
      %v3092 = vsel %vm1424, %v3084, %v3002
      %v3093 = vsel %vm1424, %v3085, %v3004
      %v3094 = vsel %vm1424, %v3086, %v3006
      %v3095 = vsel %vm1433, %v2992, %v3024
      %v3096 = vsel %vm1433, %v2994, %v3026
      %v3097 = vsel %vm1433, %v2996, %v3028
      %v3098 = vsel %vm1433, %v2998, %v3030
      %v3099 = vsel %vm1433, %v3000, %v3032
      %v3100 = vsel %vm1433, %v3002, %v3034
      %v3101 = vsel %vm1433, %v3004, %v3036
      %v3102 = vsel %vm1433, %v3006, %v3038
      %v3103 = vsel %vm1442, %v3095, %v3056
      %v3104 = vsel %vm1442, %v3096, %v3058
      %v3105 = vsel %vm1442, %v3097, %v3060
      %v3106 = vsel %vm1442, %v3098, %v3062
      %v3107 = vsel %vm1442, %v3099, %v3064
      %v3108 = vsel %vm1442, %v3100, %v3066
      %v3109 = vsel %vm1442, %v3101, %v3068
      %v3110 = vsel %vm1442, %v3102, %v3070
      %s3111 = scalar_lea.vmem %s3, 1920
      %v3112 = vld [vmem:[%s3111] sm:$0xff]
      %v3113 = vld [vmem:[%s3111 + $0x8] sm:$0xff]
      %v3114 = vld [vmem:[%s3111 + $0x10] sm:$0xff]
      %v3115 = vld [vmem:[%s3111 + $0x18] sm:$0xff]
      %v3116 = vld [vmem:[%s3111 + $0x20] sm:$0xff]
      %v3117 = vld [vmem:[%s3111 + $0x28] sm:$0xff]
      %v3118 = vld [vmem:[%s3111 + $0x30] sm:$0xff]
      %v3119 = vld [vmem:[%s3111 + $0x38] sm:$0xff]
      %v3120 = vld [vmem:[%s3111 + $0x40] sm:$0xff]
      %v3121 = vld [vmem:[%s3111 + $0x48] sm:$0xff]
      %v3122 = vld [vmem:[%s3111 + $0x50] sm:$0xff]
      %v3123 = vld [vmem:[%s3111 + $0x58] sm:$0xff]
      %v3124 = vld [vmem:[%s3111 + $0x60] sm:$0xff]
      %v3125 = vld [vmem:[%s3111 + $0x68] sm:$0xff]
      %v3126 = vld [vmem:[%s3111 + $0x70] sm:$0xff]
      %v3127 = vld [vmem:[%s3111 + $0x78] sm:$0xff]
      %v3128 = vld [vmem:[%s3111 + $0x80] sm:$0xff]
      %v3129 = vld [vmem:[%s3111 + $0x88] sm:$0xff]
      %v3130 = vld [vmem:[%s3111 + $0x90] sm:$0xff]
      %v3131 = vld [vmem:[%s3111 + $0x98] sm:$0xff]
      %v3132 = vld [vmem:[%s3111 + $0xa0] sm:$0xff]
      %v3133 = vld [vmem:[%s3111 + $0xa8] sm:$0xff]
      %v3134 = vld [vmem:[%s3111 + $0xb0] sm:$0xff]
      %v3135 = vld [vmem:[%s3111 + $0xb8] sm:$0xff]
      %v3136 = vld [vmem:[%s3111 + $0xc0] sm:$0xff]
      %v3137 = vld [vmem:[%s3111 + $0xc8] sm:$0xff]
      %v3138 = vld [vmem:[%s3111 + $0xd0] sm:$0xff]
      %v3139 = vld [vmem:[%s3111 + $0xd8] sm:$0xff]
      %v3140 = vld [vmem:[%s3111 + $0xe0] sm:$0xff]
      %v3141 = vld [vmem:[%s3111 + $0xe8] sm:$0xff]
      %v3142 = vld [vmem:[%s3111 + $0xf0] sm:$0xff]
      %v3143 = vld [vmem:[%s3111 + $0xf8] sm:$0xff]
      %v3144 = vld [vmem:[%s3111 + $0x100] sm:$0xff]
      %v3145 = vld [vmem:[%s3111 + $0x108] sm:$0xff]
      %v3146 = vld [vmem:[%s3111 + $0x110] sm:$0xff]
      %v3147 = vld [vmem:[%s3111 + $0x118] sm:$0xff]
      %v3148 = vld [vmem:[%s3111 + $0x120] sm:$0xff]
      %v3149 = vld [vmem:[%s3111 + $0x128] sm:$0xff]
      %v3150 = vld [vmem:[%s3111 + $0x130] sm:$0xff]
      %v3151 = vld [vmem:[%s3111 + $0x138] sm:$0xff]
      %v3152 = vld [vmem:[%s3111 + $0x140] sm:$0xff]
      %v3153 = vld [vmem:[%s3111 + $0x148] sm:$0xff]
      %v3154 = vld [vmem:[%s3111 + $0x150] sm:$0xff]
      %v3155 = vld [vmem:[%s3111 + $0x158] sm:$0xff]
      %v3156 = vld [vmem:[%s3111 + $0x160] sm:$0xff]
      %v3157 = vld [vmem:[%s3111 + $0x168] sm:$0xff]
      %v3158 = vld [vmem:[%s3111 + $0x170] sm:$0xff]
      %v3159 = vld [vmem:[%s3111 + $0x178] sm:$0xff]
      %v3160 = vld [vmem:[%s3111 + $0x180] sm:$0xff]
      %v3161 = vld [vmem:[%s3111 + $0x188] sm:$0xff]
      %v3162 = vld [vmem:[%s3111 + $0x190] sm:$0xff]
      %v3163 = vld [vmem:[%s3111 + $0x198] sm:$0xff]
      %v3164 = vld [vmem:[%s3111 + $0x1a0] sm:$0xff]
      %v3165 = vld [vmem:[%s3111 + $0x1a8] sm:$0xff]
      %v3166 = vld [vmem:[%s3111 + $0x1b0] sm:$0xff]
      %v3167 = vld [vmem:[%s3111 + $0x1b8] sm:$0xff]
      %v3168 = vld [vmem:[%s3111 + $0x1c0] sm:$0xff]
      %v3169 = vld [vmem:[%s3111 + $0x1c8] sm:$0xff]
      %v3170 = vld [vmem:[%s3111 + $0x1d0] sm:$0xff]
      %v3171 = vld [vmem:[%s3111 + $0x1d8] sm:$0xff]
      %v3173 = vsel %vm1511, %v3103, 0
      %v3176 = vsel %vm1511, %v3104, 0
      %v3179 = vsel %vm1511, %v3105, 0
      %v3182 = vsel %vm1511, %v3106, 0
      %v3185 = vsel %vm1511, %v3107, 0
      %v3188 = vsel %vm1511, %v3108, 0
      %v3191 = vsel %vm1511, %v3109, 0
      %v3194 = vsel %vm1511, %v3110, 0
      %3196 = vmatprep.subr.mxu0 %v3113
      %3197 = vmatpush1.msra.mxu0 %v3112
      %3198 = vmatprep.subr.mxu0 %v3115
      %3199 = vmatpush1.msra.mxu0 %v3114
      %3200 = vmatprep.subr.mxu0 %v3117
      %3201 = vmatpush1.msra.mxu0 %v3116
      %3202 = vmatprep.subr.mxu0 %v3119
      %3203 = vmatpush1.msra.mxu0 %v3118
      %3204 = vmatprep.subr.mxu0 %v3121
      %3205 = vmatpush1.msra.mxu0 %v3120
      %3206 = vmatprep.subr.mxu0 %v3123
      %3207 = vmatpush1.msra.mxu0 %v3122
      %3208 = vmatprep.subr.mxu0 %v3125
      %3209 = vmatpush1.msra.mxu0 %v3124
      %3210 = vmatprep.subr.mxu0 %v3127
      %3211 = vmatpush1.msra.mxu0 %v3126
      %3212 = vmatprep.subr.mxu0 %v3129
      %3213 = vmatpush1.msra.mxu0 %v3128
      %3214 = vmatprep.subr.mxu0 %v3131
      %3215 = vmatpush1.msra.mxu0 %v3130
      %3216 = vmatprep.subr.mxu0 %v3133
      %3217 = vmatpush1.msra.mxu0 %v3132
      %3218 = vmatprep.subr.mxu0 %v3135
      %3219 = vmatpush1.msra.mxu0 %v3134
      %3220 = vmatprep.subr.mxu0 %v3137
      %3221 = vmatpush1.msra.mxu0 %v3136
      %3222 = vmatprep.subr.mxu0 %v3139
      %3223 = vmatpush1.msra.mxu0 %v3138
      %3224 = vmatprep.subr.mxu0 %v3141
      %3225 = vmatpush1.msra.mxu0 %v3140
      %3226 = vmatprep.subr.mxu0 %v3143
      %3227 = vmatpush1.msra.mxu0 %v3142
      %3228 = vmatprep.subr.mxu0 %v3145
      %3229 = vmatpush1.msra.mxu0 %v3144
      %3230 = vmatprep.subr.mxu0 %v3147
      %3231 = vmatpush1.msra.mxu0 %v3146
      %3232 = vmatprep.subr.mxu0 %v3149
      %3233 = vmatpush1.msra.mxu0 %v3148
      %3234 = vmatprep.subr.mxu0 %v3151
      %3235 = vmatpush1.msra.mxu0 %v3150
      %3236 = vmatprep.subr.mxu0 %v3153
      %3237 = vmatpush1.msra.mxu0 %v3152
      %3238 = vmatprep.subr.mxu0 %v3155
      %3239 = vmatpush1.msra.mxu0 %v3154
      %3240 = vmatprep.subr.mxu0 %v3157
      %3241 = vmatpush1.msra.mxu0 %v3156
      %3242 = vmatprep.subr.mxu0 %v3159
      %3243 = vmatpush1.msra.mxu0 %v3158
      %3244 = vmatprep.subr.mxu0 %v3161
      %3245 = vmatpush1.msra.mxu0 %v3160
      %3246 = vmatprep.subr.mxu0 %v3163
      %3247 = vmatpush1.msra.mxu0 %v3162
      %3248 = vmatprep.subr.mxu0 %v3165
      %3249 = vmatpush1.msra.mxu0 %v3164
      %3250 = vmatprep.subr.mxu0 %v3167
      %3251 = vmatpush1.msra.mxu0 %v3166
      %3252 = vmatprep.subr.mxu0 %v3169
      %3253 = vmatpush1.msra.mxu0 %v3168
      %3254 = vmatprep.subr.mxu0 %v3171
      %3255 = vmatpush1.msra.mxu0 %v3170
      %3256 = vmatprep.subr.mxu0 0.0
      %3257 = vmatpush1.msra.mxu0 0.0
      %3258 = vmatprep.subr.mxu0 0.0
      %3259 = vmatpush1.msra.mxu0 0.0
      %3260 = vmatprep.mubr.f32.mxu0 %v3173
      %3261 = vmatmul.mubr.f32.gmra.mrb[0].mxu0 %v3087
      %v3262 = vpop.f32.mrb[0].mxu0
      %v3263 = vadd.f32 0.0, %v3262
      %v3264 = vpop.f32.mrb[0].mxu0
      %v3265 = vadd.f32 0.0, %v3264
      %3266 = vmatprep.mubr.f32.mxu0 %v3176
      %3267 = vmatmul.mubr.f32.gmra.mrb[0].mxu0 %v3088
      %v3268 = vpop.f32.mrb[0].mxu0
      %v3269 = vadd.f32 0.0, %v3268
      %v3270 = vpop.f32.mrb[0].mxu0
      %v3271 = vadd.f32 0.0, %v3270
      %3272 = vmatprep.mubr.f32.mxu0 %v3179
      %3273 = vmatmul.mubr.f32.gmra.mrb[0].mxu0 %v3089
      %v3274 = vpop.f32.mrb[0].mxu0
      %v3275 = vadd.f32 0.0, %v3274
      %v3276 = vpop.f32.mrb[0].mxu0
      %v3277 = vadd.f32 0.0, %v3276
      %3278 = vmatprep.mubr.f32.mxu0 %v3182
      %3279 = vmatmul.mubr.f32.gmra.mrb[0].mxu0 %v3090
      %v3280 = vpop.f32.mrb[0].mxu0
      %v3281 = vadd.f32 0.0, %v3280
      %v3282 = vpop.f32.mrb[0].mxu0
      %v3283 = vadd.f32 0.0, %v3282
      %3284 = vmatprep.mubr.f32.mxu0 %v3185
      %3285 = vmatmul.mubr.f32.gmra.mrb[0].mxu0 %v3091
      %v3286 = vpop.f32.mrb[0].mxu0
      %v3287 = vadd.f32 0.0, %v3286
      %v3288 = vpop.f32.mrb[0].mxu0
      %v3289 = vadd.f32 0.0, %v3288
      %3290 = vmatprep.mubr.f32.mxu0 %v3188
      %3291 = vmatmul.mubr.f32.gmra.mrb[0].mxu0 %v3092
      %v3292 = vpop.f32.mrb[0].mxu0
      %v3293 = vadd.f32 0.0, %v3292
      %v3294 = vpop.f32.mrb[0].mxu0
      %v3295 = vadd.f32 0.0, %v3294
      %3296 = vmatprep.mubr.f32.mxu0 %v3191
      %3297 = vmatmul.mubr.f32.gmra.mrb[0].mxu0 %v3093
      %v3298 = vpop.f32.mrb[0].mxu0
      %v3299 = vadd.f32 0.0, %v3298
      %v3300 = vpop.f32.mrb[0].mxu0
      %v3301 = vadd.f32 0.0, %v3300
      %3302 = vmatprep.mubr.f32.mxu0 %v3194
      %3303 = vmatmul.mubr.f32.gmra.mrb[0].mxu0 %v3094
      %v3304 = vpop.f32.mrb[0].mxu0
      %v3305 = vadd.f32 0.0, %v3304
      %v3306 = vpop.f32.mrb[0].mxu0
      %v3307 = vadd.f32 0.0, %v3306
      %3308 = vdwg.mxu0
      %v3309 = vadd.f32 %v2894, %v3263
      %v3310 = vadd.f32 %v2895, %v3265
      %v3311 = vadd.f32 %v2896, %v3269
      %v3312 = vadd.f32 %v2897, %v3271
      %v3313 = vadd.f32 %v2898, %v3275
      %v3314 = vadd.f32 %v2899, %v3277
      %v3315 = vadd.f32 %v2900, %v3281
      %v3316 = vadd.f32 %v2901, %v3283
      %v3317 = vadd.f32 %v2902, %v3287
      %v3318 = vadd.f32 %v2903, %v3289
      %v3319 = vadd.f32 %v2904, %v3293
      %v3320 = vadd.f32 %v2905, %v3295
      %v3321 = vadd.f32 %v2906, %v3299
      %v3322 = vadd.f32 %v2907, %v3301
      %v3323 = vadd.f32 %v2908, %v3305
      %v3324 = vadd.f32 %v2909, %v3307
      %3325 = vst [vmem:[%s248] sm:$0xff] %v3309
      %3326 = vst.msk [vmem:[%s248 + $0x8] sm:$0xff] %vm1442, %v3310
      %3327 = vst [vmem:[%s248 + $0x10] sm:$0xff] %v3311
      %3328 = vst.msk [vmem:[%s248 + $0x18] sm:$0xff] %vm1442, %v3312
      %3329 = vst [vmem:[%s248 + $0x20] sm:$0xff] %v3313
      %3330 = vst.msk [vmem:[%s248 + $0x28] sm:$0xff] %vm1442, %v3314
      %3331 = vst [vmem:[%s248 + $0x30] sm:$0xff] %v3315
      %3332 = vst.msk [vmem:[%s248 + $0x38] sm:$0xff] %vm1442, %v3316
      %3333 = vst [vmem:[%s248 + $0x40] sm:$0xff] %v3317
      %3334 = vst.msk [vmem:[%s248 + $0x48] sm:$0xff] %vm1442, %v3318
      %3335 = vst [vmem:[%s248 + $0x50] sm:$0xff] %v3319
      %3336 = vst.msk [vmem:[%s248 + $0x58] sm:$0xff] %vm1442, %v3320
      %3337 = vst [vmem:[%s248 + $0x60] sm:$0xff] %v3321
      %3338 = vst.msk [vmem:[%s248 + $0x68] sm:$0xff] %vm1442, %v3322
      %3339 = vst [vmem:[%s248 + $0x70] sm:$0xff] %v3323
      %3340 = vst.msk [vmem:[%s248 + $0x78] sm:$0xff] %vm1442, %v3324
      %s3341 = smul.u32 8, %s21
      %p3342 = scmp.lt.s32.totalorder %s20, 1
      %s3343 = scalar_select %p3342, %s20, 1
      %p3344 = scmp.lt.s32.totalorder %s3341, 31
      %s3345 = scalar_select %p3344, %s3341, 31
      %s3346 = smul.addr %s3345, 2
      %s3347 = smul.addr %s3343, 64
      %s3348 = sadd.s32 %s3346, %s3347
      %s3349 = smul.addr %s3348, 8
      %s3350 = scalar_lea.vmem %s5, %s3349
      // Predicated region
      $region41: #{tpu_custom_call.1} parent=39 // pred_check
        %p3351 = pneg %p158
      $region42: #{tpu_custom_call.1} parent=39 // pred_check_branch
        %3353 = sbr.rel (%p3351) target = $region44
      $region43: #{tpu_custom_call.1} parent=39 // pred_region
        %s3354 = smul.u32 8, %s21
      $region44: #{tpu_custom_call.1} parent=39 // pred_fallthru
        _
    $region40: #{tpu_custom_call.1} parent=5 // pred_fallthru
      _
    %p3355 = scmp.le.s32.totalorder 2, %s11
    // Predicated region
    $region45: #{tpu_custom_call.1} parent=5 // pred_check
      %p3356 = pneg %p3355
    $region46: #{tpu_custom_call.1} parent=5 // pred_check_branch
      %3358 = sbr.rel (%p3356) target = $region48
    $region47: #{tpu_custom_call.1} parent=5 // pred_region
      %s3359 = ssub.s32 %s11, 2
      // Predicated region
      $region49: #{tpu_custom_call.1} parent=47 // pred_check
        %p3360 = pneg %p164
      $region50: #{tpu_custom_call.1} parent=47 // pred_check_branch
        %3362 = sbr.rel (%p3360) target = $region52
      $region51: #{tpu_custom_call.1} parent=47 // pred_region
        %s3363 = smul.u32 8, %s23
        %p3364 = scmp.lt.s32.totalorder %s22, 1
        %s3365 = scalar_select %p3364, %s22, 1
        %p3366 = scmp.lt.s32.totalorder %s3363, 31
        %s3367 = scalar_select %p3366, %s3363, 31
        %s3368 = smul.addr %s3367, 2
        %s3369 = smul.addr %s3365, 64
        %s3370 = sadd.s32 %s3368, %s3369
        %s3371 = smul.addr %s3370, 8
        %s3372 = scalar_lea.vmem %s5, %s3371
      $region52: #{tpu_custom_call.1} parent=47 // pred_fallthru
        _
    $region48: #{tpu_custom_call.1} parent=5 // pred_fallthru
      _
  $region6: #{tpu_custom_call.1} parent=0 // loop_footer
    %s15 = sadd.s32 1, %s11
  $region7: #{tpu_custom_call.1} parent=0 // loop_footer_branch
    %10 = sbr.rel target = $region3
  $region8: #{tpu_custom_call.1} parent=0 // loop_exit
    _

</llo_original>
